<compile_context>
chip_gen: v7x
topology: tpu7x:2x2x1
jax: 0.10.0
libtpu: 0.0.40
codegen_flags: <defaults>
</compile_context>

<pallas_src>
import math
import functools

import jax
import jax.numpy as jnp
from jax.experimental import pallas as pl
from jax.experimental.pallas import tpu as pltpu


# ----------------------------------------------------------------------------
# LayerNorm helper (f32, matches PyTorch eps=1e-5, post-norm layers)
# ----------------------------------------------------------------------------
def _layer_norm(x, w, b, eps):
    mu = jnp.mean(x, axis=-1, keepdims=True)
    var = jnp.mean(jnp.square(x - mu), axis=-1, keepdims=True)
    return (x - mu) * jax.lax.rsqrt(var + eps) * w + b


# ----------------------------------------------------------------------------
# Fused kernel: PE + nlayers x (MHA + FFN, post-norm) + decoder, one call.
# ----------------------------------------------------------------------------
def transformer_kernel(nlayers, nhead, ln_eps, embed_scale,
                       x_ref, pe_ref,
                       wqkv_ref, bqkv_ref, wo_ref, bo_ref,
                       ln1w_ref, ln1b_ref,
                       w1_ref, b1_ref, w2_ref, b2_ref,
                       ln2w_ref, ln2b_ref,
                       dec_w_ref, dec_b_ref,
                       out_ref):
    B, S, D = x_ref.shape
    M = B * S
    H = nhead
    Dh = D // H
    inv_sqrt_dh = 1.0 / math.sqrt(Dh)

    # embedding scale + fixed sinusoidal PE (dropout == identity in eval)
    x = x_ref[...].astype(jnp.float32) * embed_scale + pe_ref[...][None, :, :]
    x = x.reshape(M, D)                                  # fold batch into rows

    for l in range(nlayers):
        # ---- self-attention ----
        qkv = jnp.dot(x.astype(jnp.bfloat16), wqkv_ref[l],
                      preferred_element_type=jnp.float32)
        qkv = (qkv + bqkv_ref[l]).astype(jnp.bfloat16)   # (M, 3D)

        ctx_rows = []
        for b in range(B):
            qkv_b = qkv[b * S:(b + 1) * S]               # (S, 3D), static slice
            heads = []
            for h in range(H):
                qh = qkv_b[:, h * Dh:(h + 1) * Dh]                   # (S, Dh)
                kh = qkv_b[:, D + h * Dh:D + (h + 1) * Dh]           # (S, Dh)
                vh = qkv_b[:, 2 * D + h * Dh:2 * D + (h + 1) * Dh]   # (S, Dh)
                s = jax.lax.dot_general(
                    qh, kh, (((1,), (1,)), ((), ())),
                    preferred_element_type=jnp.float32) * inv_sqrt_dh  # (S, S)
                s = s - jnp.max(s, axis=-1, keepdims=True)
                p = jnp.exp(s)
                p = p * pl.reciprocal(jnp.sum(p, axis=-1, keepdims=True),
                                      approx=True)
                heads.append(jnp.dot(p.astype(jnp.bfloat16), vh,
                                     preferred_element_type=jnp.float32))
            ctx_rows.append(jnp.concatenate(heads, axis=-1))          # (S, D)
        ctx = jnp.concatenate(ctx_rows, axis=0)                       # (M, D)

        attn = jnp.dot(ctx.astype(jnp.bfloat16), wo_ref[l],
                       preferred_element_type=jnp.float32) + bo_ref[l]
        x = _layer_norm(x + attn, ln1w_ref[l], ln1b_ref[l], ln_eps)

        # ---- FFN: relu(x @ W1 + b1) @ W2 + b2 ----
        h1 = jnp.dot(x.astype(jnp.bfloat16), w1_ref[l],
                     preferred_element_type=jnp.float32) + b1_ref[l]
        h1 = jnp.maximum(h1, 0.0)
        ff = jnp.dot(h1.astype(jnp.bfloat16), w2_ref[l],
                     preferred_element_type=jnp.float32) + b2_ref[l]
        x = _layer_norm(x + ff, ln2w_ref[l], ln2b_ref[l], ln_eps)

    # ---- decoder: (M, D) @ (D, V) + b ----
    out_ref[...] = (jnp.dot(x.astype(jnp.bfloat16), dec_w_ref[...],
                            preferred_element_type=jnp.float32)
                    + dec_b_ref[...])


# ----------------------------------------------------------------------------
# Full model forward
# ----------------------------------------------------------------------------
def transformer_forward(input_ids, params, ninp, nhead):
    B, S = input_ids.shape
    D = ninp
    nlayers = params['wqkv'].shape[0]
    F = params['w1'].shape[2]
    V = params['dec_w'].shape[1]
    M = B * S
    Dh = D // nhead

    # TODO(synk): token-id embedding row gather kept as plain-JAX glue
    # (data-dependent gather, not worth a Pallas DMA-gather at these shapes).
    emb = jnp.take(params['emb'], input_ids, axis=0)          # (B, S, D) f32
    pe = params['pe'][:S]                                      # (S, D) f32

    args = (emb, pe,
            params['wqkv'], params['bqkv'], params['wo'], params['bo'],
            params['ln1w'], params['ln1b'],
            params['w1'], params['b1'], params['w2'], params['b2'],
            params['ln2w'], params['ln2b'],
            params['dec_w'], params['dec_b'])

    flops = (nlayers * (2 * M * D * 3 * D                      # qkv proj
                        + 2 * B * nhead * S * S * Dh * 2       # qk^T and pv
                        + 2 * M * D * D                        # out proj
                        + 4 * M * D * F)                       # ffn (two matmuls)
             + 2 * M * D * V)                                  # decoder
    transcendentals = nlayers * B * nhead * S * (S + 1)        # exp + reciprocal
    bytes_accessed = (sum(int(a.size) * a.dtype.itemsize for a in args)
                      + M * V * 4)

    logits = pl.pallas_call(
        functools.partial(transformer_kernel, nlayers, nhead, 1e-5,
                          math.sqrt(ninp)),
        out_shape=jax.ShapeDtypeStruct((M, V), jnp.float32),
        cost_estimate=pl.CostEstimate(flops=int(flops),
                                      transcendentals=int(transcendentals),
                                      bytes_accessed=int(bytes_accessed)),
    )(*args)
    return logits.reshape(B, S, V)


# ----------------------------------------------------------------------------
# Deterministic parameter construction (weights pre-transposed to (in, out),
# per-layer tensors stacked on a leading layer axis)
# ----------------------------------------------------------------------------
def make_params(key, ntokens, ninp, nhead, nhid, nlayers, max_len=64):
    f32, bf16 = jnp.float32, jnp.bfloat16
    keys = jax.random.split(key, 3 + 6 * nlayers)
    it = iter(keys)

    def unif(k, shape, a, dtype=f32):
        return jax.random.uniform(k, shape, f32, -a, a).astype(dtype)

    # encoder embedding: uniform(-0.1, 0.1) as in init_weights()
    emb = unif(next(it), (ntokens, ninp), 0.1)

    # fixed sinusoidal positional table (buffer)
    position = jnp.arange(max_len, dtype=f32)[:, None]
    div_term = jnp.exp(jnp.arange(0, ninp, 2, dtype=f32)
                       * (-math.log(10000.0) / ninp))
    pe = jnp.zeros((max_len, ninp), f32)
    pe = pe.at[:, 0::2].set(jnp.sin(position * div_term))
    pe = pe.at[:, 1::2].set(jnp.cos(position * div_term))

    a_in = 1.0 / math.sqrt(ninp)
    a_hid = 1.0 / math.sqrt(nhid)
    per_layer = []
    for _ in range(nlayers):
        per_layer.append(dict(
            wqkv=unif(next(it), (ninp, 3 * ninp), a_in, bf16),   # (in, out)
            bqkv=jnp.zeros((1, 3 * ninp), f32),
            wo=unif(next(it), (ninp, ninp), a_in, bf16),
            bo=jnp.zeros((1, ninp), f32),
            ln1w=jnp.ones((1, ninp), f32),
            ln1b=jnp.zeros((1, ninp), f32),
            w1=unif(next(it), (ninp, nhid), a_in, bf16),
            b1=unif(next(it), (1, nhid), a_in),
            w2=unif(next(it), (nhid, ninp), a_hid, bf16),
            b2=unif(next(it), (1, ninp), a_hid),
            ln2w=jnp.ones((1, ninp), f32),
            ln2b=jnp.zeros((1, ninp), f32),
        ))
    stacked = {k: jnp.stack([lyr[k] for lyr in per_layer], axis=0)
               for k in per_layer[0]}

    dec_w = unif(next(it), (ninp, ntokens), 0.1, bf16)           # (in, out)
    dec_b = unif(next(it), (1, ntokens), a_in)

    return dict(emb=emb, pe=pe, dec_w=dec_w, dec_b=dec_b, **stacked)


if __name__ == "__main__":
    # small, lane-aligned config consistent with
    # TransformerModel(ntokens, ninp, nhead, nhid, nlayers)
    ntokens, ninp, nhead, nhid, nlayers = 256, 128, 4, 256, 2
    batch, seq = 2, 8

    key = jax.random.PRNGKey(0)
    pkey, ikey = jax.random.split(key)
    params = make_params(pkey, ntokens, ninp, nhead, nhid, nlayers)
    input_ids = jax.random.randint(ikey, (batch, seq), 0, ntokens,
                                   dtype=jnp.int32)

    fwd = jax.jit(functools.partial(transformer_forward, ninp=ninp, nhead=nhead))
    logits = fwd(input_ids, params)
    jax.block_until_ready(logits)

    assert logits.shape == (batch, seq, ntokens), logits.shape
    assert logits.dtype == jnp.float32
    assert bool(jnp.all(jnp.isfinite(logits)))
    print("KERNEL_OK")
</pallas_src>

<mosaic_0001>
module attributes {stable_mosaic.version = 11 : i64} {
  func.func @transformer_kernel(%arg0: memref<2x8x128xf32, #tpu.memory_space<vmem>>, %arg1: memref<8x128xf32, #tpu.memory_space<vmem>>, %arg2: memref<2x128x384xbf16, #tpu.memory_space<vmem>>, %arg3: memref<2x1x384xf32, #tpu.memory_space<vmem>>, %arg4: memref<2x128x128xbf16, #tpu.memory_space<vmem>>, %arg5: memref<2x1x128xf32, #tpu.memory_space<vmem>>, %arg6: memref<2x1x128xf32, #tpu.memory_space<vmem>>, %arg7: memref<2x1x128xf32, #tpu.memory_space<vmem>>, %arg8: memref<2x128x256xbf16, #tpu.memory_space<vmem>>, %arg9: memref<2x1x256xf32, #tpu.memory_space<vmem>>, %arg10: memref<2x256x128xbf16, #tpu.memory_space<vmem>>, %arg11: memref<2x1x128xf32, #tpu.memory_space<vmem>>, %arg12: memref<2x1x128xf32, #tpu.memory_space<vmem>>, %arg13: memref<2x1x128xf32, #tpu.memory_space<vmem>>, %arg14: memref<128x256xbf16, #tpu.memory_space<vmem>>, %arg15: memref<1x256xf32, #tpu.memory_space<vmem>>, %arg16: memref<16x256xf32, #tpu.memory_space<vmem>>) attributes {dimension_semantics = [], scalar_prefetch = 0 : i64, scratch_operands = 0 : i64, tpu.core_type = #tpu.core_type<tc>} {
    %c0 = arith.constant 0 : index
    %c0_0 = arith.constant 0 : index
    %c0_1 = arith.constant 0 : index
    %0 = vector.load %arg0[%c0, %c0_0, %c0_1] : memref<2x8x128xf32, #tpu.memory_space<vmem>>, vector<2x8x128xf32>
    %cst = arith.constant 11.3137083 : f32
    %1 = vector.broadcast %cst : f32 to vector<2x8x128xf32>
    %2 = arith.mulf %0, %1 : vector<2x8x128xf32>
    %c0_2 = arith.constant 0 : index
    %c0_3 = arith.constant 0 : index
    %3 = vector.load %arg1[%c0_2, %c0_3] : memref<8x128xf32, #tpu.memory_space<vmem>>, vector<8x128xf32>
    %4 = vector.shape_cast %3 : vector<8x128xf32> to vector<1x8x128xf32>
    %5 = vector.broadcast %4 : vector<1x8x128xf32> to vector<2x8x128xf32>
    %6 = arith.addf %2, %5 : vector<2x8x128xf32>
    %7 = vector.shape_cast %6 : vector<2x8x128xf32> to vector<16x128xf32>
    %8 = arith.truncf %7 : vector<16x128xf32> to vector<16x128xbf16>
    %c0_4 = arith.constant 0 : index
    %c0_5 = arith.constant 0 : index
    %c0_6 = arith.constant 0 : index
    %9 = vector.load %arg2[%c0_4, %c0_5, %c0_6] : memref<2x128x384xbf16, #tpu.memory_space<vmem>>, vector<1x128x384xbf16>
    %10 = vector.shape_cast %9 : vector<1x128x384xbf16> to vector<128x384xbf16>
    %cst_7 = arith.constant dense<0.000000e+00> : vector<16x384xf32>
    %11 = tpu.matmul %8, %10, %cst_7 {dimension_numbers = #tpu.dot_dimension_numbers<[1], [0], [0], [1], [0, 0, 1, 1], [], []>} : vector<16x128xbf16>, vector<128x384xbf16>, vector<16x384xf32> -> vector<16x384xf32>
    %c0_8 = arith.constant 0 : index
    %c0_9 = arith.constant 0 : index
    %c0_10 = arith.constant 0 : index
    %12 = vector.load %arg3[%c0_8, %c0_9, %c0_10] : memref<2x1x384xf32, #tpu.memory_space<vmem>>, vector<1x1x384xf32>
    %13 = vector.shape_cast %12 : vector<1x1x384xf32> to vector<1x384xf32>
    %14 = vector.broadcast %13 : vector<1x384xf32> to vector<16x384xf32>
    %15 = arith.addf %11, %14 : vector<16x384xf32>
    %16 = arith.truncf %15 : vector<16x384xf32> to vector<16x384xbf16>
    %17 = vector.extract_strided_slice %16 {offsets = [0, 0], sizes = [8, 384], strides = [1, 1]} : vector<16x384xbf16> to vector<8x384xbf16>
    %18 = vector.extract_strided_slice %17 {offsets = [0, 0], sizes = [8, 32], strides = [1, 1]} : vector<8x384xbf16> to vector<8x32xbf16>
    %19 = vector.extract_strided_slice %17 {offsets = [0, 128], sizes = [8, 32], strides = [1, 1]} : vector<8x384xbf16> to vector<8x32xbf16>
    %20 = vector.extract_strided_slice %17 {offsets = [0, 256], sizes = [8, 32], strides = [1, 1]} : vector<8x384xbf16> to vector<8x32xbf16>
    %cst_11 = arith.constant dense<0.000000e+00> : vector<8x8xf32>
    %21 = tpu.matmul %18, %19, %cst_11 {dimension_numbers = #tpu.dot_dimension_numbers<[1], [1], [0], [0], [0, 0, 1, 0], [], []>} : vector<8x32xbf16>, vector<8x32xbf16>, vector<8x8xf32> -> vector<8x8xf32>
    %cst_12 = arith.constant 0.176776692 : f32
    %22 = vector.broadcast %cst_12 : f32 to vector<8x8xf32>
    %23 = arith.mulf %21, %22 : vector<8x8xf32>
    %cst_13 = arith.constant dense<0xFF800000> : vector<8xf32>
    %24 = vector.multi_reduction <maximumf>, %23, %cst_13 [1] : vector<8x8xf32> to vector<8xf32>
    %25 = vector.shape_cast %24 : vector<8xf32> to vector<8x1xf32>
    %26 = vector.broadcast %25 : vector<8x1xf32> to vector<8x8xf32>
    %27 = arith.subf %23, %26 : vector<8x8xf32>
    %28 = math.exp %27 : vector<8x8xf32>
    %cst_14 = arith.constant dense<0.000000e+00> : vector<8xf32>
    %29 = vector.multi_reduction <add>, %28, %cst_14 [1] : vector<8x8xf32> to vector<8xf32>
    %30 = vector.shape_cast %29 : vector<8xf32> to vector<8x1xf32>
    %31 = tpu.reciprocal %30 {approx = true} : vector<8x1xf32> -> vector<8x1xf32>
    %32 = vector.broadcast %31 : vector<8x1xf32> to vector<8x8xf32>
    %33 = arith.mulf %28, %32 : vector<8x8xf32>
    %34 = arith.truncf %33 : vector<8x8xf32> to vector<8x8xbf16>
    %cst_15 = arith.constant dense<0.000000e+00> : vector<8x32xf32>
    %35 = tpu.matmul %34, %20, %cst_15 {dimension_numbers = #tpu.dot_dimension_numbers<[1], [0], [0], [1], [0, 0, 1, 1], [], []>} : vector<8x8xbf16>, vector<8x32xbf16>, vector<8x32xf32> -> vector<8x32xf32>
    %36 = vector.extract_strided_slice %17 {offsets = [0, 32], sizes = [8, 32], strides = [1, 1]} : vector<8x384xbf16> to vector<8x32xbf16>
    %37 = vector.extract_strided_slice %17 {offsets = [0, 160], sizes = [8, 32], strides = [1, 1]} : vector<8x384xbf16> to vector<8x32xbf16>
    %38 = vector.extract_strided_slice %17 {offsets = [0, 288], sizes = [8, 32], strides = [1, 1]} : vector<8x384xbf16> to vector<8x32xbf16>
    %cst_16 = arith.constant dense<0.000000e+00> : vector<8x8xf32>
    %39 = tpu.matmul %36, %37, %cst_16 {dimension_numbers = #tpu.dot_dimension_numbers<[1], [1], [0], [0], [0, 0, 1, 0], [], []>} : vector<8x32xbf16>, vector<8x32xbf16>, vector<8x8xf32> -> vector<8x8xf32>
    %cst_17 = arith.constant 0.176776692 : f32
    %40 = vector.broadcast %cst_17 : f32 to vector<8x8xf32>
    %41 = arith.mulf %39, %40 : vector<8x8xf32>
    %cst_18 = arith.constant dense<0xFF800000> : vector<8xf32>
    %42 = vector.multi_reduction <maximumf>, %41, %cst_18 [1] : vector<8x8xf32> to vector<8xf32>
    %43 = vector.shape_cast %42 : vector<8xf32> to vector<8x1xf32>
    %44 = vector.broadcast %43 : vector<8x1xf32> to vector<8x8xf32>
    %45 = arith.subf %41, %44 : vector<8x8xf32>
    %46 = math.exp %45 : vector<8x8xf32>
    %cst_19 = arith.constant dense<0.000000e+00> : vector<8xf32>
    %47 = vector.multi_reduction <add>, %46, %cst_19 [1] : vector<8x8xf32> to vector<8xf32>
    %48 = vector.shape_cast %47 : vector<8xf32> to vector<8x1xf32>
    %49 = tpu.reciprocal %48 {approx = true} : vector<8x1xf32> -> vector<8x1xf32>
    %50 = vector.broadcast %49 : vector<8x1xf32> to vector<8x8xf32>
    %51 = arith.mulf %46, %50 : vector<8x8xf32>
    %52 = arith.truncf %51 : vector<8x8xf32> to vector<8x8xbf16>
    %cst_20 = arith.constant dense<0.000000e+00> : vector<8x32xf32>
    %53 = tpu.matmul %52, %38, %cst_20 {dimension_numbers = #tpu.dot_dimension_numbers<[1], [0], [0], [1], [0, 0, 1, 1], [], []>} : vector<8x8xbf16>, vector<8x32xbf16>, vector<8x32xf32> -> vector<8x32xf32>
    %54 = vector.extract_strided_slice %17 {offsets = [0, 64], sizes = [8, 32], strides = [1, 1]} : vector<8x384xbf16> to vector<8x32xbf16>
    %55 = vector.extract_strided_slice %17 {offsets = [0, 192], sizes = [8, 32], strides = [1, 1]} : vector<8x384xbf16> to vector<8x32xbf16>
    %56 = vector.extract_strided_slice %17 {offsets = [0, 320], sizes = [8, 32], strides = [1, 1]} : vector<8x384xbf16> to vector<8x32xbf16>
    %cst_21 = arith.constant dense<0.000000e+00> : vector<8x8xf32>
    %57 = tpu.matmul %54, %55, %cst_21 {dimension_numbers = #tpu.dot_dimension_numbers<[1], [1], [0], [0], [0, 0, 1, 0], [], []>} : vector<8x32xbf16>, vector<8x32xbf16>, vector<8x8xf32> -> vector<8x8xf32>
    %cst_22 = arith.constant 0.176776692 : f32
    %58 = vector.broadcast %cst_22 : f32 to vector<8x8xf32>
    %59 = arith.mulf %57, %58 : vector<8x8xf32>
    %cst_23 = arith.constant dense<0xFF800000> : vector<8xf32>
    %60 = vector.multi_reduction <maximumf>, %59, %cst_23 [1] : vector<8x8xf32> to vector<8xf32>
    %61 = vector.shape_cast %60 : vector<8xf32> to vector<8x1xf32>
    %62 = vector.broadcast %61 : vector<8x1xf32> to vector<8x8xf32>
    %63 = arith.subf %59, %62 : vector<8x8xf32>
    %64 = math.exp %63 : vector<8x8xf32>
    %cst_24 = arith.constant dense<0.000000e+00> : vector<8xf32>
    %65 = vector.multi_reduction <add>, %64, %cst_24 [1] : vector<8x8xf32> to vector<8xf32>
    %66 = vector.shape_cast %65 : vector<8xf32> to vector<8x1xf32>
    %67 = tpu.reciprocal %66 {approx = true} : vector<8x1xf32> -> vector<8x1xf32>
    %68 = vector.broadcast %67 : vector<8x1xf32> to vector<8x8xf32>
    %69 = arith.mulf %64, %68 : vector<8x8xf32>
    %70 = arith.truncf %69 : vector<8x8xf32> to vector<8x8xbf16>
    %cst_25 = arith.constant dense<0.000000e+00> : vector<8x32xf32>
    %71 = tpu.matmul %70, %56, %cst_25 {dimension_numbers = #tpu.dot_dimension_numbers<[1], [0], [0], [1], [0, 0, 1, 1], [], []>} : vector<8x8xbf16>, vector<8x32xbf16>, vector<8x32xf32> -> vector<8x32xf32>
    %72 = vector.extract_strided_slice %17 {offsets = [0, 96], sizes = [8, 32], strides = [1, 1]} : vector<8x384xbf16> to vector<8x32xbf16>
    %73 = vector.extract_strided_slice %17 {offsets = [0, 224], sizes = [8, 32], strides = [1, 1]} : vector<8x384xbf16> to vector<8x32xbf16>
    %74 = vector.extract_strided_slice %17 {offsets = [0, 352], sizes = [8, 32], strides = [1, 1]} : vector<8x384xbf16> to vector<8x32xbf16>
    %cst_26 = arith.constant dense<0.000000e+00> : vector<8x8xf32>
    %75 = tpu.matmul %72, %73, %cst_26 {dimension_numbers = #tpu.dot_dimension_numbers<[1], [1], [0], [0], [0, 0, 1, 0], [], []>} : vector<8x32xbf16>, vector<8x32xbf16>, vector<8x8xf32> -> vector<8x8xf32>
    %cst_27 = arith.constant 0.176776692 : f32
    %76 = vector.broadcast %cst_27 : f32 to vector<8x8xf32>
    %77 = arith.mulf %75, %76 : vector<8x8xf32>
    %cst_28 = arith.constant dense<0xFF800000> : vector<8xf32>
    %78 = vector.multi_reduction <maximumf>, %77, %cst_28 [1] : vector<8x8xf32> to vector<8xf32>
    %79 = vector.shape_cast %78 : vector<8xf32> to vector<8x1xf32>
    %80 = vector.broadcast %79 : vector<8x1xf32> to vector<8x8xf32>
    %81 = arith.subf %77, %80 : vector<8x8xf32>
    %82 = math.exp %81 : vector<8x8xf32>
    %cst_29 = arith.constant dense<0.000000e+00> : vector<8xf32>
    %83 = vector.multi_reduction <add>, %82, %cst_29 [1] : vector<8x8xf32> to vector<8xf32>
    %84 = vector.shape_cast %83 : vector<8xf32> to vector<8x1xf32>
    %85 = tpu.reciprocal %84 {approx = true} : vector<8x1xf32> -> vector<8x1xf32>
    %86 = vector.broadcast %85 : vector<8x1xf32> to vector<8x8xf32>
    %87 = arith.mulf %82, %86 : vector<8x8xf32>
    %88 = arith.truncf %87 : vector<8x8xf32> to vector<8x8xbf16>
    %cst_30 = arith.constant dense<0.000000e+00> : vector<8x32xf32>
    %89 = tpu.matmul %88, %74, %cst_30 {dimension_numbers = #tpu.dot_dimension_numbers<[1], [0], [0], [1], [0, 0, 1, 1], [], []>} : vector<8x8xbf16>, vector<8x32xbf16>, vector<8x32xf32> -> vector<8x32xf32>
    %90 = tpu.concatenate %35, %53, %71, %89 in 1 : vector<8x32xf32>, vector<8x32xf32>, vector<8x32xf32>, vector<8x32xf32> -> vector<8x128xf32>
    %91 = vector.extract_strided_slice %16 {offsets = [8, 0], sizes = [8, 384], strides = [1, 1]} : vector<16x384xbf16> to vector<8x384xbf16>
    %92 = vector.extract_strided_slice %91 {offsets = [0, 0], sizes = [8, 32], strides = [1, 1]} : vector<8x384xbf16> to vector<8x32xbf16>
    %93 = vector.extract_strided_slice %91 {offsets = [0, 128], sizes = [8, 32], strides = [1, 1]} : vector<8x384xbf16> to vector<8x32xbf16>
    %94 = vector.extract_strided_slice %91 {offsets = [0, 256], sizes = [8, 32], strides = [1, 1]} : vector<8x384xbf16> to vector<8x32xbf16>
    %cst_31 = arith.constant dense<0.000000e+00> : vector<8x8xf32>
    %95 = tpu.matmul %92, %93, %cst_31 {dimension_numbers = #tpu.dot_dimension_numbers<[1], [1], [0], [0], [0, 0, 1, 0], [], []>} : vector<8x32xbf16>, vector<8x32xbf16>, vector<8x8xf32> -> vector<8x8xf32>
    %cst_32 = arith.constant 0.176776692 : f32
    %96 = vector.broadcast %cst_32 : f32 to vector<8x8xf32>
    %97 = arith.mulf %95, %96 : vector<8x8xf32>
    %cst_33 = arith.constant dense<0xFF800000> : vector<8xf32>
    %98 = vector.multi_reduction <maximumf>, %97, %cst_33 [1] : vector<8x8xf32> to vector<8xf32>
    %99 = vector.shape_cast %98 : vector<8xf32> to vector<8x1xf32>
    %100 = vector.broadcast %99 : vector<8x1xf32> to vector<8x8xf32>
    %101 = arith.subf %97, %100 : vector<8x8xf32>
    %102 = math.exp %101 : vector<8x8xf32>
    %cst_34 = arith.constant dense<0.000000e+00> : vector<8xf32>
    %103 = vector.multi_reduction <add>, %102, %cst_34 [1] : vector<8x8xf32> to vector<8xf32>
    %104 = vector.shape_cast %103 : vector<8xf32> to vector<8x1xf32>
    %105 = tpu.reciprocal %104 {approx = true} : vector<8x1xf32> -> vector<8x1xf32>
    %106 = vector.broadcast %105 : vector<8x1xf32> to vector<8x8xf32>
    %107 = arith.mulf %102, %106 : vector<8x8xf32>
    %108 = arith.truncf %107 : vector<8x8xf32> to vector<8x8xbf16>
    %cst_35 = arith.constant dense<0.000000e+00> : vector<8x32xf32>
    %109 = tpu.matmul %108, %94, %cst_35 {dimension_numbers = #tpu.dot_dimension_numbers<[1], [0], [0], [1], [0, 0, 1, 1], [], []>} : vector<8x8xbf16>, vector<8x32xbf16>, vector<8x32xf32> -> vector<8x32xf32>
    %110 = vector.extract_strided_slice %91 {offsets = [0, 32], sizes = [8, 32], strides = [1, 1]} : vector<8x384xbf16> to vector<8x32xbf16>
    %111 = vector.extract_strided_slice %91 {offsets = [0, 160], sizes = [8, 32], strides = [1, 1]} : vector<8x384xbf16> to vector<8x32xbf16>
    %112 = vector.extract_strided_slice %91 {offsets = [0, 288], sizes = [8, 32], strides = [1, 1]} : vector<8x384xbf16> to vector<8x32xbf16>
    %cst_36 = arith.constant dense<0.000000e+00> : vector<8x8xf32>
    %113 = tpu.matmul %110, %111, %cst_36 {dimension_numbers = #tpu.dot_dimension_numbers<[1], [1], [0], [0], [0, 0, 1, 0], [], []>} : vector<8x32xbf16>, vector<8x32xbf16>, vector<8x8xf32> -> vector<8x8xf32>
    %cst_37 = arith.constant 0.176776692 : f32
    %114 = vector.broadcast %cst_37 : f32 to vector<8x8xf32>
    %115 = arith.mulf %113, %114 : vector<8x8xf32>
    %cst_38 = arith.constant dense<0xFF800000> : vector<8xf32>
    %116 = vector.multi_reduction <maximumf>, %115, %cst_38 [1] : vector<8x8xf32> to vector<8xf32>
    %117 = vector.shape_cast %116 : vector<8xf32> to vector<8x1xf32>
    %118 = vector.broadcast %117 : vector<8x1xf32> to vector<8x8xf32>
    %119 = arith.subf %115, %118 : vector<8x8xf32>
    %120 = math.exp %119 : vector<8x8xf32>
    %cst_39 = arith.constant dense<0.000000e+00> : vector<8xf32>
    %121 = vector.multi_reduction <add>, %120, %cst_39 [1] : vector<8x8xf32> to vector<8xf32>
    %122 = vector.shape_cast %121 : vector<8xf32> to vector<8x1xf32>
    %123 = tpu.reciprocal %122 {approx = true} : vector<8x1xf32> -> vector<8x1xf32>
    %124 = vector.broadcast %123 : vector<8x1xf32> to vector<8x8xf32>
    %125 = arith.mulf %120, %124 : vector<8x8xf32>
    %126 = arith.truncf %125 : vector<8x8xf32> to vector<8x8xbf16>
    %cst_40 = arith.constant dense<0.000000e+00> : vector<8x32xf32>
    %127 = tpu.matmul %126, %112, %cst_40 {dimension_numbers = #tpu.dot_dimension_numbers<[1], [0], [0], [1], [0, 0, 1, 1], [], []>} : vector<8x8xbf16>, vector<8x32xbf16>, vector<8x32xf32> -> vector<8x32xf32>
    %128 = vector.extract_strided_slice %91 {offsets = [0, 64], sizes = [8, 32], strides = [1, 1]} : vector<8x384xbf16> to vector<8x32xbf16>
    %129 = vector.extract_strided_slice %91 {offsets = [0, 192], sizes = [8, 32], strides = [1, 1]} : vector<8x384xbf16> to vector<8x32xbf16>
    %130 = vector.extract_strided_slice %91 {offsets = [0, 320], sizes = [8, 32], strides = [1, 1]} : vector<8x384xbf16> to vector<8x32xbf16>
    %cst_41 = arith.constant dense<0.000000e+00> : vector<8x8xf32>
    %131 = tpu.matmul %128, %129, %cst_41 {dimension_numbers = #tpu.dot_dimension_numbers<[1], [1], [0], [0], [0, 0, 1, 0], [], []>} : vector<8x32xbf16>, vector<8x32xbf16>, vector<8x8xf32> -> vector<8x8xf32>
    %cst_42 = arith.constant 0.176776692 : f32
    %132 = vector.broadcast %cst_42 : f32 to vector<8x8xf32>
    %133 = arith.mulf %131, %132 : vector<8x8xf32>
    %cst_43 = arith.constant dense<0xFF800000> : vector<8xf32>
    %134 = vector.multi_reduction <maximumf>, %133, %cst_43 [1] : vector<8x8xf32> to vector<8xf32>
    %135 = vector.shape_cast %134 : vector<8xf32> to vector<8x1xf32>
    %136 = vector.broadcast %135 : vector<8x1xf32> to vector<8x8xf32>
    %137 = arith.subf %133, %136 : vector<8x8xf32>
    %138 = math.exp %137 : vector<8x8xf32>
    %cst_44 = arith.constant dense<0.000000e+00> : vector<8xf32>
    %139 = vector.multi_reduction <add>, %138, %cst_44 [1] : vector<8x8xf32> to vector<8xf32>
    %140 = vector.shape_cast %139 : vector<8xf32> to vector<8x1xf32>
    %141 = tpu.reciprocal %140 {approx = true} : vector<8x1xf32> -> vector<8x1xf32>
    %142 = vector.broadcast %141 : vector<8x1xf32> to vector<8x8xf32>
    %143 = arith.mulf %138, %142 : vector<8x8xf32>
    %144 = arith.truncf %143 : vector<8x8xf32> to vector<8x8xbf16>
    %cst_45 = arith.constant dense<0.000000e+00> : vector<8x32xf32>
    %145 = tpu.matmul %144, %130, %cst_45 {dimension_numbers = #tpu.dot_dimension_numbers<[1], [0], [0], [1], [0, 0, 1, 1], [], []>} : vector<8x8xbf16>, vector<8x32xbf16>, vector<8x32xf32> -> vector<8x32xf32>
    %146 = vector.extract_strided_slice %91 {offsets = [0, 96], sizes = [8, 32], strides = [1, 1]} : vector<8x384xbf16> to vector<8x32xbf16>
    %147 = vector.extract_strided_slice %91 {offsets = [0, 224], sizes = [8, 32], strides = [1, 1]} : vector<8x384xbf16> to vector<8x32xbf16>
    %148 = vector.extract_strided_slice %91 {offsets = [0, 352], sizes = [8, 32], strides = [1, 1]} : vector<8x384xbf16> to vector<8x32xbf16>
    %cst_46 = arith.constant dense<0.000000e+00> : vector<8x8xf32>
    %149 = tpu.matmul %146, %147, %cst_46 {dimension_numbers = #tpu.dot_dimension_numbers<[1], [1], [0], [0], [0, 0, 1, 0], [], []>} : vector<8x32xbf16>, vector<8x32xbf16>, vector<8x8xf32> -> vector<8x8xf32>
    %cst_47 = arith.constant 0.176776692 : f32
    %150 = vector.broadcast %cst_47 : f32 to vector<8x8xf32>
    %151 = arith.mulf %149, %150 : vector<8x8xf32>
    %cst_48 = arith.constant dense<0xFF800000> : vector<8xf32>
    %152 = vector.multi_reduction <maximumf>, %151, %cst_48 [1] : vector<8x8xf32> to vector<8xf32>
    %153 = vector.shape_cast %152 : vector<8xf32> to vector<8x1xf32>
    %154 = vector.broadcast %153 : vector<8x1xf32> to vector<8x8xf32>
    %155 = arith.subf %151, %154 : vector<8x8xf32>
    %156 = math.exp %155 : vector<8x8xf32>
    %cst_49 = arith.constant dense<0.000000e+00> : vector<8xf32>
    %157 = vector.multi_reduction <add>, %156, %cst_49 [1] : vector<8x8xf32> to vector<8xf32>
    %158 = vector.shape_cast %157 : vector<8xf32> to vector<8x1xf32>
    %159 = tpu.reciprocal %158 {approx = true} : vector<8x1xf32> -> vector<8x1xf32>
    %160 = vector.broadcast %159 : vector<8x1xf32> to vector<8x8xf32>
    %161 = arith.mulf %156, %160 : vector<8x8xf32>
    %162 = arith.truncf %161 : vector<8x8xf32> to vector<8x8xbf16>
    %cst_50 = arith.constant dense<0.000000e+00> : vector<8x32xf32>
    %163 = tpu.matmul %162, %148, %cst_50 {dimension_numbers = #tpu.dot_dimension_numbers<[1], [0], [0], [1], [0, 0, 1, 1], [], []>} : vector<8x8xbf16>, vector<8x32xbf16>, vector<8x32xf32> -> vector<8x32xf32>
    %164 = tpu.concatenate %109, %127, %145, %163 in 1 : vector<8x32xf32>, vector<8x32xf32>, vector<8x32xf32>, vector<8x32xf32> -> vector<8x128xf32>
    %165 = tpu.concatenate %90, %164 in 0 : vector<8x128xf32>, vector<8x128xf32> -> vector<16x128xf32>
    %166 = arith.truncf %165 : vector<16x128xf32> to vector<16x128xbf16>
    %c0_51 = arith.constant 0 : index
    %c0_52 = arith.constant 0 : index
    %c0_53 = arith.constant 0 : index
    %167 = vector.load %arg4[%c0_51, %c0_52, %c0_53] : memref<2x128x128xbf16, #tpu.memory_space<vmem>>, vector<1x128x128xbf16>
    %168 = vector.shape_cast %167 : vector<1x128x128xbf16> to vector<128x128xbf16>
    %cst_54 = arith.constant dense<0.000000e+00> : vector<16x128xf32>
    %169 = tpu.matmul %166, %168, %cst_54 {dimension_numbers = #tpu.dot_dimension_numbers<[1], [0], [0], [1], [0, 0, 1, 1], [], []>} : vector<16x128xbf16>, vector<128x128xbf16>, vector<16x128xf32> -> vector<16x128xf32>
    %c0_55 = arith.constant 0 : index
    %c0_56 = arith.constant 0 : index
    %c0_57 = arith.constant 0 : index
    %170 = vector.load %arg5[%c0_55, %c0_56, %c0_57] : memref<2x1x128xf32, #tpu.memory_space<vmem>>, vector<1x1x128xf32>
    %171 = vector.shape_cast %170 : vector<1x1x128xf32> to vector<1x128xf32>
    %172 = vector.broadcast %171 : vector<1x128xf32> to vector<16x128xf32>
    %173 = arith.addf %169, %172 : vector<16x128xf32>
    %174 = arith.addf %7, %173 : vector<16x128xf32>
    %c0_58 = arith.constant 0 : index
    %c0_59 = arith.constant 0 : index
    %c0_60 = arith.constant 0 : index
    %175 = vector.load %arg6[%c0_58, %c0_59, %c0_60] : memref<2x1x128xf32, #tpu.memory_space<vmem>>, vector<1x1x128xf32>
    %176 = vector.shape_cast %175 : vector<1x1x128xf32> to vector<1x128xf32>
    %c0_61 = arith.constant 0 : index
    %c0_62 = arith.constant 0 : index
    %c0_63 = arith.constant 0 : index
    %177 = vector.load %arg7[%c0_61, %c0_62, %c0_63] : memref<2x1x128xf32, #tpu.memory_space<vmem>>, vector<1x1x128xf32>
    %178 = vector.shape_cast %177 : vector<1x1x128xf32> to vector<1x128xf32>
    %cst_64 = arith.constant dense<0.000000e+00> : vector<16xf32>
    %179 = vector.multi_reduction <add>, %174, %cst_64 [1] : vector<16x128xf32> to vector<16xf32>
    %180 = vector.shape_cast %179 : vector<16xf32> to vector<16x1xf32>
    %cst_65 = arith.constant 1.280000e+02 : f32
    %181 = vector.broadcast %cst_65 : f32 to vector<16x1xf32>
    %182 = arith.divf %180, %181 : vector<16x1xf32>
    %183 = vector.broadcast %182 : vector<16x1xf32> to vector<16x128xf32>
    %184 = arith.subf %174, %183 : vector<16x128xf32>
    %185 = arith.mulf %184, %184 : vector<16x128xf32>
    %cst_66 = arith.constant dense<0.000000e+00> : vector<16xf32>
    %186 = vector.multi_reduction <add>, %185, %cst_66 [1] : vector<16x128xf32> to vector<16xf32>
    %187 = vector.shape_cast %186 : vector<16xf32> to vector<16x1xf32>
    %cst_67 = arith.constant 1.280000e+02 : f32
    %188 = vector.broadcast %cst_67 : f32 to vector<16x1xf32>
    %189 = arith.divf %187, %188 : vector<16x1xf32>
    %190 = vector.broadcast %182 : vector<16x1xf32> to vector<16x128xf32>
    %191 = arith.subf %174, %190 : vector<16x128xf32>
    %cst_68 = arith.constant 9.99999974E-6 : f32
    %192 = vector.broadcast %cst_68 : f32 to vector<16x1xf32>
    %193 = arith.addf %189, %192 : vector<16x1xf32>
    %194 = math.rsqrt %193 : vector<16x1xf32>
    %195 = vector.broadcast %194 : vector<16x1xf32> to vector<16x128xf32>
    %196 = arith.mulf %191, %195 : vector<16x128xf32>
    %197 = vector.broadcast %176 : vector<1x128xf32> to vector<16x128xf32>
    %198 = arith.mulf %196, %197 : vector<16x128xf32>
    %199 = vector.broadcast %178 : vector<1x128xf32> to vector<16x128xf32>
    %200 = arith.addf %198, %199 : vector<16x128xf32>
    %201 = arith.truncf %200 : vector<16x128xf32> to vector<16x128xbf16>
    %c0_69 = arith.constant 0 : index
    %c0_70 = arith.constant 0 : index
    %c0_71 = arith.constant 0 : index
    %202 = vector.load %arg8[%c0_69, %c0_70, %c0_71] : memref<2x128x256xbf16, #tpu.memory_space<vmem>>, vector<1x128x256xbf16>
    %203 = vector.shape_cast %202 : vector<1x128x256xbf16> to vector<128x256xbf16>
    %cst_72 = arith.constant dense<0.000000e+00> : vector<16x256xf32>
    %204 = tpu.matmul %201, %203, %cst_72 {dimension_numbers = #tpu.dot_dimension_numbers<[1], [0], [0], [1], [0, 0, 1, 1], [], []>} : vector<16x128xbf16>, vector<128x256xbf16>, vector<16x256xf32> -> vector<16x256xf32>
    %c0_73 = arith.constant 0 : index
    %c0_74 = arith.constant 0 : index
    %c0_75 = arith.constant 0 : index
    %205 = vector.load %arg9[%c0_73, %c0_74, %c0_75] : memref<2x1x256xf32, #tpu.memory_space<vmem>>, vector<1x1x256xf32>
    %206 = vector.shape_cast %205 : vector<1x1x256xf32> to vector<1x256xf32>
    %207 = vector.broadcast %206 : vector<1x256xf32> to vector<16x256xf32>
    %208 = arith.addf %204, %207 : vector<16x256xf32>
    %cst_76 = arith.constant 0.000000e+00 : f32
    %209 = vector.broadcast %cst_76 : f32 to vector<16x256xf32>
    %210 = arith.maximumf %208, %209 : vector<16x256xf32>
    %211 = arith.truncf %210 : vector<16x256xf32> to vector<16x256xbf16>
    %c0_77 = arith.constant 0 : index
    %c0_78 = arith.constant 0 : index
    %c0_79 = arith.constant 0 : index
    %212 = vector.load %arg10[%c0_77, %c0_78, %c0_79] : memref<2x256x128xbf16, #tpu.memory_space<vmem>>, vector<1x256x128xbf16>
    %213 = vector.shape_cast %212 : vector<1x256x128xbf16> to vector<256x128xbf16>
    %cst_80 = arith.constant dense<0.000000e+00> : vector<16x128xf32>
    %214 = tpu.matmul %211, %213, %cst_80 {dimension_numbers = #tpu.dot_dimension_numbers<[1], [0], [0], [1], [0, 0, 1, 1], [], []>} : vector<16x256xbf16>, vector<256x128xbf16>, vector<16x128xf32> -> vector<16x128xf32>
    %c0_81 = arith.constant 0 : index
    %c0_82 = arith.constant 0 : index
    %c0_83 = arith.constant 0 : index
    %215 = vector.load %arg11[%c0_81, %c0_82, %c0_83] : memref<2x1x128xf32, #tpu.memory_space<vmem>>, vector<1x1x128xf32>
    %216 = vector.shape_cast %215 : vector<1x1x128xf32> to vector<1x128xf32>
    %217 = vector.broadcast %216 : vector<1x128xf32> to vector<16x128xf32>
    %218 = arith.addf %214, %217 : vector<16x128xf32>
    %219 = arith.addf %200, %218 : vector<16x128xf32>
    %c0_84 = arith.constant 0 : index
    %c0_85 = arith.constant 0 : index
    %c0_86 = arith.constant 0 : index
    %220 = vector.load %arg12[%c0_84, %c0_85, %c0_86] : memref<2x1x128xf32, #tpu.memory_space<vmem>>, vector<1x1x128xf32>
    %221 = vector.shape_cast %220 : vector<1x1x128xf32> to vector<1x128xf32>
    %c0_87 = arith.constant 0 : index
    %c0_88 = arith.constant 0 : index
    %c0_89 = arith.constant 0 : index
    %222 = vector.load %arg13[%c0_87, %c0_88, %c0_89] : memref<2x1x128xf32, #tpu.memory_space<vmem>>, vector<1x1x128xf32>
    %223 = vector.shape_cast %222 : vector<1x1x128xf32> to vector<1x128xf32>
    %cst_90 = arith.constant dense<0.000000e+00> : vector<16xf32>
    %224 = vector.multi_reduction <add>, %219, %cst_90 [1] : vector<16x128xf32> to vector<16xf32>
    %225 = vector.shape_cast %224 : vector<16xf32> to vector<16x1xf32>
    %cst_91 = arith.constant 1.280000e+02 : f32
    %226 = vector.broadcast %cst_91 : f32 to vector<16x1xf32>
    %227 = arith.divf %225, %226 : vector<16x1xf32>
    %228 = vector.broadcast %227 : vector<16x1xf32> to vector<16x128xf32>
    %229 = arith.subf %219, %228 : vector<16x128xf32>
    %230 = arith.mulf %229, %229 : vector<16x128xf32>
    %cst_92 = arith.constant dense<0.000000e+00> : vector<16xf32>
    %231 = vector.multi_reduction <add>, %230, %cst_92 [1] : vector<16x128xf32> to vector<16xf32>
    %232 = vector.shape_cast %231 : vector<16xf32> to vector<16x1xf32>
    %cst_93 = arith.constant 1.280000e+02 : f32
    %233 = vector.broadcast %cst_93 : f32 to vector<16x1xf32>
    %234 = arith.divf %232, %233 : vector<16x1xf32>
    %235 = vector.broadcast %227 : vector<16x1xf32> to vector<16x128xf32>
    %236 = arith.subf %219, %235 : vector<16x128xf32>
    %cst_94 = arith.constant 9.99999974E-6 : f32
    %237 = vector.broadcast %cst_94 : f32 to vector<16x1xf32>
    %238 = arith.addf %234, %237 : vector<16x1xf32>
    %239 = math.rsqrt %238 : vector<16x1xf32>
    %240 = vector.broadcast %239 : vector<16x1xf32> to vector<16x128xf32>
    %241 = arith.mulf %236, %240 : vector<16x128xf32>
    %242 = vector.broadcast %221 : vector<1x128xf32> to vector<16x128xf32>
    %243 = arith.mulf %241, %242 : vector<16x128xf32>
    %244 = vector.broadcast %223 : vector<1x128xf32> to vector<16x128xf32>
    %245 = arith.addf %243, %244 : vector<16x128xf32>
    %246 = arith.truncf %245 : vector<16x128xf32> to vector<16x128xbf16>
    %c1 = arith.constant 1 : index
    %c0_95 = arith.constant 0 : index
    %c0_96 = arith.constant 0 : index
    %247 = vector.load %arg2[%c1, %c0_95, %c0_96] : memref<2x128x384xbf16, #tpu.memory_space<vmem>>, vector<1x128x384xbf16>
    %248 = vector.shape_cast %247 : vector<1x128x384xbf16> to vector<128x384xbf16>
    %cst_97 = arith.constant dense<0.000000e+00> : vector<16x384xf32>
    %249 = tpu.matmul %246, %248, %cst_97 {dimension_numbers = #tpu.dot_dimension_numbers<[1], [0], [0], [1], [0, 0, 1, 1], [], []>} : vector<16x128xbf16>, vector<128x384xbf16>, vector<16x384xf32> -> vector<16x384xf32>
    %c1_98 = arith.constant 1 : index
    %c0_99 = arith.constant 0 : index
    %c0_100 = arith.constant 0 : index
    %250 = vector.load %arg3[%c1_98, %c0_99, %c0_100] : memref<2x1x384xf32, #tpu.memory_space<vmem>>, vector<1x1x384xf32>
    %251 = vector.shape_cast %250 : vector<1x1x384xf32> to vector<1x384xf32>
    %252 = vector.broadcast %251 : vector<1x384xf32> to vector<16x384xf32>
    %253 = arith.addf %249, %252 : vector<16x384xf32>
    %254 = arith.truncf %253 : vector<16x384xf32> to vector<16x384xbf16>
    %255 = vector.extract_strided_slice %254 {offsets = [0, 0], sizes = [8, 384], strides = [1, 1]} : vector<16x384xbf16> to vector<8x384xbf16>
    %256 = vector.extract_strided_slice %255 {offsets = [0, 0], sizes = [8, 32], strides = [1, 1]} : vector<8x384xbf16> to vector<8x32xbf16>
    %257 = vector.extract_strided_slice %255 {offsets = [0, 128], sizes = [8, 32], strides = [1, 1]} : vector<8x384xbf16> to vector<8x32xbf16>
    %258 = vector.extract_strided_slice %255 {offsets = [0, 256], sizes = [8, 32], strides = [1, 1]} : vector<8x384xbf16> to vector<8x32xbf16>
    %cst_101 = arith.constant dense<0.000000e+00> : vector<8x8xf32>
    %259 = tpu.matmul %256, %257, %cst_101 {dimension_numbers = #tpu.dot_dimension_numbers<[1], [1], [0], [0], [0, 0, 1, 0], [], []>} : vector<8x32xbf16>, vector<8x32xbf16>, vector<8x8xf32> -> vector<8x8xf32>
    %cst_102 = arith.constant 0.176776692 : f32
    %260 = vector.broadcast %cst_102 : f32 to vector<8x8xf32>
    %261 = arith.mulf %259, %260 : vector<8x8xf32>
    %cst_103 = arith.constant dense<0xFF800000> : vector<8xf32>
    %262 = vector.multi_reduction <maximumf>, %261, %cst_103 [1] : vector<8x8xf32> to vector<8xf32>
    %263 = vector.shape_cast %262 : vector<8xf32> to vector<8x1xf32>
    %264 = vector.broadcast %263 : vector<8x1xf32> to vector<8x8xf32>
    %265 = arith.subf %261, %264 : vector<8x8xf32>
    %266 = math.exp %265 : vector<8x8xf32>
    %cst_104 = arith.constant dense<0.000000e+00> : vector<8xf32>
    %267 = vector.multi_reduction <add>, %266, %cst_104 [1] : vector<8x8xf32> to vector<8xf32>
    %268 = vector.shape_cast %267 : vector<8xf32> to vector<8x1xf32>
    %269 = tpu.reciprocal %268 {approx = true} : vector<8x1xf32> -> vector<8x1xf32>
    %270 = vector.broadcast %269 : vector<8x1xf32> to vector<8x8xf32>
    %271 = arith.mulf %266, %270 : vector<8x8xf32>
    %272 = arith.truncf %271 : vector<8x8xf32> to vector<8x8xbf16>
    %cst_105 = arith.constant dense<0.000000e+00> : vector<8x32xf32>
    %273 = tpu.matmul %272, %258, %cst_105 {dimension_numbers = #tpu.dot_dimension_numbers<[1], [0], [0], [1], [0, 0, 1, 1], [], []>} : vector<8x8xbf16>, vector<8x32xbf16>, vector<8x32xf32> -> vector<8x32xf32>
    %274 = vector.extract_strided_slice %255 {offsets = [0, 32], sizes = [8, 32], strides = [1, 1]} : vector<8x384xbf16> to vector<8x32xbf16>
    %275 = vector.extract_strided_slice %255 {offsets = [0, 160], sizes = [8, 32], strides = [1, 1]} : vector<8x384xbf16> to vector<8x32xbf16>
    %276 = vector.extract_strided_slice %255 {offsets = [0, 288], sizes = [8, 32], strides = [1, 1]} : vector<8x384xbf16> to vector<8x32xbf16>
    %cst_106 = arith.constant dense<0.000000e+00> : vector<8x8xf32>
    %277 = tpu.matmul %274, %275, %cst_106 {dimension_numbers = #tpu.dot_dimension_numbers<[1], [1], [0], [0], [0, 0, 1, 0], [], []>} : vector<8x32xbf16>, vector<8x32xbf16>, vector<8x8xf32> -> vector<8x8xf32>
    %cst_107 = arith.constant 0.176776692 : f32
    %278 = vector.broadcast %cst_107 : f32 to vector<8x8xf32>
    %279 = arith.mulf %277, %278 : vector<8x8xf32>
    %cst_108 = arith.constant dense<0xFF800000> : vector<8xf32>
    %280 = vector.multi_reduction <maximumf>, %279, %cst_108 [1] : vector<8x8xf32> to vector<8xf32>
    %281 = vector.shape_cast %280 : vector<8xf32> to vector<8x1xf32>
    %282 = vector.broadcast %281 : vector<8x1xf32> to vector<8x8xf32>
    %283 = arith.subf %279, %282 : vector<8x8xf32>
    %284 = math.exp %283 : vector<8x8xf32>
    %cst_109 = arith.constant dense<0.000000e+00> : vector<8xf32>
    %285 = vector.multi_reduction <add>, %284, %cst_109 [1] : vector<8x8xf32> to vector<8xf32>
    %286 = vector.shape_cast %285 : vector<8xf32> to vector<8x1xf32>
    %287 = tpu.reciprocal %286 {approx = true} : vector<8x1xf32> -> vector<8x1xf32>
    %288 = vector.broadcast %287 : vector<8x1xf32> to vector<8x8xf32>
    %289 = arith.mulf %284, %288 : vector<8x8xf32>
    %290 = arith.truncf %289 : vector<8x8xf32> to vector<8x8xbf16>
    %cst_110 = arith.constant dense<0.000000e+00> : vector<8x32xf32>
    %291 = tpu.matmul %290, %276, %cst_110 {dimension_numbers = #tpu.dot_dimension_numbers<[1], [0], [0], [1], [0, 0, 1, 1], [], []>} : vector<8x8xbf16>, vector<8x32xbf16>, vector<8x32xf32> -> vector<8x32xf32>
    %292 = vector.extract_strided_slice %255 {offsets = [0, 64], sizes = [8, 32], strides = [1, 1]} : vector<8x384xbf16> to vector<8x32xbf16>
    %293 = vector.extract_strided_slice %255 {offsets = [0, 192], sizes = [8, 32], strides = [1, 1]} : vector<8x384xbf16> to vector<8x32xbf16>
    %294 = vector.extract_strided_slice %255 {offsets = [0, 320], sizes = [8, 32], strides = [1, 1]} : vector<8x384xbf16> to vector<8x32xbf16>
    %cst_111 = arith.constant dense<0.000000e+00> : vector<8x8xf32>
    %295 = tpu.matmul %292, %293, %cst_111 {dimension_numbers = #tpu.dot_dimension_numbers<[1], [1], [0], [0], [0, 0, 1, 0], [], []>} : vector<8x32xbf16>, vector<8x32xbf16>, vector<8x8xf32> -> vector<8x8xf32>
    %cst_112 = arith.constant 0.176776692 : f32
    %296 = vector.broadcast %cst_112 : f32 to vector<8x8xf32>
    %297 = arith.mulf %295, %296 : vector<8x8xf32>
    %cst_113 = arith.constant dense<0xFF800000> : vector<8xf32>
    %298 = vector.multi_reduction <maximumf>, %297, %cst_113 [1] : vector<8x8xf32> to vector<8xf32>
    %299 = vector.shape_cast %298 : vector<8xf32> to vector<8x1xf32>
    %300 = vector.broadcast %299 : vector<8x1xf32> to vector<8x8xf32>
    %301 = arith.subf %297, %300 : vector<8x8xf32>
    %302 = math.exp %301 : vector<8x8xf32>
    %cst_114 = arith.constant dense<0.000000e+00> : vector<8xf32>
    %303 = vector.multi_reduction <add>, %302, %cst_114 [1] : vector<8x8xf32> to vector<8xf32>
    %304 = vector.shape_cast %303 : vector<8xf32> to vector<8x1xf32>
    %305 = tpu.reciprocal %304 {approx = true} : vector<8x1xf32> -> vector<8x1xf32>
    %306 = vector.broadcast %305 : vector<8x1xf32> to vector<8x8xf32>
    %307 = arith.mulf %302, %306 : vector<8x8xf32>
    %308 = arith.truncf %307 : vector<8x8xf32> to vector<8x8xbf16>
    %cst_115 = arith.constant dense<0.000000e+00> : vector<8x32xf32>
    %309 = tpu.matmul %308, %294, %cst_115 {dimension_numbers = #tpu.dot_dimension_numbers<[1], [0], [0], [1], [0, 0, 1, 1], [], []>} : vector<8x8xbf16>, vector<8x32xbf16>, vector<8x32xf32> -> vector<8x32xf32>
    %310 = vector.extract_strided_slice %255 {offsets = [0, 96], sizes = [8, 32], strides = [1, 1]} : vector<8x384xbf16> to vector<8x32xbf16>
    %311 = vector.extract_strided_slice %255 {offsets = [0, 224], sizes = [8, 32], strides = [1, 1]} : vector<8x384xbf16> to vector<8x32xbf16>
    %312 = vector.extract_strided_slice %255 {offsets = [0, 352], sizes = [8, 32], strides = [1, 1]} : vector<8x384xbf16> to vector<8x32xbf16>
    %cst_116 = arith.constant dense<0.000000e+00> : vector<8x8xf32>
    %313 = tpu.matmul %310, %311, %cst_116 {dimension_numbers = #tpu.dot_dimension_numbers<[1], [1], [0], [0], [0, 0, 1, 0], [], []>} : vector<8x32xbf16>, vector<8x32xbf16>, vector<8x8xf32> -> vector<8x8xf32>
    %cst_117 = arith.constant 0.176776692 : f32
    %314 = vector.broadcast %cst_117 : f32 to vector<8x8xf32>
    %315 = arith.mulf %313, %314 : vector<8x8xf32>
    %cst_118 = arith.constant dense<0xFF800000> : vector<8xf32>
    %316 = vector.multi_reduction <maximumf>, %315, %cst_118 [1] : vector<8x8xf32> to vector<8xf32>
    %317 = vector.shape_cast %316 : vector<8xf32> to vector<8x1xf32>
    %318 = vector.broadcast %317 : vector<8x1xf32> to vector<8x8xf32>
    %319 = arith.subf %315, %318 : vector<8x8xf32>
    %320 = math.exp %319 : vector<8x8xf32>
    %cst_119 = arith.constant dense<0.000000e+00> : vector<8xf32>
    %321 = vector.multi_reduction <add>, %320, %cst_119 [1] : vector<8x8xf32> to vector<8xf32>
    %322 = vector.shape_cast %321 : vector<8xf32> to vector<8x1xf32>
    %323 = tpu.reciprocal %322 {approx = true} : vector<8x1xf32> -> vector<8x1xf32>
    %324 = vector.broadcast %323 : vector<8x1xf32> to vector<8x8xf32>
    %325 = arith.mulf %320, %324 : vector<8x8xf32>
    %326 = arith.truncf %325 : vector<8x8xf32> to vector<8x8xbf16>
    %cst_120 = arith.constant dense<0.000000e+00> : vector<8x32xf32>
    %327 = tpu.matmul %326, %312, %cst_120 {dimension_numbers = #tpu.dot_dimension_numbers<[1], [0], [0], [1], [0, 0, 1, 1], [], []>} : vector<8x8xbf16>, vector<8x32xbf16>, vector<8x32xf32> -> vector<8x32xf32>
    %328 = tpu.concatenate %273, %291, %309, %327 in 1 : vector<8x32xf32>, vector<8x32xf32>, vector<8x32xf32>, vector<8x32xf32> -> vector<8x128xf32>
    %329 = vector.extract_strided_slice %254 {offsets = [8, 0], sizes = [8, 384], strides = [1, 1]} : vector<16x384xbf16> to vector<8x384xbf16>
    %330 = vector.extract_strided_slice %329 {offsets = [0, 0], sizes = [8, 32], strides = [1, 1]} : vector<8x384xbf16> to vector<8x32xbf16>
    %331 = vector.extract_strided_slice %329 {offsets = [0, 128], sizes = [8, 32], strides = [1, 1]} : vector<8x384xbf16> to vector<8x32xbf16>
    %332 = vector.extract_strided_slice %329 {offsets = [0, 256], sizes = [8, 32], strides = [1, 1]} : vector<8x384xbf16> to vector<8x32xbf16>
    %cst_121 = arith.constant dense<0.000000e+00> : vector<8x8xf32>
    %333 = tpu.matmul %330, %331, %cst_121 {dimension_numbers = #tpu.dot_dimension_numbers<[1], [1], [0], [0], [0, 0, 1, 0], [], []>} : vector<8x32xbf16>, vector<8x32xbf16>, vector<8x8xf32> -> vector<8x8xf32>
    %cst_122 = arith.constant 0.176776692 : f32
    %334 = vector.broadcast %cst_122 : f32 to vector<8x8xf32>
    %335 = arith.mulf %333, %334 : vector<8x8xf32>
    %cst_123 = arith.constant dense<0xFF800000> : vector<8xf32>
    %336 = vector.multi_reduction <maximumf>, %335, %cst_123 [1] : vector<8x8xf32> to vector<8xf32>
    %337 = vector.shape_cast %336 : vector<8xf32> to vector<8x1xf32>
    %338 = vector.broadcast %337 : vector<8x1xf32> to vector<8x8xf32>
    %339 = arith.subf %335, %338 : vector<8x8xf32>
    %340 = math.exp %339 : vector<8x8xf32>
    %cst_124 = arith.constant dense<0.000000e+00> : vector<8xf32>
    %341 = vector.multi_reduction <add>, %340, %cst_124 [1] : vector<8x8xf32> to vector<8xf32>
    %342 = vector.shape_cast %341 : vector<8xf32> to vector<8x1xf32>
    %343 = tpu.reciprocal %342 {approx = true} : vector<8x1xf32> -> vector<8x1xf32>
    %344 = vector.broadcast %343 : vector<8x1xf32> to vector<8x8xf32>
    %345 = arith.mulf %340, %344 : vector<8x8xf32>
    %346 = arith.truncf %345 : vector<8x8xf32> to vector<8x8xbf16>
    %cst_125 = arith.constant dense<0.000000e+00> : vector<8x32xf32>
    %347 = tpu.matmul %346, %332, %cst_125 {dimension_numbers = #tpu.dot_dimension_numbers<[1], [0], [0], [1], [0, 0, 1, 1], [], []>} : vector<8x8xbf16>, vector<8x32xbf16>, vector<8x32xf32> -> vector<8x32xf32>
    %348 = vector.extract_strided_slice %329 {offsets = [0, 32], sizes = [8, 32], strides = [1, 1]} : vector<8x384xbf16> to vector<8x32xbf16>
    %349 = vector.extract_strided_slice %329 {offsets = [0, 160], sizes = [8, 32], strides = [1, 1]} : vector<8x384xbf16> to vector<8x32xbf16>
    %350 = vector.extract_strided_slice %329 {offsets = [0, 288], sizes = [8, 32], strides = [1, 1]} : vector<8x384xbf16> to vector<8x32xbf16>
    %cst_126 = arith.constant dense<0.000000e+00> : vector<8x8xf32>
    %351 = tpu.matmul %348, %349, %cst_126 {dimension_numbers = #tpu.dot_dimension_numbers<[1], [1], [0], [0], [0, 0, 1, 0], [], []>} : vector<8x32xbf16>, vector<8x32xbf16>, vector<8x8xf32> -> vector<8x8xf32>
    %cst_127 = arith.constant 0.176776692 : f32
    %352 = vector.broadcast %cst_127 : f32 to vector<8x8xf32>
    %353 = arith.mulf %351, %352 : vector<8x8xf32>
    %cst_128 = arith.constant dense<0xFF800000> : vector<8xf32>
    %354 = vector.multi_reduction <maximumf>, %353, %cst_128 [1] : vector<8x8xf32> to vector<8xf32>
    %355 = vector.shape_cast %354 : vector<8xf32> to vector<8x1xf32>
    %356 = vector.broadcast %355 : vector<8x1xf32> to vector<8x8xf32>
    %357 = arith.subf %353, %356 : vector<8x8xf32>
    %358 = math.exp %357 : vector<8x8xf32>
    %cst_129 = arith.constant dense<0.000000e+00> : vector<8xf32>
    %359 = vector.multi_reduction <add>, %358, %cst_129 [1] : vector<8x8xf32> to vector<8xf32>
    %360 = vector.shape_cast %359 : vector<8xf32> to vector<8x1xf32>
    %361 = tpu.reciprocal %360 {approx = true} : vector<8x1xf32> -> vector<8x1xf32>
    %362 = vector.broadcast %361 : vector<8x1xf32> to vector<8x8xf32>
    %363 = arith.mulf %358, %362 : vector<8x8xf32>
    %364 = arith.truncf %363 : vector<8x8xf32> to vector<8x8xbf16>
    %cst_130 = arith.constant dense<0.000000e+00> : vector<8x32xf32>
    %365 = tpu.matmul %364, %350, %cst_130 {dimension_numbers = #tpu.dot_dimension_numbers<[1], [0], [0], [1], [0, 0, 1, 1], [], []>} : vector<8x8xbf16>, vector<8x32xbf16>, vector<8x32xf32> -> vector<8x32xf32>
    %366 = vector.extract_strided_slice %329 {offsets = [0, 64], sizes = [8, 32], strides = [1, 1]} : vector<8x384xbf16> to vector<8x32xbf16>
    %367 = vector.extract_strided_slice %329 {offsets = [0, 192], sizes = [8, 32], strides = [1, 1]} : vector<8x384xbf16> to vector<8x32xbf16>
    %368 = vector.extract_strided_slice %329 {offsets = [0, 320], sizes = [8, 32], strides = [1, 1]} : vector<8x384xbf16> to vector<8x32xbf16>
    %cst_131 = arith.constant dense<0.000000e+00> : vector<8x8xf32>
    %369 = tpu.matmul %366, %367, %cst_131 {dimension_numbers = #tpu.dot_dimension_numbers<[1], [1], [0], [0], [0, 0, 1, 0], [], []>} : vector<8x32xbf16>, vector<8x32xbf16>, vector<8x8xf32> -> vector<8x8xf32>
    %cst_132 = arith.constant 0.176776692 : f32
    %370 = vector.broadcast %cst_132 : f32 to vector<8x8xf32>
    %371 = arith.mulf %369, %370 : vector<8x8xf32>
    %cst_133 = arith.constant dense<0xFF800000> : vector<8xf32>
    %372 = vector.multi_reduction <maximumf>, %371, %cst_133 [1] : vector<8x8xf32> to vector<8xf32>
    %373 = vector.shape_cast %372 : vector<8xf32> to vector<8x1xf32>
    %374 = vector.broadcast %373 : vector<8x1xf32> to vector<8x8xf32>
    %375 = arith.subf %371, %374 : vector<8x8xf32>
    %376 = math.exp %375 : vector<8x8xf32>
    %cst_134 = arith.constant dense<0.000000e+00> : vector<8xf32>
    %377 = vector.multi_reduction <add>, %376, %cst_134 [1] : vector<8x8xf32> to vector<8xf32>
    %378 = vector.shape_cast %377 : vector<8xf32> to vector<8x1xf32>
    %379 = tpu.reciprocal %378 {approx = true} : vector<8x1xf32> -> vector<8x1xf32>
    %380 = vector.broadcast %379 : vector<8x1xf32> to vector<8x8xf32>
    %381 = arith.mulf %376, %380 : vector<8x8xf32>
    %382 = arith.truncf %381 : vector<8x8xf32> to vector<8x8xbf16>
    %cst_135 = arith.constant dense<0.000000e+00> : vector<8x32xf32>
    %383 = tpu.matmul %382, %368, %cst_135 {dimension_numbers = #tpu.dot_dimension_numbers<[1], [0], [0], [1], [0, 0, 1, 1], [], []>} : vector<8x8xbf16>, vector<8x32xbf16>, vector<8x32xf32> -> vector<8x32xf32>
    %384 = vector.extract_strided_slice %329 {offsets = [0, 96], sizes = [8, 32], strides = [1, 1]} : vector<8x384xbf16> to vector<8x32xbf16>
    %385 = vector.extract_strided_slice %329 {offsets = [0, 224], sizes = [8, 32], strides = [1, 1]} : vector<8x384xbf16> to vector<8x32xbf16>
    %386 = vector.extract_strided_slice %329 {offsets = [0, 352], sizes = [8, 32], strides = [1, 1]} : vector<8x384xbf16> to vector<8x32xbf16>
    %cst_136 = arith.constant dense<0.000000e+00> : vector<8x8xf32>
    %387 = tpu.matmul %384, %385, %cst_136 {dimension_numbers = #tpu.dot_dimension_numbers<[1], [1], [0], [0], [0, 0, 1, 0], [], []>} : vector<8x32xbf16>, vector<8x32xbf16>, vector<8x8xf32> -> vector<8x8xf32>
    %cst_137 = arith.constant 0.176776692 : f32
    %388 = vector.broadcast %cst_137 : f32 to vector<8x8xf32>
    %389 = arith.mulf %387, %388 : vector<8x8xf32>
    %cst_138 = arith.constant dense<0xFF800000> : vector<8xf32>
    %390 = vector.multi_reduction <maximumf>, %389, %cst_138 [1] : vector<8x8xf32> to vector<8xf32>
    %391 = vector.shape_cast %390 : vector<8xf32> to vector<8x1xf32>
    %392 = vector.broadcast %391 : vector<8x1xf32> to vector<8x8xf32>
    %393 = arith.subf %389, %392 : vector<8x8xf32>
    %394 = math.exp %393 : vector<8x8xf32>
    %cst_139 = arith.constant dense<0.000000e+00> : vector<8xf32>
    %395 = vector.multi_reduction <add>, %394, %cst_139 [1] : vector<8x8xf32> to vector<8xf32>
    %396 = vector.shape_cast %395 : vector<8xf32> to vector<8x1xf32>
    %397 = tpu.reciprocal %396 {approx = true} : vector<8x1xf32> -> vector<8x1xf32>
    %398 = vector.broadcast %397 : vector<8x1xf32> to vector<8x8xf32>
    %399 = arith.mulf %394, %398 : vector<8x8xf32>
    %400 = arith.truncf %399 : vector<8x8xf32> to vector<8x8xbf16>
    %cst_140 = arith.constant dense<0.000000e+00> : vector<8x32xf32>
    %401 = tpu.matmul %400, %386, %cst_140 {dimension_numbers = #tpu.dot_dimension_numbers<[1], [0], [0], [1], [0, 0, 1, 1], [], []>} : vector<8x8xbf16>, vector<8x32xbf16>, vector<8x32xf32> -> vector<8x32xf32>
    %402 = tpu.concatenate %347, %365, %383, %401 in 1 : vector<8x32xf32>, vector<8x32xf32>, vector<8x32xf32>, vector<8x32xf32> -> vector<8x128xf32>
    %403 = tpu.concatenate %328, %402 in 0 : vector<8x128xf32>, vector<8x128xf32> -> vector<16x128xf32>
    %404 = arith.truncf %403 : vector<16x128xf32> to vector<16x128xbf16>
    %c1_141 = arith.constant 1 : index
    %c0_142 = arith.constant 0 : index
    %c0_143 = arith.constant 0 : index
    %405 = vector.load %arg4[%c1_141, %c0_142, %c0_143] : memref<2x128x128xbf16, #tpu.memory_space<vmem>>, vector<1x128x128xbf16>
    %406 = vector.shape_cast %405 : vector<1x128x128xbf16> to vector<128x128xbf16>
    %cst_144 = arith.constant dense<0.000000e+00> : vector<16x128xf32>
    %407 = tpu.matmul %404, %406, %cst_144 {dimension_numbers = #tpu.dot_dimension_numbers<[1], [0], [0], [1], [0, 0, 1, 1], [], []>} : vector<16x128xbf16>, vector<128x128xbf16>, vector<16x128xf32> -> vector<16x128xf32>
    %c1_145 = arith.constant 1 : index
    %c0_146 = arith.constant 0 : index
    %c0_147 = arith.constant 0 : index
    %408 = vector.load %arg5[%c1_145, %c0_146, %c0_147] : memref<2x1x128xf32, #tpu.memory_space<vmem>>, vector<1x1x128xf32>
    %409 = vector.shape_cast %408 : vector<1x1x128xf32> to vector<1x128xf32>
    %410 = vector.broadcast %409 : vector<1x128xf32> to vector<16x128xf32>
    %411 = arith.addf %407, %410 : vector<16x128xf32>
    %412 = arith.addf %245, %411 : vector<16x128xf32>
    %c1_148 = arith.constant 1 : index
    %c0_149 = arith.constant 0 : index
    %c0_150 = arith.constant 0 : index
    %413 = vector.load %arg6[%c1_148, %c0_149, %c0_150] : memref<2x1x128xf32, #tpu.memory_space<vmem>>, vector<1x1x128xf32>
    %414 = vector.shape_cast %413 : vector<1x1x128xf32> to vector<1x128xf32>
    %c1_151 = arith.constant 1 : index
    %c0_152 = arith.constant 0 : index
    %c0_153 = arith.constant 0 : index
    %415 = vector.load %arg7[%c1_151, %c0_152, %c0_153] : memref<2x1x128xf32, #tpu.memory_space<vmem>>, vector<1x1x128xf32>
    %416 = vector.shape_cast %415 : vector<1x1x128xf32> to vector<1x128xf32>
    %cst_154 = arith.constant dense<0.000000e+00> : vector<16xf32>
    %417 = vector.multi_reduction <add>, %412, %cst_154 [1] : vector<16x128xf32> to vector<16xf32>
    %418 = vector.shape_cast %417 : vector<16xf32> to vector<16x1xf32>
    %cst_155 = arith.constant 1.280000e+02 : f32
    %419 = vector.broadcast %cst_155 : f32 to vector<16x1xf32>
    %420 = arith.divf %418, %419 : vector<16x1xf32>
    %421 = vector.broadcast %420 : vector<16x1xf32> to vector<16x128xf32>
    %422 = arith.subf %412, %421 : vector<16x128xf32>
    %423 = arith.mulf %422, %422 : vector<16x128xf32>
    %cst_156 = arith.constant dense<0.000000e+00> : vector<16xf32>
    %424 = vector.multi_reduction <add>, %423, %cst_156 [1] : vector<16x128xf32> to vector<16xf32>
    %425 = vector.shape_cast %424 : vector<16xf32> to vector<16x1xf32>
    %cst_157 = arith.constant 1.280000e+02 : f32
    %426 = vector.broadcast %cst_157 : f32 to vector<16x1xf32>
    %427 = arith.divf %425, %426 : vector<16x1xf32>
    %428 = vector.broadcast %420 : vector<16x1xf32> to vector<16x128xf32>
    %429 = arith.subf %412, %428 : vector<16x128xf32>
    %cst_158 = arith.constant 9.99999974E-6 : f32
    %430 = vector.broadcast %cst_158 : f32 to vector<16x1xf32>
    %431 = arith.addf %427, %430 : vector<16x1xf32>
    %432 = math.rsqrt %431 : vector<16x1xf32>
    %433 = vector.broadcast %432 : vector<16x1xf32> to vector<16x128xf32>
    %434 = arith.mulf %429, %433 : vector<16x128xf32>
    %435 = vector.broadcast %414 : vector<1x128xf32> to vector<16x128xf32>
    %436 = arith.mulf %434, %435 : vector<16x128xf32>
    %437 = vector.broadcast %416 : vector<1x128xf32> to vector<16x128xf32>
    %438 = arith.addf %436, %437 : vector<16x128xf32>
    %439 = arith.truncf %438 : vector<16x128xf32> to vector<16x128xbf16>
    %c1_159 = arith.constant 1 : index
    %c0_160 = arith.constant 0 : index
    %c0_161 = arith.constant 0 : index
    %440 = vector.load %arg8[%c1_159, %c0_160, %c0_161] : memref<2x128x256xbf16, #tpu.memory_space<vmem>>, vector<1x128x256xbf16>
    %441 = vector.shape_cast %440 : vector<1x128x256xbf16> to vector<128x256xbf16>
    %cst_162 = arith.constant dense<0.000000e+00> : vector<16x256xf32>
    %442 = tpu.matmul %439, %441, %cst_162 {dimension_numbers = #tpu.dot_dimension_numbers<[1], [0], [0], [1], [0, 0, 1, 1], [], []>} : vector<16x128xbf16>, vector<128x256xbf16>, vector<16x256xf32> -> vector<16x256xf32>
    %c1_163 = arith.constant 1 : index
    %c0_164 = arith.constant 0 : index
    %c0_165 = arith.constant 0 : index
    %443 = vector.load %arg9[%c1_163, %c0_164, %c0_165] : memref<2x1x256xf32, #tpu.memory_space<vmem>>, vector<1x1x256xf32>
    %444 = vector.shape_cast %443 : vector<1x1x256xf32> to vector<1x256xf32>
    %445 = vector.broadcast %444 : vector<1x256xf32> to vector<16x256xf32>
    %446 = arith.addf %442, %445 : vector<16x256xf32>
    %cst_166 = arith.constant 0.000000e+00 : f32
    %447 = vector.broadcast %cst_166 : f32 to vector<16x256xf32>
    %448 = arith.maximumf %446, %447 : vector<16x256xf32>
    %449 = arith.truncf %448 : vector<16x256xf32> to vector<16x256xbf16>
    %c1_167 = arith.constant 1 : index
    %c0_168 = arith.constant 0 : index
    %c0_169 = arith.constant 0 : index
    %450 = vector.load %arg10[%c1_167, %c0_168, %c0_169] : memref<2x256x128xbf16, #tpu.memory_space<vmem>>, vector<1x256x128xbf16>
    %451 = vector.shape_cast %450 : vector<1x256x128xbf16> to vector<256x128xbf16>
    %cst_170 = arith.constant dense<0.000000e+00> : vector<16x128xf32>
    %452 = tpu.matmul %449, %451, %cst_170 {dimension_numbers = #tpu.dot_dimension_numbers<[1], [0], [0], [1], [0, 0, 1, 1], [], []>} : vector<16x256xbf16>, vector<256x128xbf16>, vector<16x128xf32> -> vector<16x128xf32>
    %c1_171 = arith.constant 1 : index
    %c0_172 = arith.constant 0 : index
    %c0_173 = arith.constant 0 : index
    %453 = vector.load %arg11[%c1_171, %c0_172, %c0_173] : memref<2x1x128xf32, #tpu.memory_space<vmem>>, vector<1x1x128xf32>
    %454 = vector.shape_cast %453 : vector<1x1x128xf32> to vector<1x128xf32>
    %455 = vector.broadcast %454 : vector<1x128xf32> to vector<16x128xf32>
    %456 = arith.addf %452, %455 : vector<16x128xf32>
    %457 = arith.addf %438, %456 : vector<16x128xf32>
    %c1_174 = arith.constant 1 : index
    %c0_175 = arith.constant 0 : index
    %c0_176 = arith.constant 0 : index
    %458 = vector.load %arg12[%c1_174, %c0_175, %c0_176] : memref<2x1x128xf32, #tpu.memory_space<vmem>>, vector<1x1x128xf32>
    %459 = vector.shape_cast %458 : vector<1x1x128xf32> to vector<1x128xf32>
    %c1_177 = arith.constant 1 : index
    %c0_178 = arith.constant 0 : index
    %c0_179 = arith.constant 0 : index
    %460 = vector.load %arg13[%c1_177, %c0_178, %c0_179] : memref<2x1x128xf32, #tpu.memory_space<vmem>>, vector<1x1x128xf32>
    %461 = vector.shape_cast %460 : vector<1x1x128xf32> to vector<1x128xf32>
    %cst_180 = arith.constant dense<0.000000e+00> : vector<16xf32>
    %462 = vector.multi_reduction <add>, %457, %cst_180 [1] : vector<16x128xf32> to vector<16xf32>
    %463 = vector.shape_cast %462 : vector<16xf32> to vector<16x1xf32>
    %cst_181 = arith.constant 1.280000e+02 : f32
    %464 = vector.broadcast %cst_181 : f32 to vector<16x1xf32>
    %465 = arith.divf %463, %464 : vector<16x1xf32>
    %466 = vector.broadcast %465 : vector<16x1xf32> to vector<16x128xf32>
    %467 = arith.subf %457, %466 : vector<16x128xf32>
    %468 = arith.mulf %467, %467 : vector<16x128xf32>
    %cst_182 = arith.constant dense<0.000000e+00> : vector<16xf32>
    %469 = vector.multi_reduction <add>, %468, %cst_182 [1] : vector<16x128xf32> to vector<16xf32>
    %470 = vector.shape_cast %469 : vector<16xf32> to vector<16x1xf32>
    %cst_183 = arith.constant 1.280000e+02 : f32
    %471 = vector.broadcast %cst_183 : f32 to vector<16x1xf32>
    %472 = arith.divf %470, %471 : vector<16x1xf32>
    %473 = vector.broadcast %465 : vector<16x1xf32> to vector<16x128xf32>
    %474 = arith.subf %457, %473 : vector<16x128xf32>
    %cst_184 = arith.constant 9.99999974E-6 : f32
    %475 = vector.broadcast %cst_184 : f32 to vector<16x1xf32>
    %476 = arith.addf %472, %475 : vector<16x1xf32>
    %477 = math.rsqrt %476 : vector<16x1xf32>
    %478 = vector.broadcast %477 : vector<16x1xf32> to vector<16x128xf32>
    %479 = arith.mulf %474, %478 : vector<16x128xf32>
    %480 = vector.broadcast %459 : vector<1x128xf32> to vector<16x128xf32>
    %481 = arith.mulf %479, %480 : vector<16x128xf32>
    %482 = vector.broadcast %461 : vector<1x128xf32> to vector<16x128xf32>
    %483 = arith.addf %481, %482 : vector<16x128xf32>
    %484 = arith.truncf %483 : vector<16x128xf32> to vector<16x128xbf16>
    %c0_185 = arith.constant 0 : index
    %c0_186 = arith.constant 0 : index
    %485 = vector.load %arg14[%c0_185, %c0_186] : memref<128x256xbf16, #tpu.memory_space<vmem>>, vector<128x256xbf16>
    %cst_187 = arith.constant dense<0.000000e+00> : vector<16x256xf32>
    %486 = tpu.matmul %484, %485, %cst_187 {dimension_numbers = #tpu.dot_dimension_numbers<[1], [0], [0], [1], [0, 0, 1, 1], [], []>} : vector<16x128xbf16>, vector<128x256xbf16>, vector<16x256xf32> -> vector<16x256xf32>
    %c0_188 = arith.constant 0 : index
    %c0_189 = arith.constant 0 : index
    %487 = vector.load %arg15[%c0_188, %c0_189] : memref<1x256xf32, #tpu.memory_space<vmem>>, vector<1x256xf32>
    %488 = vector.broadcast %487 : vector<1x256xf32> to vector<16x256xf32>
    %489 = arith.addf %486, %488 : vector<16x256xf32>
    %c0_190 = arith.constant 0 : index
    %c0_191 = arith.constant 0 : index
    %490 = vector.load %arg16[%c0_190, %c0_191] : memref<16x256xf32, #tpu.memory_space<vmem>>, vector<16x256xf32>
    tpu.vector_store %arg16[%c0_190, %c0_191], %489 {strides = array<i32>} : memref<16x256xf32, #tpu.memory_space<vmem>>, vector<16x256xf32>,
    return
  }
}

</mosaic_0001>

<llo_original>
// kernel: transformer_forward.1
$region0: #{transformer_forward.1}
  #allocation0 [shape = 'u32[]', space=smem, size = 0x4, offset = 0x4, fixed_abs, tag = 'smem constant byte address 0x4 - core index']
  #allocation1 [shape = 'u32[144,128]{1,0:T(1,128)}', space=vmem, size = 0x12000, scoped, tag = 'internal scratch']
  %s0 = inlined_call_operand.vmem [shape: f32[2,8,128], index: 0, kind: input, shape index: {}]
  %s1 = inlined_call_operand.vmem [shape: f32[8,128], index: 1, kind: input, shape index: {}]
  %s2 = inlined_call_operand.hbm [shape: bf16[2,128,384], index: 2, kind: input, shape index: {}]
  %s3 = inlined_call_operand.hbm [shape: f32[2,1,384], index: 3, kind: input, shape index: {}]
  %s4 = inlined_call_operand.hbm [shape: bf16[2,128,128], index: 4, kind: input, shape index: {}]
  %s5 = inlined_call_operand.hbm [shape: f32[2,1,128], index: 5, kind: input, shape index: {}]
  %s6 = inlined_call_operand.hbm [shape: f32[2,1,128], index: 6, kind: input, shape index: {}]
  %s7 = inlined_call_operand.hbm [shape: f32[2,1,128], index: 7, kind: input, shape index: {}]
  %s8 = inlined_call_operand.vmem [shape: bf16[2,128,256], index: 8, kind: input, shape index: {}]
  %s9 = inlined_call_operand.vmem [shape: f32[2,1,256], index: 9, kind: input, shape index: {}]
  %s10 = inlined_call_operand.hbm [shape: bf16[2,256,128], index: 10, kind: input, shape index: {}]
  %s11 = inlined_call_operand.hbm [shape: f32[2,1,128], index: 11, kind: input, shape index: {}]
  %s12 = inlined_call_operand.hbm [shape: f32[2,1,128], index: 12, kind: input, shape index: {}]
  %s13 = inlined_call_operand.hbm [shape: f32[2,1,128], index: 13, kind: input, shape index: {}]
  %s14 = inlined_call_operand.hbm [shape: bf16[128,256], index: 14, kind: input, shape index: {}]
  %s15 = inlined_call_operand.hbm [shape: f32[1,256], index: 15, kind: input, shape index: {}]
  %s16 = inlined_call_operand.hbm [shape: f32[16,256], index: 16, kind: output, shape index: {}]
  %s17 = sld [smem:[#allocation0]]
  $region122: #{transformer_forward.1} parent=0
    _
  %s19 = ssub.s32 1, %s17
  %s20 = scalar_select 0, %s19, %s17
  $region1: #{transformer_forward.1} parent=0
    #allocation2 [shape = 'u8[196608]{0}', space=vmem, size = 0x30000, scoped, tag = 'input window, operand 2, single buffered']
    #allocation3 [shape = 's32[1]{0}', space=sflag, size = 0x4, scoped, tag = 'scoped memory for transformer_forward.1']
    #allocation4 [shape = 's32[1]{0}', space=sflag, size = 0x4, scoped, tag = 'scoped memory for transformer_forward.1']
    #allocation5 [shape = 'u8[3072]{0}', space=vmem, size = 0xc00, scoped, tag = 'input window, operand 3, single buffered']
    #allocation6 [shape = 's32[1]{0}', space=sflag, size = 0x4, scoped, tag = 'scoped memory for transformer_forward.1']
    #allocation7 [shape = 'u8[65536]{0}', space=vmem, size = 0x10000, scoped, tag = 'input window, operand 4, single buffered']
    #allocation8 [shape = 'u8[1024]{0}', space=vmem, size = 0x400, scoped, tag = 'input window, operand 5, single buffered']
    #allocation9 [shape = 's32[1]{0}', space=sflag, size = 0x4, scoped, tag = 'scoped memory for transformer_forward.1']
    #allocation10 [shape = 'u8[1024]{0}', space=vmem, size = 0x400, scoped, tag = 'input window, operand 6, single buffered']
    #allocation11 [shape = 'u8[1024]{0}', space=vmem, size = 0x400, scoped, tag = 'input window, operand 7, single buffered']
    #allocation12 [shape = 's32[1]{0}', space=sflag, size = 0x4, scoped, tag = 'scoped memory for transformer_forward.1']
    #allocation13 [shape = 'u8[131072]{0}', space=vmem, size = 0x20000, scoped, tag = 'input window, operand 10, single buffered']
    #allocation14 [shape = 'u8[1024]{0}', space=vmem, size = 0x400, scoped, tag = 'input window, operand 11, single buffered']
    #allocation15 [shape = 's32[1]{0}', space=sflag, size = 0x4, scoped, tag = 'scoped memory for transformer_forward.1']
    #allocation16 [shape = 'u8[1024]{0}', space=vmem, size = 0x400, scoped, tag = 'input window, operand 12, single buffered']
    #allocation17 [shape = 'u8[1024]{0}', space=vmem, size = 0x400, scoped, tag = 'input window, operand 13, single buffered']
    #allocation18 [shape = 's32[1]{0}', space=sflag, size = 0x4, scoped, tag = 'scoped memory for transformer_forward.1']
    #allocation19 [shape = 'u8[65536]{0}', space=vmem, size = 0x10000, scoped, tag = 'input window, operand 14, single buffered']
    #allocation20 [shape = 'u8[1024]{0}', space=vmem, size = 0x400, scoped, tag = 'input window, operand 15, single buffered']
    #allocation21 [shape = 's32[1]{0}', space=sflag, size = 0x4, scoped, tag = 'scoped memory for transformer_forward.1']
    #allocation22 [shape = 'u8[16384]{0}', space=vmem, size = 0x4000, scoped, tag = 'output window, operand 0, single buffered']
    %21 = vsyncpa [#allocation3], 0
    %22 = vsyncpa [#allocation6], 0
    %23 = vsyncpa [#allocation9], 0
    %24 = vsyncpa [#allocation12], 0
    %25 = vsyncpa [#allocation15], 0
    %26 = vsyncpa [#allocation18], 0
    %27 = vsyncpa [#allocation21], 0
    %28 = vsyncpa [#allocation4], 0
    // Predicated region
    $region2: #{transformer_forward.1} parent=1 // pred_check
      _
    $region3: #{transformer_forward.1} parent=1 // pred_check_branch
      %30 = sbr.rel (0) target = $region5
    $region4: #{transformer_forward.1} parent=1 // pred_region
      _
    $region5: #{transformer_forward.1} parent=1 // pred_fallthru
      _
    // Predicated region
    $region6: #{transformer_forward.1} parent=1 // pred_check
      _
    $region7: #{transformer_forward.1} parent=1 // pred_check_branch
      %32 = sbr.rel (0) target = $region9
    $region8: #{transformer_forward.1} parent=1 // pred_region
      _
    $region9: #{transformer_forward.1} parent=1 // pred_fallthru
      _
    // Predicated region
    $region10: #{transformer_forward.1} parent=1 // pred_check
      _
    $region11: #{transformer_forward.1} parent=1 // pred_check_branch
      %34 = sbr.rel (0) target = $region13
    $region12: #{transformer_forward.1} parent=1 // pred_region
      %s36 = ssub.s32 6144, 6144
      %37 = vsyncadd [#allocation3], %s36
      %s38 = sshll.u32 [#allocation2], 4
      %s39 = int_to_ptr.vmem [resolvable:$true] %s38
      %44 = dma.hbm_to_vmem [thread:$0]  %s2, 6144, %s39, [#allocation3], 192, 192, 12
    $region13: #{transformer_forward.1} parent=1 // pred_fallthru
      _
    // Predicated region
    $region14: #{transformer_forward.1} parent=1 // pred_check
      _
    $region15: #{transformer_forward.1} parent=1 // pred_check_branch
      %46 = sbr.rel (0) target = $region17
    $region16: #{transformer_forward.1} parent=1 // pred_region
      %s48 = ssub.s32 96, 96
      %49 = vsyncadd [#allocation6], %s48
      %s50 = sshll.u32 [#allocation5], 4
      %s51 = int_to_ptr.vmem [resolvable:$true] %s50
      %56 = dma.hbm_to_vmem [thread:$0]  %s3, 96, %s51, [#allocation6], 48, 48, 3
    $region17: #{transformer_forward.1} parent=1 // pred_fallthru
      _
    // Predicated region
    $region18: #{transformer_forward.1} parent=1 // pred_check
      _
    $region19: #{transformer_forward.1} parent=1 // pred_check_branch
      %58 = sbr.rel (0) target = $region21
    $region20: #{transformer_forward.1} parent=1 // pred_region
      %s60 = ssub.s32 2048, 2048
      %61 = vsyncadd [#allocation6], %s60
      %s62 = sshll.u32 [#allocation7], 4
      %s63 = int_to_ptr.vmem [resolvable:$true] %s62
      %68 = dma.hbm_to_vmem [thread:$0]  %s4, 2048, %s63, [#allocation6], 64, 64, 4
    $region21: #{transformer_forward.1} parent=1 // pred_fallthru
      _
    // Predicated region
    $region22: #{transformer_forward.1} parent=1 // pred_check
      _
    $region23: #{transformer_forward.1} parent=1 // pred_check_branch
      %70 = sbr.rel (0) target = $region25
    $region24: #{transformer_forward.1} parent=1 // pred_region
      %s72 = ssub.s32 32, 32
      %73 = vsyncadd [#allocation9], %s72
      %s74 = sshll.u32 [#allocation8], 4
      %s75 = int_to_ptr.vmem [resolvable:$true] %s74
      %80 = dma.hbm_to_vmem [thread:$0]  %s5, 32, %s75, [#allocation9], 16, 16, 1
    $region25: #{transformer_forward.1} parent=1 // pred_fallthru
      _
    // Predicated region
    $region26: #{transformer_forward.1} parent=1 // pred_check
      _
    $region27: #{transformer_forward.1} parent=1 // pred_check_branch
      %82 = sbr.rel (0) target = $region29
    $region28: #{transformer_forward.1} parent=1 // pred_region
      %s84 = ssub.s32 32, 32
      %85 = vsyncadd [#allocation9], %s84
      %s86 = sshll.u32 [#allocation10], 4
      %s87 = int_to_ptr.vmem [resolvable:$true] %s86
      %92 = dma.hbm_to_vmem [thread:$0]  %s6, 32, %s87, [#allocation9], 16, 16, 1
    $region29: #{transformer_forward.1} parent=1 // pred_fallthru
      _
    // Predicated region
    $region30: #{transformer_forward.1} parent=1 // pred_check
      _
    $region31: #{transformer_forward.1} parent=1 // pred_check_branch
      %94 = sbr.rel (0) target = $region33
    $region32: #{transformer_forward.1} parent=1 // pred_region
      %s96 = ssub.s32 32, 32
      %97 = vsyncadd [#allocation12], %s96
      %s98 = sshll.u32 [#allocation11], 4
      %s99 = int_to_ptr.vmem [resolvable:$true] %s98
      %104 = dma.hbm_to_vmem [thread:$0]  %s7, 32, %s99, [#allocation12], 16, 16, 1
    $region33: #{transformer_forward.1} parent=1 // pred_fallthru
      _
    // Predicated region
    $region34: #{transformer_forward.1} parent=1 // pred_check
      _
    $region35: #{transformer_forward.1} parent=1 // pred_check_branch
      %106 = sbr.rel (0) target = $region37
    $region36: #{transformer_forward.1} parent=1 // pred_region
      _
    $region37: #{transformer_forward.1} parent=1 // pred_fallthru
      _
    // Predicated region
    $region38: #{transformer_forward.1} parent=1 // pred_check
      _
    $region39: #{transformer_forward.1} parent=1 // pred_check_branch
      %108 = sbr.rel (0) target = $region41
    $region40: #{transformer_forward.1} parent=1 // pred_region
      _
    $region41: #{transformer_forward.1} parent=1 // pred_fallthru
      _
    // Predicated region
    $region42: #{transformer_forward.1} parent=1 // pred_check
      _
    $region43: #{transformer_forward.1} parent=1 // pred_check_branch
      %110 = sbr.rel (0) target = $region45
    $region44: #{transformer_forward.1} parent=1 // pred_region
      %s112 = ssub.s32 4096, 4096
      %113 = vsyncadd [#allocation12], %s112
      %s114 = sshll.u32 [#allocation13], 4
      %s115 = int_to_ptr.vmem [resolvable:$true] %s114
      %120 = dma.hbm_to_vmem [thread:$0]  %s10, 4096, %s115, [#allocation12], 64, 64, 4
    $region45: #{transformer_forward.1} parent=1 // pred_fallthru
      _
    // Predicated region
    $region46: #{transformer_forward.1} parent=1 // pred_check
      _
    $region47: #{transformer_forward.1} parent=1 // pred_check_branch
      %122 = sbr.rel (0) target = $region49
    $region48: #{transformer_forward.1} parent=1 // pred_region
      %s124 = ssub.s32 32, 32
      %125 = vsyncadd [#allocation15], %s124
      %s126 = sshll.u32 [#allocation14], 4
      %s127 = int_to_ptr.vmem [resolvable:$true] %s126
      %132 = dma.hbm_to_vmem [thread:$0]  %s11, 32, %s127, [#allocation15], 16, 16, 1
    $region49: #{transformer_forward.1} parent=1 // pred_fallthru
      _
    // Predicated region
    $region50: #{transformer_forward.1} parent=1 // pred_check
      _
    $region51: #{transformer_forward.1} parent=1 // pred_check_branch
      %134 = sbr.rel (0) target = $region53
    $region52: #{transformer_forward.1} parent=1 // pred_region
      %s136 = ssub.s32 32, 32
      %137 = vsyncadd [#allocation15], %s136
      %s138 = sshll.u32 [#allocation16], 4
      %s139 = int_to_ptr.vmem [resolvable:$true] %s138
      %144 = dma.hbm_to_vmem [thread:$0]  %s12, 32, %s139, [#allocation15], 16, 16, 1
    $region53: #{transformer_forward.1} parent=1 // pred_fallthru
      _
    // Predicated region
    $region54: #{transformer_forward.1} parent=1 // pred_check
      _
    $region55: #{transformer_forward.1} parent=1 // pred_check_branch
      %146 = sbr.rel (0) target = $region57
    $region56: #{transformer_forward.1} parent=1 // pred_region
      %s148 = ssub.s32 32, 32
      %149 = vsyncadd [#allocation18], %s148
      %s150 = sshll.u32 [#allocation17], 4
      %s151 = int_to_ptr.vmem [resolvable:$true] %s150
      %156 = dma.hbm_to_vmem [thread:$0]  %s13, 32, %s151, [#allocation18], 16, 16, 1
    $region57: #{transformer_forward.1} parent=1 // pred_fallthru
      _
    // Predicated region
    $region58: #{transformer_forward.1} parent=1 // pred_check
      _
    $region59: #{transformer_forward.1} parent=1 // pred_check_branch
      %158 = sbr.rel (0) target = $region61
    $region60: #{transformer_forward.1} parent=1 // pred_region
      %s160 = ssub.s32 2048, 2048
      %161 = vsyncadd [#allocation18], %s160
      %s162 = sshll.u32 [#allocation19], 4
      %s163 = int_to_ptr.vmem [resolvable:$true] %s162
      %168 = dma.hbm_to_vmem [thread:$0]  %s14, 2048, %s163, [#allocation18], 128, 128, 8
    $region61: #{transformer_forward.1} parent=1 // pred_fallthru
      _
    // Predicated region
    $region62: #{transformer_forward.1} parent=1 // pred_check
      _
    $region63: #{transformer_forward.1} parent=1 // pred_check_branch
      %170 = sbr.rel (0) target = $region65
    $region64: #{transformer_forward.1} parent=1 // pred_region
      %s172 = ssub.s32 32, 32
      %173 = vsyncadd [#allocation21], %s172
      %s175 = sshll.u32 [#allocation20], 4
      %s176 = int_to_ptr.vmem [resolvable:$true] %s175
      %178 = dma.hbm_to_vmem [thread:$0]  %s15, 32, %s176, [#allocation21]
    $region65: #{transformer_forward.1} parent=1 // pred_fallthru
      _
    // Predicated region
    $region66: #{transformer_forward.1} parent=1 // pred_check
      _
    $region67: #{transformer_forward.1} parent=1 // pred_check_branch
      %180 = sbr.rel (0) target = $region69
    $region68: #{transformer_forward.1} parent=1 // pred_region
      %181 = dma.done [#allocation3], 6144
    $region69: #{transformer_forward.1} parent=1 // pred_fallthru
      _
    // Predicated region
    $region70: #{transformer_forward.1} parent=1 // pred_check
      _
    $region71: #{transformer_forward.1} parent=1 // pred_check_branch
      %183 = sbr.rel (0) target = $region73
    $region72: #{transformer_forward.1} parent=1 // pred_region
      %184 = dma.done [#allocation6], 96
    $region73: #{transformer_forward.1} parent=1 // pred_fallthru
      _
    // Predicated region
    $region74: #{transformer_forward.1} parent=1 // pred_check
      _
    $region75: #{transformer_forward.1} parent=1 // pred_check_branch
      %186 = sbr.rel (0) target = $region77
    $region76: #{transformer_forward.1} parent=1 // pred_region
      %187 = dma.done [#allocation6], 2048
    $region77: #{transformer_forward.1} parent=1 // pred_fallthru
      _
    // Predicated region
    $region78: #{transformer_forward.1} parent=1 // pred_check
      _
    $region79: #{transformer_forward.1} parent=1 // pred_check_branch
      %189 = sbr.rel (0) target = $region81
    $region80: #{transformer_forward.1} parent=1 // pred_region
      %190 = dma.done [#allocation9], 32
    $region81: #{transformer_forward.1} parent=1 // pred_fallthru
      _
    // Predicated region
    $region82: #{transformer_forward.1} parent=1 // pred_check
      _
    $region83: #{transformer_forward.1} parent=1 // pred_check_branch
      %192 = sbr.rel (0) target = $region85
    $region84: #{transformer_forward.1} parent=1 // pred_region
      %193 = dma.done [#allocation9], 32
    $region85: #{transformer_forward.1} parent=1 // pred_fallthru
      _
    // Predicated region
    $region86: #{transformer_forward.1} parent=1 // pred_check
      _
    $region87: #{transformer_forward.1} parent=1 // pred_check_branch
      %195 = sbr.rel (0) target = $region89
    $region88: #{transformer_forward.1} parent=1 // pred_region
      %196 = dma.done [#allocation12], 32
    $region89: #{transformer_forward.1} parent=1 // pred_fallthru
      _
    // Predicated region
    $region90: #{transformer_forward.1} parent=1 // pred_check
      _
    $region91: #{transformer_forward.1} parent=1 // pred_check_branch
      %198 = sbr.rel (0) target = $region93
    $region92: #{transformer_forward.1} parent=1 // pred_region
      %199 = dma.done [#allocation12], 4096
    $region93: #{transformer_forward.1} parent=1 // pred_fallthru
      _
    // Predicated region
    $region94: #{transformer_forward.1} parent=1 // pred_check
      _
    $region95: #{transformer_forward.1} parent=1 // pred_check_branch
      %201 = sbr.rel (0) target = $region97
    $region96: #{transformer_forward.1} parent=1 // pred_region
      %202 = dma.done [#allocation15], 32
    $region97: #{transformer_forward.1} parent=1 // pred_fallthru
      _
    // Predicated region
    $region98: #{transformer_forward.1} parent=1 // pred_check
      _
    $region99: #{transformer_forward.1} parent=1 // pred_check_branch
      %204 = sbr.rel (0) target = $region101
    $region100: #{transformer_forward.1} parent=1 // pred_region
      %205 = dma.done [#allocation15], 32
    $region101: #{transformer_forward.1} parent=1 // pred_fallthru
      _
    // Predicated region
    $region102: #{transformer_forward.1} parent=1 // pred_check
      _
    $region103: #{transformer_forward.1} parent=1 // pred_check_branch
      %207 = sbr.rel (0) target = $region105
    $region104: #{transformer_forward.1} parent=1 // pred_region
      %208 = dma.done [#allocation18], 32
    $region105: #{transformer_forward.1} parent=1 // pred_fallthru
      _
    // Predicated region
    $region106: #{transformer_forward.1} parent=1 // pred_check
      _
    $region107: #{transformer_forward.1} parent=1 // pred_check_branch
      %210 = sbr.rel (0) target = $region109
    $region108: #{transformer_forward.1} parent=1 // pred_region
      %211 = dma.done [#allocation18], 2048
    $region109: #{transformer_forward.1} parent=1 // pred_fallthru
      _
    // Predicated region
    $region110: #{transformer_forward.1} parent=1 // pred_check
      _
    $region111: #{transformer_forward.1} parent=1 // pred_check_branch
      %213 = sbr.rel (0) target = $region113
    $region112: #{transformer_forward.1} parent=1 // pred_region
      %214 = dma.done [#allocation21], 32
    $region113: #{transformer_forward.1} parent=1 // pred_fallthru
      _
    %v216 = vld [vmem:[%s0] sm:$0xff]
    %v217 = vld [vmem:[%s0 + $0x8] sm:$0xff]
    %v218 = vmul.f32 %v216, 11.313708
    %v219 = vmul.f32 %v217, 11.313708
    %v220 = vld [vmem:[%s1] sm:$0xff]
    %v221 = vadd.f32 %v218, %v220
    %v222 = vadd.f32 %v219, %v220
    %v223 = vpack.c.bf16 %v222, %v221
    %v224 = vld [vmem:[#allocation2] sm:$0xff]
    %v225 = vld [vmem:[#allocation2 + $0x8] sm:$0xf]
    %v226 = vld [vmem:[#allocation2 + $0xc] sm:$0xff]
    %v227 = vld [vmem:[#allocation2 + $0x14] sm:$0xf]
    %v228 = vld [vmem:[#allocation2 + $0x18] sm:$0xff]
    %v229 = vld [vmem:[#allocation2 + $0x20] sm:$0xf]
    %v230 = vld [vmem:[#allocation2 + $0x24] sm:$0xff]
    %v231 = vld [vmem:[#allocation2 + $0x2c] sm:$0xf]
    %v232 = vld [vmem:[#allocation2 + $0x30] sm:$0xff]
    %v233 = vld [vmem:[#allocation2 + $0x38] sm:$0xf]
    %v234 = vld [vmem:[#allocation2 + $0x3c] sm:$0xff]
    %v235 = vld [vmem:[#allocation2 + $0x44] sm:$0xf]
    %v236 = vld [vmem:[#allocation2 + $0x48] sm:$0xff]
    %v237 = vld [vmem:[#allocation2 + $0x50] sm:$0xf]
    %v238 = vld [vmem:[#allocation2 + $0x54] sm:$0xff]
    %v239 = vld [vmem:[#allocation2 + $0x5c] sm:$0xf]
    %v240 = vld [vmem:[#allocation2 + $0x60] sm:$0xff]
    %v241 = vld [vmem:[#allocation2 + $0x68] sm:$0xf]
    %v242 = vld [vmem:[#allocation2 + $0x6c] sm:$0xff]
    %v243 = vld [vmem:[#allocation2 + $0x74] sm:$0xf]
    %v244 = vld [vmem:[#allocation2 + $0x78] sm:$0xff]
    %v245 = vld [vmem:[#allocation2 + $0x80] sm:$0xf]
    %v246 = vld [vmem:[#allocation2 + $0x84] sm:$0xff]
    %v247 = vld [vmem:[#allocation2 + $0x8c] sm:$0xf]
    %v248 = vld [vmem:[#allocation2 + $0x90] sm:$0xff]
    %v249 = vld [vmem:[#allocation2 + $0x98] sm:$0xf]
    %v250 = vld [vmem:[#allocation2 + $0x9c] sm:$0xff]
    %v251 = vld [vmem:[#allocation2 + $0xa4] sm:$0xf]
    %v252 = vld [vmem:[#allocation2 + $0xa8] sm:$0xff]
    %v253 = vld [vmem:[#allocation2 + $0xb0] sm:$0xf]
    %v254 = vld [vmem:[#allocation2 + $0xb4] sm:$0xff]
    %v255 = vld [vmem:[#allocation2 + $0xbc] sm:$0xf]
    %v256 = vld [vmem:[#allocation5] sm:$0x7]
    %v258 = vlaneseq
    %v259 = vshrl.u32 %v258, 7
    %v260 = vsub.s32 0, %v259
    %v261 = vrot.slane %v256, %v260
    %v262 = vlaneseq
    %v263 = vshrl.u32 %v262, 7
    %v264 = vsub.s32 1, %v263
    %v265 = vrot.slane %v256, %v264
    %v266 = vlaneseq
    %v267 = vshrl.u32 %v266, 7
    %v268 = vsub.s32 2, %v267
    %v269 = vrot.slane %v256, %v268
    %v305 = vunpack.c.l.b16 %v224
    %v306 = vunpack.c.h.b16 %v224
    %v307 = vunpack.c.l.b16 %v225
    %v308 = vunpack.c.l.b16 %v226
    %v309 = vunpack.c.h.b16 %v226
    %v310 = vunpack.c.l.b16 %v227
    %v311 = vunpack.c.l.b16 %v228
    %v312 = vunpack.c.h.b16 %v228
    %v313 = vunpack.c.l.b16 %v229
    %v314 = vunpack.c.l.b16 %v230
    %v315 = vunpack.c.h.b16 %v230
    %v316 = vunpack.c.l.b16 %v231
    %v317 = vunpack.c.l.b16 %v232
    %v318 = vunpack.c.h.b16 %v232
    %v319 = vunpack.c.l.b16 %v233
    %v320 = vunpack.c.l.b16 %v234
    %v321 = vunpack.c.h.b16 %v234
    %v322 = vunpack.c.l.b16 %v235
    %v323 = vunpack.c.l.b16 %v236
    %v324 = vunpack.c.h.b16 %v236
    %v325 = vunpack.c.l.b16 %v237
    %v326 = vunpack.c.l.b16 %v238
    %v327 = vunpack.c.h.b16 %v238
    %v328 = vunpack.c.l.b16 %v239
    %v329 = vunpack.c.l.b16 %v240
    %v330 = vunpack.c.h.b16 %v240
    %v331 = vunpack.c.l.b16 %v241
    %v332 = vunpack.c.l.b16 %v242
    %v333 = vunpack.c.h.b16 %v242
    %v334 = vunpack.c.l.b16 %v243
    %v335 = vunpack.c.l.b16 %v244
    %v336 = vunpack.c.h.b16 %v244
    %v337 = vunpack.c.l.b16 %v245
    %v338 = vunpack.c.l.b16 %v246
    %v339 = vunpack.c.h.b16 %v246
    %v340 = vunpack.c.l.b16 %v247
    %v341 = vunpack.c.l.b16 %v248
    %v342 = vunpack.c.h.b16 %v248
    %v343 = vunpack.c.l.b16 %v249
    %v344 = vunpack.c.l.b16 %v250
    %v345 = vunpack.c.h.b16 %v250
    %v346 = vunpack.c.l.b16 %v251
    %v347 = vunpack.c.l.b16 %v252
    %v348 = vunpack.c.h.b16 %v252
    %v349 = vunpack.c.l.b16 %v253
    %v350 = vunpack.c.l.b16 %v254
    %v351 = vunpack.c.h.b16 %v254
    %v352 = vunpack.c.l.b16 %v255
    %v353 = vpack.c.b16 %v308, %v305
    %v354 = vpack.c.b16 %v309, %v306
    %v355 = vpack.c.b16 %v310, %v307
    %v356 = vpack.c.b16 %v314, %v311
    %v357 = vpack.c.b16 %v315, %v312
    %v358 = vpack.c.b16 %v316, %v313
    %v359 = vpack.c.b16 %v320, %v317
    %v360 = vpack.c.b16 %v321, %v318
    %v361 = vpack.c.b16 %v322, %v319
    %v362 = vpack.c.b16 %v326, %v323
    %v363 = vpack.c.b16 %v327, %v324
    %v364 = vpack.c.b16 %v328, %v325
    %v365 = vpack.c.b16 %v332, %v329
    %v366 = vpack.c.b16 %v333, %v330
    %v367 = vpack.c.b16 %v334, %v331
    %v368 = vpack.c.b16 %v338, %v335
    %v369 = vpack.c.b16 %v339, %v336
    %v370 = vpack.c.b16 %v340, %v337
    %v371 = vpack.c.b16 %v344, %v341
    %v372 = vpack.c.b16 %v345, %v342
    %v373 = vpack.c.b16 %v346, %v343
    %v374 = vpack.c.b16 %v350, %v347
    %v375 = vpack.c.b16 %v351, %v348
    %v376 = vpack.c.b16 %v352, %v349
    %401 = vmatprep.subr.bf16.mxu0 %v354
    %402 = vmatpush1.bf16.msra.mxu0 %v353
    %403 = vmatprep.subr.bf16.mxu0 %v357
    %404 = vmatpush1.bf16.msra.mxu0 %v356
    %405 = vmatprep.subr.bf16.mxu0 %v360
    %406 = vmatpush1.bf16.msra.mxu0 %v359
    %407 = vmatprep.subr.bf16.mxu0 %v363
    %408 = vmatpush1.bf16.msra.mxu0 %v362
    %409 = vmatprep.subr.bf16.mxu0 %v366
    %410 = vmatpush1.bf16.msra.mxu0 %v365
    %411 = vmatprep.subr.bf16.mxu0 %v369
    %412 = vmatpush1.bf16.msra.mxu0 %v368
    %413 = vmatprep.subr.bf16.mxu0 %v372
    %414 = vmatpush1.bf16.msra.mxu0 %v371
    %415 = vmatprep.subr.bf16.mxu0 %v375
    %416 = vmatpush1.bf16.msra.mxu0 %v374
    %417 = vmatprep.subr.bf16.mxu0 0
    %418 = vmatpush1.bf16.msra.mxu0 0
    %419 = vmatprep.subr.bf16.mxu0 0
    %420 = vmatpush1.bf16.msra.mxu0 0
    %421 = vmatprep.subr.bf16.mxu0 0
    %422 = vmatpush1.bf16.msra.mxu0 0
    %423 = vmatprep.subr.bf16.mxu0 0
    %424 = vmatpush1.bf16.msra.mxu0 0
    %425 = vmatprep.subr.bf16.mxu0 0
    %426 = vmatpush1.bf16.msra.mxu0 0
    %427 = vmatprep.subr.bf16.mxu0 0
    %428 = vmatpush1.bf16.msra.mxu0 0
    %429 = vmatprep.subr.bf16.mxu0 0
    %430 = vmatpush1.bf16.msra.mxu0 0
    %431 = vmatprep.subr.bf16.mxu0 0
    %432 = vmatpush1.bf16.msra.mxu0 0
    %433 = vmatprep.mubr.bf16.mxu0 0
    %434 = vmatmul.mubr.bf16.gmra.mrb[0].mxu0 %v223
    %v435 = vpop.f32.mrb[0].mxu0
    %v436 = vadd.f32 %v261, %v435
    %v437 = vpop.f32.mrb[0].mxu0
    %v438 = vadd.f32 %v265, %v437
    %v439 = vpop.f32.mrb[0].mxu0
    %v440 = vadd.f32 %v261, %v439
    %v441 = vpop.f32.mrb[0].mxu0
    %v442 = vadd.f32 %v265, %v441
    %443 = vdwg.mxu0
    %444 = vmatprep.subr.bf16.mxu0 0
    %445 = vmatpush1.bf16.msra.mxu0 %v355
    %446 = vmatprep.subr.bf16.mxu0 0
    %447 = vmatpush1.bf16.msra.mxu0 %v358
    %448 = vmatprep.subr.bf16.mxu0 0
    %449 = vmatpush1.bf16.msra.mxu0 %v361
    %450 = vmatprep.subr.bf16.mxu0 0
    %451 = vmatpush1.bf16.msra.mxu0 %v364
    %452 = vmatprep.subr.bf16.mxu0 0
    %453 = vmatpush1.bf16.msra.mxu0 %v367
    %454 = vmatprep.subr.bf16.mxu0 0
    %455 = vmatpush1.bf16.msra.mxu0 %v370
    %456 = vmatprep.subr.bf16.mxu0 0
    %457 = vmatpush1.bf16.msra.mxu0 %v373
    %458 = vmatprep.subr.bf16.mxu0 0
    %459 = vmatpush1.bf16.msra.mxu0 %v376
    %460 = vmatprep.subr.bf16.mxu0 0
    %461 = vmatpush1.bf16.msra.mxu0 0
    %462 = vmatprep.subr.bf16.mxu0 0
    %463 = vmatpush1.bf16.msra.mxu0 0
    %464 = vmatprep.subr.bf16.mxu0 0
    %465 = vmatpush1.bf16.msra.mxu0 0
    %466 = vmatprep.subr.bf16.mxu0 0
    %467 = vmatpush1.bf16.msra.mxu0 0
    %468 = vmatprep.subr.bf16.mxu0 0
    %469 = vmatpush1.bf16.msra.mxu0 0
    %470 = vmatprep.subr.bf16.mxu0 0
    %471 = vmatpush1.bf16.msra.mxu0 0
    %472 = vmatprep.subr.bf16.mxu0 0
    %473 = vmatpush1.bf16.msra.mxu0 0
    %474 = vmatprep.subr.bf16.mxu0 0
    %475 = vmatpush1.bf16.msra.mxu0 0
    %476 = vmatprep.mubr.bf16.mxu0 0
    %477 = vmatmul.mubr.bf16.gmra.mrb[0].mxu0 %v223
    %v478 = vpop.f32.mrb[0].mxu0
    %v479 = vadd.f32 %v269, %v478
    %v480 = vpop.f32.mrb[0].mxu0
    %v481 = vpop.f32.mrb[0].mxu0
    %v482 = vadd.f32 %v269, %v481
    %v483 = vpop.f32.mrb[0].mxu0
    %484 = vdwg.mxu0
    %v485 = vpack.c.bf16 %v440, %v436
    %v486 = vpack.c.bf16 %v442, %v438
    %v487 = vpack.c.bf16 %v482, %v479
    %vm488 = vcmask 261120
    %v490 = vsel %vm488, %v485, 0
    %v493 = vsel %vm488, %v486, 0
    %495 = vmatprep.subr.bf16.mxu0 0
    %496 = vmatpush1.bf16.xpose.msra.mxu0 %v493
    %497 = vmatprep.subr.bf16.mxu0 0
    %498 = vmatpush1.bf16.xpose.msra.mxu0 0
    %499 = vmatprep.subr.bf16.mxu0 0
    %500 = vmatpush1.bf16.xpose.msra.mxu0 0
    %501 = vmatprep.subr.bf16.mxu0 0
    %502 = vmatpush1.bf16.xpose.msra.mxu0 0
    %503 = vmatprep.subr.bf16.mxu0 0
    %504 = vmatpush1.bf16.xpose.msra.mxu0 0
    %505 = vmatprep.subr.bf16.mxu0 0
    %506 = vmatpush1.bf16.xpose.msra.mxu0 0
    %507 = vmatprep.subr.bf16.mxu0 0
    %508 = vmatpush1.bf16.xpose.msra.mxu0 0
    %509 = vmatprep.subr.bf16.mxu0 0
    %510 = vmatpush1.bf16.xpose.msra.mxu0 0
    %511 = vmatprep.subr.bf16.mxu0 0
    %512 = vmatpush1.bf16.xpose.msra.mxu0 0
    %513 = vmatprep.subr.bf16.mxu0 0
    %514 = vmatpush1.bf16.xpose.msra.mxu0 0
    %515 = vmatprep.subr.bf16.mxu0 0
    %516 = vmatpush1.bf16.xpose.msra.mxu0 0
    %517 = vmatprep.subr.bf16.mxu0 0
    %518 = vmatpush1.bf16.xpose.msra.mxu0 0
    %519 = vmatprep.subr.bf16.mxu0 0
    %520 = vmatpush1.bf16.xpose.msra.mxu0 0
    %521 = vmatprep.subr.bf16.mxu0 0
    %522 = vmatpush1.bf16.xpose.msra.mxu0 0
    %523 = vmatprep.subr.bf16.mxu0 0
    %524 = vmatpush1.bf16.xpose.msra.mxu0 0
    %525 = vmatprep.subr.bf16.mxu0 0
    %526 = vmatpush1.bf16.xpose.msra.mxu0 0
    %527 = vmatprep.mubr.bf16.mxu0 0
    %528 = vmatmul.mubr.bf16.gmra.mrb[0].mxu0 %v490
    %v529 = vpop.f32.mrb[0].mxu0
    %v530 = vadd.f32 0.0, %v529
    %v531 = vpop.f32.mrb[0].mxu0
    %v532 = vpop.f32.mrb[0].mxu0
    %v533 = vpop.f32.mrb[0].mxu0
    %534 = vdwg.mxu0
    %v535 = vmul.f32 %v530, 0.17677669
    %vm536 = vcmask 64512
    %v537 = vsel %vm536, %v535, -inf
    %538 = vmax.xlane.f32.xlu0 %v537
    %v539 = vpop.xlane.xlu0 %538
    %v540 = vsub.f32 %v535, %v539
    %v541 = vmul.f32 %v540, 1.442695
    %v542 = vpow.pop %v541
    %v543 = vsel %vm536, %v542, 0.0
    %544 = vadd.xlane.f32.xlu0 %v543
    %v545 = vpop.xlane.xlu0 %544
    %v546 = vrcp.pop %v545
    %v547 = vmul.f32 %v542, %v546
    %v548 = vpack.c.bf16 %v547, %v547
    %v550 = vsel %vm536, %v548, 0
    %vm552 = vcmask 1043456
    %v554 = vsel %vm552, %v487, 0
    %556 = vmatprep.subr.bf16.mxu0 0
    %557 = vmatpush1.bf16.msra.mxu0 %v554
    %558 = vmatprep.subr.bf16.mxu0 0
    %559 = vmatpush1.bf16.msra.mxu0 0
    %560 = vmatprep.subr.bf16.mxu0 0
    %561 = vmatpush1.bf16.msra.mxu0 0
    %562 = vmatprep.subr.bf16.mxu0 0
    %563 = vmatpush1.bf16.msra.mxu0 0
    %564 = vmatprep.subr.bf16.mxu0 0
    %565 = vmatpush1.bf16.msra.mxu0 0
    %566 = vmatprep.subr.bf16.mxu0 0
    %567 = vmatpush1.bf16.msra.mxu0 0
    %568 = vmatprep.subr.bf16.mxu0 0
    %569 = vmatpush1.bf16.msra.mxu0 0
    %570 = vmatprep.subr.bf16.mxu0 0
    %571 = vmatpush1.bf16.msra.mxu0 0
    %572 = vmatprep.subr.bf16.mxu0 0
    %573 = vmatpush1.bf16.msra.mxu0 0
    %574 = vmatprep.subr.bf16.mxu0 0
    %575 = vmatpush1.bf16.msra.mxu0 0
    %576 = vmatprep.subr.bf16.mxu0 0
    %577 = vmatpush1.bf16.msra.mxu0 0
    %578 = vmatprep.subr.bf16.mxu0 0
    %579 = vmatpush1.bf16.msra.mxu0 0
    %580 = vmatprep.subr.bf16.mxu0 0
    %581 = vmatpush1.bf16.msra.mxu0 0
    %582 = vmatprep.subr.bf16.mxu0 0
    %583 = vmatpush1.bf16.msra.mxu0 0
    %584 = vmatprep.subr.bf16.mxu0 0
    %585 = vmatpush1.bf16.msra.mxu0 0
    %586 = vmatprep.subr.bf16.mxu0 0
    %587 = vmatpush1.bf16.msra.mxu0 0
    %588 = vmatprep.mubr.bf16.mxu0 0
    %589 = vmatmul.mubr.bf16.gmra.mrb[0].mxu0 %v550
    %v590 = vpop.f32.mrb[0].mxu0
    %v591 = vadd.f32 0.0, %v590
    %v592 = vpop.f32.mrb[0].mxu0
    %v593 = vpop.f32.mrb[0].mxu0
    %v594 = vpop.f32.mrb[0].mxu0
    %595 = vdwg.mxu0
    %597 = vrot.lane.b32.xlu0 %v485, 96
    %v598 = vpop.permute.xlu0 %597
    %600 = vrot.lane.b32.xlu0 %v486, 96
    %v601 = vpop.permute.xlu0 %600
    %v603 = vsel %vm488, %v598, 0
    %v606 = vsel %vm488, %v601, 0
    %608 = vmatprep.subr.bf16.mxu0 0
    %609 = vmatpush1.bf16.xpose.msra.mxu0 %v606
    %610 = vmatprep.subr.bf16.mxu0 0
    %611 = vmatpush1.bf16.xpose.msra.mxu0 0
    %612 = vmatprep.subr.bf16.mxu0 0
    %613 = vmatpush1.bf16.xpose.msra.mxu0 0
    %614 = vmatprep.subr.bf16.mxu0 0
    %615 = vmatpush1.bf16.xpose.msra.mxu0 0
    %616 = vmatprep.subr.bf16.mxu0 0
    %617 = vmatpush1.bf16.xpose.msra.mxu0 0
    %618 = vmatprep.subr.bf16.mxu0 0
    %619 = vmatpush1.bf16.xpose.msra.mxu0 0
    %620 = vmatprep.subr.bf16.mxu0 0
    %621 = vmatpush1.bf16.xpose.msra.mxu0 0
    %622 = vmatprep.subr.bf16.mxu0 0
    %623 = vmatpush1.bf16.xpose.msra.mxu0 0
    %624 = vmatprep.subr.bf16.mxu0 0
    %625 = vmatpush1.bf16.xpose.msra.mxu0 0
    %626 = vmatprep.subr.bf16.mxu0 0
    %627 = vmatpush1.bf16.xpose.msra.mxu0 0
    %628 = vmatprep.subr.bf16.mxu0 0
    %629 = vmatpush1.bf16.xpose.msra.mxu0 0
    %630 = vmatprep.subr.bf16.mxu0 0
    %631 = vmatpush1.bf16.xpose.msra.mxu0 0
    %632 = vmatprep.subr.bf16.mxu0 0
    %633 = vmatpush1.bf16.xpose.msra.mxu0 0
    %634 = vmatprep.subr.bf16.mxu0 0
    %635 = vmatpush1.bf16.xpose.msra.mxu0 0
    %636 = vmatprep.subr.bf16.mxu0 0
    %637 = vmatpush1.bf16.xpose.msra.mxu0 0
    %638 = vmatprep.subr.bf16.mxu0 0
    %639 = vmatpush1.bf16.xpose.msra.mxu0 0
    %640 = vmatprep.mubr.bf16.mxu0 0
    %641 = vmatmul.mubr.bf16.gmra.mrb[0].mxu0 %v603
    %v642 = vpop.f32.mrb[0].mxu0
    %v643 = vadd.f32 0.0, %v642
    %v644 = vpop.f32.mrb[0].mxu0
    %v645 = vpop.f32.mrb[0].mxu0
    %v646 = vpop.f32.mrb[0].mxu0
    %647 = vdwg.mxu0
    %v648 = vmul.f32 %v643, 0.17677669
    %v649 = vsel %vm536, %v648, -inf
    %650 = vmax.xlane.f32.xlu0 %v649
    %v651 = vpop.xlane.xlu0 %650
    %v652 = vsub.f32 %v648, %v651
    %v653 = vmul.f32 %v652, 1.442695
    %v654 = vpow.pop %v653
    %v655 = vsel %vm536, %v654, 0.0
    %656 = vadd.xlane.f32.xlu0 %v655
    %v657 = vpop.xlane.xlu0 %656
    %v658 = vrcp.pop %v657
    %v659 = vmul.f32 %v654, %v658
    %v660 = vpack.c.bf16 %v659, %v659
    %662 = vrot.lane.b32.xlu0 %v487, 96
    %v663 = vpop.permute.xlu0 %662
    %v665 = vsel %vm536, %v660, 0
    %v668 = vsel %vm552, %v663, 0
    %670 = vmatprep.subr.bf16.mxu0 0
    %671 = vmatpush1.bf16.msra.mxu0 %v668
    %672 = vmatprep.subr.bf16.mxu0 0
    %673 = vmatpush1.bf16.msra.mxu0 0
    %674 = vmatprep.subr.bf16.mxu0 0
    %675 = vmatpush1.bf16.msra.mxu0 0
    %676 = vmatprep.subr.bf16.mxu0 0
    %677 = vmatpush1.bf16.msra.mxu0 0
    %678 = vmatprep.subr.bf16.mxu0 0
    %679 = vmatpush1.bf16.msra.mxu0 0
    %680 = vmatprep.subr.bf16.mxu0 0
    %681 = vmatpush1.bf16.msra.mxu0 0
    %682 = vmatprep.subr.bf16.mxu0 0
    %683 = vmatpush1.bf16.msra.mxu0 0
    %684 = vmatprep.subr.bf16.mxu0 0
    %685 = vmatpush1.bf16.msra.mxu0 0
    %686 = vmatprep.subr.bf16.mxu0 0
    %687 = vmatpush1.bf16.msra.mxu0 0
    %688 = vmatprep.subr.bf16.mxu0 0
    %689 = vmatpush1.bf16.msra.mxu0 0
    %690 = vmatprep.subr.bf16.mxu0 0
    %691 = vmatpush1.bf16.msra.mxu0 0
    %692 = vmatprep.subr.bf16.mxu0 0
    %693 = vmatpush1.bf16.msra.mxu0 0
    %694 = vmatprep.subr.bf16.mxu0 0
    %695 = vmatpush1.bf16.msra.mxu0 0
    %696 = vmatprep.subr.bf16.mxu0 0
    %697 = vmatpush1.bf16.msra.mxu0 0
    %698 = vmatprep.subr.bf16.mxu0 0
    %699 = vmatpush1.bf16.msra.mxu0 0
    %700 = vmatprep.subr.bf16.mxu0 0
    %701 = vmatpush1.bf16.msra.mxu0 0
    %702 = vmatprep.mubr.bf16.mxu0 0
    %703 = vmatmul.mubr.bf16.gmra.mrb[0].mxu0 %v665
    %v704 = vpop.f32.mrb[0].mxu0
    %v705 = vadd.f32 0.0, %v704
    %v706 = vpop.f32.mrb[0].mxu0
    %v707 = vpop.f32.mrb[0].mxu0
    %v708 = vpop.f32.mrb[0].mxu0
    %709 = vdwg.mxu0
    %710 = vrot.lane.b32.xlu0 %v485, 64
    %v711 = vpop.permute.xlu0 %710
    %712 = vrot.lane.b32.xlu0 %v486, 64
    %v713 = vpop.permute.xlu0 %712
    %v715 = vsel %vm488, %v711, 0
    %v718 = vsel %vm488, %v713, 0
    %720 = vmatprep.subr.bf16.mxu0 0
    %721 = vmatpush1.bf16.xpose.msra.mxu0 %v718
    %722 = vmatprep.subr.bf16.mxu0 0
    %723 = vmatpush1.bf16.xpose.msra.mxu0 0
    %724 = vmatprep.subr.bf16.mxu0 0
    %725 = vmatpush1.bf16.xpose.msra.mxu0 0
    %726 = vmatprep.subr.bf16.mxu0 0
    %727 = vmatpush1.bf16.xpose.msra.mxu0 0
    %728 = vmatprep.subr.bf16.mxu0 0
    %729 = vmatpush1.bf16.xpose.msra.mxu0 0
    %730 = vmatprep.subr.bf16.mxu0 0
    %731 = vmatpush1.bf16.xpose.msra.mxu0 0
    %732 = vmatprep.subr.bf16.mxu0 0
    %733 = vmatpush1.bf16.xpose.msra.mxu0 0
    %734 = vmatprep.subr.bf16.mxu0 0
    %735 = vmatpush1.bf16.xpose.msra.mxu0 0
    %736 = vmatprep.subr.bf16.mxu0 0
    %737 = vmatpush1.bf16.xpose.msra.mxu0 0
    %738 = vmatprep.subr.bf16.mxu0 0
    %739 = vmatpush1.bf16.xpose.msra.mxu0 0
    %740 = vmatprep.subr.bf16.mxu0 0
    %741 = vmatpush1.bf16.xpose.msra.mxu0 0
    %742 = vmatprep.subr.bf16.mxu0 0
    %743 = vmatpush1.bf16.xpose.msra.mxu0 0
    %744 = vmatprep.subr.bf16.mxu0 0
    %745 = vmatpush1.bf16.xpose.msra.mxu0 0
    %746 = vmatprep.subr.bf16.mxu0 0
    %747 = vmatpush1.bf16.xpose.msra.mxu0 0
    %748 = vmatprep.subr.bf16.mxu0 0
    %749 = vmatpush1.bf16.xpose.msra.mxu0 0
    %750 = vmatprep.subr.bf16.mxu0 0
    %751 = vmatpush1.bf16.xpose.msra.mxu0 0
    %752 = vmatprep.mubr.bf16.mxu0 0
    %753 = vmatmul.mubr.bf16.gmra.mrb[0].mxu0 %v715
    %v754 = vpop.f32.mrb[0].mxu0
    %v755 = vadd.f32 0.0, %v754
    %v756 = vpop.f32.mrb[0].mxu0
    %v757 = vpop.f32.mrb[0].mxu0
    %v758 = vpop.f32.mrb[0].mxu0
    %759 = vdwg.mxu0
    %v760 = vmul.f32 %v755, 0.17677669
    %v761 = vsel %vm536, %v760, -inf
    %762 = vmax.xlane.f32.xlu0 %v761
    %v763 = vpop.xlane.xlu0 %762
    %v764 = vsub.f32 %v760, %v763
    %v765 = vmul.f32 %v764, 1.442695
    %v766 = vpow.pop %v765
    %v767 = vsel %vm536, %v766, 0.0
    %768 = vadd.xlane.f32.xlu0 %v767
    %v769 = vpop.xlane.xlu0 %768
    %v770 = vrcp.pop %v769
    %v771 = vmul.f32 %v766, %v770
    %v772 = vpack.c.bf16 %v771, %v771
    %773 = vrot.lane.b32.xlu0 %v487, 64
    %v774 = vpop.permute.xlu0 %773
    %v776 = vsel %vm536, %v772, 0
    %v779 = vsel %vm552, %v774, 0
    %781 = vmatprep.subr.bf16.mxu0 0
    %782 = vmatpush1.bf16.msra.mxu0 %v779
    %783 = vmatprep.subr.bf16.mxu0 0
    %784 = vmatpush1.bf16.msra.mxu0 0
    %785 = vmatprep.subr.bf16.mxu0 0
    %786 = vmatpush1.bf16.msra.mxu0 0
    %787 = vmatprep.subr.bf16.mxu0 0
    %788 = vmatpush1.bf16.msra.mxu0 0
    %789 = vmatprep.subr.bf16.mxu0 0
    %790 = vmatpush1.bf16.msra.mxu0 0
    %791 = vmatprep.subr.bf16.mxu0 0
    %792 = vmatpush1.bf16.msra.mxu0 0
    %793 = vmatprep.subr.bf16.mxu0 0
    %794 = vmatpush1.bf16.msra.mxu0 0
    %795 = vmatprep.subr.bf16.mxu0 0
    %796 = vmatpush1.bf16.msra.mxu0 0
    %797 = vmatprep.subr.bf16.mxu0 0
    %798 = vmatpush1.bf16.msra.mxu0 0
    %799 = vmatprep.subr.bf16.mxu0 0
    %800 = vmatpush1.bf16.msra.mxu0 0
    %801 = vmatprep.subr.bf16.mxu0 0
    %802 = vmatpush1.bf16.msra.mxu0 0
    %803 = vmatprep.subr.bf16.mxu0 0
    %804 = vmatpush1.bf16.msra.mxu0 0
    %805 = vmatprep.subr.bf16.mxu0 0
    %806 = vmatpush1.bf16.msra.mxu0 0
    %807 = vmatprep.subr.bf16.mxu0 0
    %808 = vmatpush1.bf16.msra.mxu0 0
    %809 = vmatprep.subr.bf16.mxu0 0
    %810 = vmatpush1.bf16.msra.mxu0 0
    %811 = vmatprep.subr.bf16.mxu0 0
    %812 = vmatpush1.bf16.msra.mxu0 0
    %813 = vmatprep.mubr.bf16.mxu0 0
    %814 = vmatmul.mubr.bf16.gmra.mrb[0].mxu0 %v776
    %v815 = vpop.f32.mrb[0].mxu0
    %v816 = vadd.f32 0.0, %v815
    %v817 = vpop.f32.mrb[0].mxu0
    %v818 = vpop.f32.mrb[0].mxu0
    %v819 = vpop.f32.mrb[0].mxu0
    %820 = vdwg.mxu0
    %821 = vrot.lane.b32.xlu0 %v485, 32
    %v822 = vpop.permute.xlu0 %821
    %823 = vrot.lane.b32.xlu0 %v486, 32
    %v824 = vpop.permute.xlu0 %823
    %v826 = vsel %vm488, %v822, 0
    %v829 = vsel %vm488, %v824, 0
    %831 = vmatprep.subr.bf16.mxu0 0
    %832 = vmatpush1.bf16.xpose.msra.mxu0 %v829
    %833 = vmatprep.subr.bf16.mxu0 0
    %834 = vmatpush1.bf16.xpose.msra.mxu0 0
    %835 = vmatprep.subr.bf16.mxu0 0
    %836 = vmatpush1.bf16.xpose.msra.mxu0 0
    %837 = vmatprep.subr.bf16.mxu0 0
    %838 = vmatpush1.bf16.xpose.msra.mxu0 0
    %839 = vmatprep.subr.bf16.mxu0 0
    %840 = vmatpush1.bf16.xpose.msra.mxu0 0
    %841 = vmatprep.subr.bf16.mxu0 0
    %842 = vmatpush1.bf16.xpose.msra.mxu0 0
    %843 = vmatprep.subr.bf16.mxu0 0
    %844 = vmatpush1.bf16.xpose.msra.mxu0 0
    %845 = vmatprep.subr.bf16.mxu0 0
    %846 = vmatpush1.bf16.xpose.msra.mxu0 0
    %847 = vmatprep.subr.bf16.mxu0 0
    %848 = vmatpush1.bf16.xpose.msra.mxu0 0
    %849 = vmatprep.subr.bf16.mxu0 0
    %850 = vmatpush1.bf16.xpose.msra.mxu0 0
    %851 = vmatprep.subr.bf16.mxu0 0
    %852 = vmatpush1.bf16.xpose.msra.mxu0 0
    %853 = vmatprep.subr.bf16.mxu0 0
    %854 = vmatpush1.bf16.xpose.msra.mxu0 0
    %855 = vmatprep.subr.bf16.mxu0 0
    %856 = vmatpush1.bf16.xpose.msra.mxu0 0
    %857 = vmatprep.subr.bf16.mxu0 0
    %858 = vmatpush1.bf16.xpose.msra.mxu0 0
    %859 = vmatprep.subr.bf16.mxu0 0
    %860 = vmatpush1.bf16.xpose.msra.mxu0 0
    %861 = vmatprep.subr.bf16.mxu0 0
    %862 = vmatpush1.bf16.xpose.msra.mxu0 0
    %863 = vmatprep.mubr.bf16.mxu0 0
    %864 = vmatmul.mubr.bf16.gmra.mrb[0].mxu0 %v826
    %v865 = vpop.f32.mrb[0].mxu0
    %v866 = vadd.f32 0.0, %v865
    %v867 = vpop.f32.mrb[0].mxu0
    %v868 = vpop.f32.mrb[0].mxu0
    %v869 = vpop.f32.mrb[0].mxu0
    %870 = vdwg.mxu0
    %v871 = vmul.f32 %v866, 0.17677669
    %v872 = vsel %vm536, %v871, -inf
    %873 = vmax.xlane.f32.xlu0 %v872
    %v874 = vpop.xlane.xlu0 %873
    %v875 = vsub.f32 %v871, %v874
    %v876 = vmul.f32 %v875, 1.442695
    %v877 = vpow.pop %v876
    %v878 = vsel %vm536, %v877, 0.0
    %879 = vadd.xlane.f32.xlu0 %v878
    %v880 = vpop.xlane.xlu0 %879
    %v881 = vrcp.pop %v880
    %v882 = vmul.f32 %v877, %v881
    %v883 = vpack.c.bf16 %v882, %v882
    %884 = vrot.lane.b32.xlu0 %v487, 32
    %v885 = vpop.permute.xlu0 %884
    %v887 = vsel %vm536, %v883, 0
    %v890 = vsel %vm552, %v885, 0
    %892 = vmatprep.subr.bf16.mxu0 0
    %893 = vmatpush1.bf16.msra.mxu0 %v890
    %894 = vmatprep.subr.bf16.mxu0 0
    %895 = vmatpush1.bf16.msra.mxu0 0
    %896 = vmatprep.subr.bf16.mxu0 0
    %897 = vmatpush1.bf16.msra.mxu0 0
    %898 = vmatprep.subr.bf16.mxu0 0
    %899 = vmatpush1.bf16.msra.mxu0 0
    %900 = vmatprep.subr.bf16.mxu0 0
    %901 = vmatpush1.bf16.msra.mxu0 0
    %902 = vmatprep.subr.bf16.mxu0 0
    %903 = vmatpush1.bf16.msra.mxu0 0
    %904 = vmatprep.subr.bf16.mxu0 0
    %905 = vmatpush1.bf16.msra.mxu0 0
    %906 = vmatprep.subr.bf16.mxu0 0
    %907 = vmatpush1.bf16.msra.mxu0 0
    %908 = vmatprep.subr.bf16.mxu0 0
    %909 = vmatpush1.bf16.msra.mxu0 0
    %910 = vmatprep.subr.bf16.mxu0 0
    %911 = vmatpush1.bf16.msra.mxu0 0
    %912 = vmatprep.subr.bf16.mxu0 0
    %913 = vmatpush1.bf16.msra.mxu0 0
    %914 = vmatprep.subr.bf16.mxu0 0
    %915 = vmatpush1.bf16.msra.mxu0 0
    %916 = vmatprep.subr.bf16.mxu0 0
    %917 = vmatpush1.bf16.msra.mxu0 0
    %918 = vmatprep.subr.bf16.mxu0 0
    %919 = vmatpush1.bf16.msra.mxu0 0
    %920 = vmatprep.subr.bf16.mxu0 0
    %921 = vmatpush1.bf16.msra.mxu0 0
    %922 = vmatprep.subr.bf16.mxu0 0
    %923 = vmatpush1.bf16.msra.mxu0 0
    %924 = vmatprep.mubr.bf16.mxu0 0
    %925 = vmatmul.mubr.bf16.gmra.mrb[0].mxu0 %v887
    %v926 = vpop.f32.mrb[0].mxu0
    %v927 = vadd.f32 0.0, %v926
    %v928 = vpop.f32.mrb[0].mxu0
    %v929 = vpop.f32.mrb[0].mxu0
    %v930 = vpop.f32.mrb[0].mxu0
    %931 = vdwg.mxu0
    %933 = vrot.lane.b32.xlu0 %v705, 32
    %v934 = vpop.permute.xlu0 %933
    %937 = vrot.lane.b32.xlu0 %v816, 64
    %v938 = vpop.permute.xlu0 %937
    %941 = vrot.lane.b32.xlu0 %v927, 96
    %v942 = vpop.permute.xlu0 %941
    %v944 = vsel %vm488, %v591, %v934
    %vm945 = vcmask 523264
    %v946 = vsel %vm945, %v944, %v938
    %vm947 = vcmask 785408
    %v948 = vsel %vm947, %v946, %v942
    %v949 = vrot.slane %v485, 4
    %v950 = vrot.slane %v486, 4
    %v952 = vsel %vm488, %v949, 0
    %v955 = vsel %vm488, %v950, 0
    %957 = vmatprep.subr.bf16.mxu0 0
    %958 = vmatpush1.bf16.xpose.msra.mxu0 %v955
    %959 = vmatprep.subr.bf16.mxu0 0
    %960 = vmatpush1.bf16.xpose.msra.mxu0 0
    %961 = vmatprep.subr.bf16.mxu0 0
    %962 = vmatpush1.bf16.xpose.msra.mxu0 0
    %963 = vmatprep.subr.bf16.mxu0 0
    %964 = vmatpush1.bf16.xpose.msra.mxu0 0
    %965 = vmatprep.subr.bf16.mxu0 0
    %966 = vmatpush1.bf16.xpose.msra.mxu0 0
    %967 = vmatprep.subr.bf16.mxu0 0
    %968 = vmatpush1.bf16.xpose.msra.mxu0 0
    %969 = vmatprep.subr.bf16.mxu0 0
    %970 = vmatpush1.bf16.xpose.msra.mxu0 0
    %971 = vmatprep.subr.bf16.mxu0 0
    %972 = vmatpush1.bf16.xpose.msra.mxu0 0
    %973 = vmatprep.subr.bf16.mxu0 0
    %974 = vmatpush1.bf16.xpose.msra.mxu0 0
    %975 = vmatprep.subr.bf16.mxu0 0
    %976 = vmatpush1.bf16.xpose.msra.mxu0 0
    %977 = vmatprep.subr.bf16.mxu0 0
    %978 = vmatpush1.bf16.xpose.msra.mxu0 0
    %979 = vmatprep.subr.bf16.mxu0 0
    %980 = vmatpush1.bf16.xpose.msra.mxu0 0
    %981 = vmatprep.subr.bf16.mxu0 0
    %982 = vmatpush1.bf16.xpose.msra.mxu0 0
    %983 = vmatprep.subr.bf16.mxu0 0
    %984 = vmatpush1.bf16.xpose.msra.mxu0 0
    %985 = vmatprep.subr.bf16.mxu0 0
    %986 = vmatpush1.bf16.xpose.msra.mxu0 0
    %987 = vmatprep.subr.bf16.mxu0 0
    %988 = vmatpush1.bf16.xpose.msra.mxu0 0
    %989 = vmatprep.mubr.bf16.mxu0 0
    %990 = vmatmul.mubr.bf16.gmra.mrb[0].mxu0 %v952
    %v991 = vpop.f32.mrb[0].mxu0
    %v992 = vadd.f32 0.0, %v991
    %v993 = vpop.f32.mrb[0].mxu0
    %v994 = vpop.f32.mrb[0].mxu0
    %v995 = vpop.f32.mrb[0].mxu0
    %996 = vdwg.mxu0
    %v997 = vmul.f32 %v992, 0.17677669
    %v998 = vsel %vm536, %v997, -inf
    %999 = vmax.xlane.f32.xlu0 %v998
    %v1000 = vpop.xlane.xlu0 %999
    %v1001 = vsub.f32 %v997, %v1000
    %v1002 = vmul.f32 %v1001, 1.442695
    %v1003 = vpow.pop %v1002
    %v1004 = vsel %vm536, %v1003, 0.0
    %1005 = vadd.xlane.f32.xlu0 %v1004
    %v1006 = vpop.xlane.xlu0 %1005
    %v1007 = vrcp.pop %v1006
    %v1008 = vmul.f32 %v1003, %v1007
    %v1009 = vpack.c.bf16 %v1008, %v1008
    %v1010 = vrot.slane %v487, 4
    %v1012 = vsel %vm536, %v1009, 0
    %v1015 = vsel %vm552, %v1010, 0
    %1017 = vmatprep.subr.bf16.mxu0 0
    %1018 = vmatpush1.bf16.msra.mxu0 %v1015
    %1019 = vmatprep.subr.bf16.mxu0 0
    %1020 = vmatpush1.bf16.msra.mxu0 0
    %1021 = vmatprep.subr.bf16.mxu0 0
    %1022 = vmatpush1.bf16.msra.mxu0 0
    %1023 = vmatprep.subr.bf16.mxu0 0
    %1024 = vmatpush1.bf16.msra.mxu0 0
    %1025 = vmatprep.subr.bf16.mxu0 0
    %1026 = vmatpush1.bf16.msra.mxu0 0
    %1027 = vmatprep.subr.bf16.mxu0 0
    %1028 = vmatpush1.bf16.msra.mxu0 0
    %1029 = vmatprep.subr.bf16.mxu0 0
    %1030 = vmatpush1.bf16.msra.mxu0 0
    %1031 = vmatprep.subr.bf16.mxu0 0
    %1032 = vmatpush1.bf16.msra.mxu0 0
    %1033 = vmatprep.subr.bf16.mxu0 0
    %1034 = vmatpush1.bf16.msra.mxu0 0
    %1035 = vmatprep.subr.bf16.mxu0 0
    %1036 = vmatpush1.bf16.msra.mxu0 0
    %1037 = vmatprep.subr.bf16.mxu0 0
    %1038 = vmatpush1.bf16.msra.mxu0 0
    %1039 = vmatprep.subr.bf16.mxu0 0
    %1040 = vmatpush1.bf16.msra.mxu0 0
    %1041 = vmatprep.subr.bf16.mxu0 0
    %1042 = vmatpush1.bf16.msra.mxu0 0
    %1043 = vmatprep.subr.bf16.mxu0 0
    %1044 = vmatpush1.bf16.msra.mxu0 0
    %1045 = vmatprep.subr.bf16.mxu0 0
    %1046 = vmatpush1.bf16.msra.mxu0 0
    %1047 = vmatprep.subr.bf16.mxu0 0
    %1048 = vmatpush1.bf16.msra.mxu0 0
    %1049 = vmatprep.mubr.bf16.mxu0 0
    %1050 = vmatmul.mubr.bf16.gmra.mrb[0].mxu0 %v1012
    %v1051 = vpop.f32.mrb[0].mxu0
    %v1052 = vadd.f32 0.0, %v1051
    %v1053 = vpop.f32.mrb[0].mxu0
    %v1054 = vpop.f32.mrb[0].mxu0
    %v1055 = vpop.f32.mrb[0].mxu0
    %1056 = vdwg.mxu0
    %1057 = vrot.lane.b32.xlu0 %v949, 96
    %v1058 = vpop.permute.xlu0 %1057
    %1059 = vrot.lane.b32.xlu0 %v950, 96
    %v1060 = vpop.permute.xlu0 %1059
    %v1062 = vsel %vm488, %v1058, 0
    %v1065 = vsel %vm488, %v1060, 0
    %1067 = vmatprep.subr.bf16.mxu0 0
    %1068 = vmatpush1.bf16.xpose.msra.mxu0 %v1065
    %1069 = vmatprep.subr.bf16.mxu0 0
    %1070 = vmatpush1.bf16.xpose.msra.mxu0 0
    %1071 = vmatprep.subr.bf16.mxu0 0
    %1072 = vmatpush1.bf16.xpose.msra.mxu0 0
    %1073 = vmatprep.subr.bf16.mxu0 0
    %1074 = vmatpush1.bf16.xpose.msra.mxu0 0
    %1075 = vmatprep.subr.bf16.mxu0 0
    %1076 = vmatpush1.bf16.xpose.msra.mxu0 0
    %1077 = vmatprep.subr.bf16.mxu0 0
    %1078 = vmatpush1.bf16.xpose.msra.mxu0 0
    %1079 = vmatprep.subr.bf16.mxu0 0
    %1080 = vmatpush1.bf16.xpose.msra.mxu0 0
    %1081 = vmatprep.subr.bf16.mxu0 0
    %1082 = vmatpush1.bf16.xpose.msra.mxu0 0
    %1083 = vmatprep.subr.bf16.mxu0 0
    %1084 = vmatpush1.bf16.xpose.msra.mxu0 0
    %1085 = vmatprep.subr.bf16.mxu0 0
    %1086 = vmatpush1.bf16.xpose.msra.mxu0 0
    %1087 = vmatprep.subr.bf16.mxu0 0
    %1088 = vmatpush1.bf16.xpose.msra.mxu0 0
    %1089 = vmatprep.subr.bf16.mxu0 0
    %1090 = vmatpush1.bf16.xpose.msra.mxu0 0
    %1091 = vmatprep.subr.bf16.mxu0 0
    %1092 = vmatpush1.bf16.xpose.msra.mxu0 0
    %1093 = vmatprep.subr.bf16.mxu0 0
    %1094 = vmatpush1.bf16.xpose.msra.mxu0 0
    %1095 = vmatprep.subr.bf16.mxu0 0
    %1096 = vmatpush1.bf16.xpose.msra.mxu0 0
    %1097 = vmatprep.subr.bf16.mxu0 0
    %1098 = vmatpush1.bf16.xpose.msra.mxu0 0
    %1099 = vmatprep.mubr.bf16.mxu0 0
    %1100 = vmatmul.mubr.bf16.gmra.mrb[0].mxu0 %v1062
    %v1101 = vpop.f32.mrb[0].mxu0
    %v1102 = vadd.f32 0.0, %v1101
    %v1103 = vpop.f32.mrb[0].mxu0
    %v1104 = vpop.f32.mrb[0].mxu0
    %v1105 = vpop.f32.mrb[0].mxu0
    %1106 = vdwg.mxu0
    %v1107 = vmul.f32 %v1102, 0.17677669
    %v1108 = vsel %vm536, %v1107, -inf
    %1109 = vmax.xlane.f32.xlu0 %v1108
    %v1110 = vpop.xlane.xlu0 %1109
    %v1111 = vsub.f32 %v1107, %v1110
    %v1112 = vmul.f32 %v1111, 1.442695
    %v1113 = vpow.pop %v1112
    %v1114 = vsel %vm536, %v1113, 0.0
    %1115 = vadd.xlane.f32.xlu0 %v1114
    %v1116 = vpop.xlane.xlu0 %1115
    %v1117 = vrcp.pop %v1116
    %v1118 = vmul.f32 %v1113, %v1117
    %v1119 = vpack.c.bf16 %v1118, %v1118
    %1120 = vrot.lane.b32.xlu0 %v1010, 96
    %v1121 = vpop.permute.xlu0 %1120
    %v1123 = vsel %vm536, %v1119, 0
    %v1126 = vsel %vm552, %v1121, 0
    %1128 = vmatprep.subr.bf16.mxu0 0
    %1129 = vmatpush1.bf16.msra.mxu0 %v1126
    %1130 = vmatprep.subr.bf16.mxu0 0
    %1131 = vmatpush1.bf16.msra.mxu0 0
    %1132 = vmatprep.subr.bf16.mxu0 0
    %1133 = vmatpush1.bf16.msra.mxu0 0
    %1134 = vmatprep.subr.bf16.mxu0 0
    %1135 = vmatpush1.bf16.msra.mxu0 0
    %1136 = vmatprep.subr.bf16.mxu0 0
    %1137 = vmatpush1.bf16.msra.mxu0 0
    %1138 = vmatprep.subr.bf16.mxu0 0
    %1139 = vmatpush1.bf16.msra.mxu0 0
    %1140 = vmatprep.subr.bf16.mxu0 0
    %1141 = vmatpush1.bf16.msra.mxu0 0
    %1142 = vmatprep.subr.bf16.mxu0 0
    %1143 = vmatpush1.bf16.msra.mxu0 0
    %1144 = vmatprep.subr.bf16.mxu0 0
    %1145 = vmatpush1.bf16.msra.mxu0 0
    %1146 = vmatprep.subr.bf16.mxu0 0
    %1147 = vmatpush1.bf16.msra.mxu0 0
    %1148 = vmatprep.subr.bf16.mxu0 0
    %1149 = vmatpush1.bf16.msra.mxu0 0
    %1150 = vmatprep.subr.bf16.mxu0 0
    %1151 = vmatpush1.bf16.msra.mxu0 0
    %1152 = vmatprep.subr.bf16.mxu0 0
    %1153 = vmatpush1.bf16.msra.mxu0 0
    %1154 = vmatprep.subr.bf16.mxu0 0
    %1155 = vmatpush1.bf16.msra.mxu0 0
    %1156 = vmatprep.subr.bf16.mxu0 0
    %1157 = vmatpush1.bf16.msra.mxu0 0
    %1158 = vmatprep.subr.bf16.mxu0 0
    %1159 = vmatpush1.bf16.msra.mxu0 0
    %1160 = vmatprep.mubr.bf16.mxu0 0
    %1161 = vmatmul.mubr.bf16.gmra.mrb[0].mxu0 %v1123
    %v1162 = vpop.f32.mrb[0].mxu0
    %v1163 = vadd.f32 0.0, %v1162
    %v1164 = vpop.f32.mrb[0].mxu0
    %v1165 = vpop.f32.mrb[0].mxu0
    %v1166 = vpop.f32.mrb[0].mxu0
    %1167 = vdwg.mxu0
    %1168 = vrot.lane.b32.xlu0 %v949, 64
    %v1169 = vpop.permute.xlu0 %1168
    %1170 = vrot.lane.b32.xlu0 %v950, 64
    %v1171 = vpop.permute.xlu0 %1170
    %v1173 = vsel %vm488, %v1169, 0
    %v1176 = vsel %vm488, %v1171, 0
    %1178 = vmatprep.subr.bf16.mxu0 0
    %1179 = vmatpush1.bf16.xpose.msra.mxu0 %v1176
    %1180 = vmatprep.subr.bf16.mxu0 0
    %1181 = vmatpush1.bf16.xpose.msra.mxu0 0
    %1182 = vmatprep.subr.bf16.mxu0 0
    %1183 = vmatpush1.bf16.xpose.msra.mxu0 0
    %1184 = vmatprep.subr.bf16.mxu0 0
    %1185 = vmatpush1.bf16.xpose.msra.mxu0 0
    %1186 = vmatprep.subr.bf16.mxu0 0
    %1187 = vmatpush1.bf16.xpose.msra.mxu0 0
    %1188 = vmatprep.subr.bf16.mxu0 0
    %1189 = vmatpush1.bf16.xpose.msra.mxu0 0
    %1190 = vmatprep.subr.bf16.mxu0 0
    %1191 = vmatpush1.bf16.xpose.msra.mxu0 0
    %1192 = vmatprep.subr.bf16.mxu0 0
    %1193 = vmatpush1.bf16.xpose.msra.mxu0 0
    %1194 = vmatprep.subr.bf16.mxu0 0
    %1195 = vmatpush1.bf16.xpose.msra.mxu0 0
    %1196 = vmatprep.subr.bf16.mxu0 0
    %1197 = vmatpush1.bf16.xpose.msra.mxu0 0
    %1198 = vmatprep.subr.bf16.mxu0 0
    %1199 = vmatpush1.bf16.xpose.msra.mxu0 0
    %1200 = vmatprep.subr.bf16.mxu0 0
    %1201 = vmatpush1.bf16.xpose.msra.mxu0 0
    %1202 = vmatprep.subr.bf16.mxu0 0
    %1203 = vmatpush1.bf16.xpose.msra.mxu0 0
    %1204 = vmatprep.subr.bf16.mxu0 0
    %1205 = vmatpush1.bf16.xpose.msra.mxu0 0
    %1206 = vmatprep.subr.bf16.mxu0 0
    %1207 = vmatpush1.bf16.xpose.msra.mxu0 0
    %1208 = vmatprep.subr.bf16.mxu0 0
    %1209 = vmatpush1.bf16.xpose.msra.mxu0 0
    %1210 = vmatprep.mubr.bf16.mxu0 0
    %1211 = vmatmul.mubr.bf16.gmra.mrb[0].mxu0 %v1173
    %v1212 = vpop.f32.mrb[0].mxu0
    %v1213 = vadd.f32 0.0, %v1212
    %v1214 = vpop.f32.mrb[0].mxu0
    %v1215 = vpop.f32.mrb[0].mxu0
    %v1216 = vpop.f32.mrb[0].mxu0
    %1217 = vdwg.mxu0
    %v1218 = vmul.f32 %v1213, 0.17677669
    %v1219 = vsel %vm536, %v1218, -inf
    %1220 = vmax.xlane.f32.xlu0 %v1219
    %v1221 = vpop.xlane.xlu0 %1220
    %v1222 = vsub.f32 %v1218, %v1221
    %v1223 = vmul.f32 %v1222, 1.442695
    %v1224 = vpow.pop %v1223
    %v1225 = vsel %vm536, %v1224, 0.0
    %1226 = vadd.xlane.f32.xlu0 %v1225
    %v1227 = vpop.xlane.xlu0 %1226
    %v1228 = vrcp.pop %v1227
    %v1229 = vmul.f32 %v1224, %v1228
    %v1230 = vpack.c.bf16 %v1229, %v1229
    %1231 = vrot.lane.b32.xlu0 %v1010, 64
    %v1232 = vpop.permute.xlu0 %1231
    %v1234 = vsel %vm536, %v1230, 0
    %v1237 = vsel %vm552, %v1232, 0
    %1239 = vmatprep.subr.bf16.mxu0 0
    %1240 = vmatpush1.bf16.msra.mxu0 %v1237
    %1241 = vmatprep.subr.bf16.mxu0 0
    %1242 = vmatpush1.bf16.msra.mxu0 0
    %1243 = vmatprep.subr.bf16.mxu0 0
    %1244 = vmatpush1.bf16.msra.mxu0 0
    %1245 = vmatprep.subr.bf16.mxu0 0
    %1246 = vmatpush1.bf16.msra.mxu0 0
    %1247 = vmatprep.subr.bf16.mxu0 0
    %1248 = vmatpush1.bf16.msra.mxu0 0
    %1249 = vmatprep.subr.bf16.mxu0 0
    %1250 = vmatpush1.bf16.msra.mxu0 0
    %1251 = vmatprep.subr.bf16.mxu0 0
    %1252 = vmatpush1.bf16.msra.mxu0 0
    %1253 = vmatprep.subr.bf16.mxu0 0
    %1254 = vmatpush1.bf16.msra.mxu0 0
    %1255 = vmatprep.subr.bf16.mxu0 0
    %1256 = vmatpush1.bf16.msra.mxu0 0
    %1257 = vmatprep.subr.bf16.mxu0 0
    %1258 = vmatpush1.bf16.msra.mxu0 0
    %1259 = vmatprep.subr.bf16.mxu0 0
    %1260 = vmatpush1.bf16.msra.mxu0 0
    %1261 = vmatprep.subr.bf16.mxu0 0
    %1262 = vmatpush1.bf16.msra.mxu0 0
    %1263 = vmatprep.subr.bf16.mxu0 0
    %1264 = vmatpush1.bf16.msra.mxu0 0
    %1265 = vmatprep.subr.bf16.mxu0 0
    %1266 = vmatpush1.bf16.msra.mxu0 0
    %1267 = vmatprep.subr.bf16.mxu0 0
    %1268 = vmatpush1.bf16.msra.mxu0 0
    %1269 = vmatprep.subr.bf16.mxu0 0
    %1270 = vmatpush1.bf16.msra.mxu0 0
    %1271 = vmatprep.mubr.bf16.mxu0 0
    %1272 = vmatmul.mubr.bf16.gmra.mrb[0].mxu0 %v1234
    %v1273 = vpop.f32.mrb[0].mxu0
    %v1274 = vadd.f32 0.0, %v1273
    %v1275 = vpop.f32.mrb[0].mxu0
    %v1276 = vpop.f32.mrb[0].mxu0
    %v1277 = vpop.f32.mrb[0].mxu0
    %1278 = vdwg.mxu0
    %1279 = vrot.lane.b32.xlu0 %v949, 32
    %v1280 = vpop.permute.xlu0 %1279
    %1281 = vrot.lane.b32.xlu0 %v950, 32
    %v1282 = vpop.permute.xlu0 %1281
    %v1284 = vsel %vm488, %v1280, 0
    %v1287 = vsel %vm488, %v1282, 0
    %1289 = vmatprep.subr.bf16.mxu0 0
    %1290 = vmatpush1.bf16.xpose.msra.mxu0 %v1287
    %1291 = vmatprep.subr.bf16.mxu0 0
    %1292 = vmatpush1.bf16.xpose.msra.mxu0 0
    %1293 = vmatprep.subr.bf16.mxu0 0
    %1294 = vmatpush1.bf16.xpose.msra.mxu0 0
    %1295 = vmatprep.subr.bf16.mxu0 0
    %1296 = vmatpush1.bf16.xpose.msra.mxu0 0
    %1297 = vmatprep.subr.bf16.mxu0 0
    %1298 = vmatpush1.bf16.xpose.msra.mxu0 0
    %1299 = vmatprep.subr.bf16.mxu0 0
    %1300 = vmatpush1.bf16.xpose.msra.mxu0 0
    %1301 = vmatprep.subr.bf16.mxu0 0
    %1302 = vmatpush1.bf16.xpose.msra.mxu0 0
    %1303 = vmatprep.subr.bf16.mxu0 0
    %1304 = vmatpush1.bf16.xpose.msra.mxu0 0
    %1305 = vmatprep.subr.bf16.mxu0 0
    %1306 = vmatpush1.bf16.xpose.msra.mxu0 0
    %1307 = vmatprep.subr.bf16.mxu0 0
    %1308 = vmatpush1.bf16.xpose.msra.mxu0 0
    %1309 = vmatprep.subr.bf16.mxu0 0
    %1310 = vmatpush1.bf16.xpose.msra.mxu0 0
    %1311 = vmatprep.subr.bf16.mxu0 0
    %1312 = vmatpush1.bf16.xpose.msra.mxu0 0
    %1313 = vmatprep.subr.bf16.mxu0 0
    %1314 = vmatpush1.bf16.xpose.msra.mxu0 0
    %1315 = vmatprep.subr.bf16.mxu0 0
    %1316 = vmatpush1.bf16.xpose.msra.mxu0 0
    %1317 = vmatprep.subr.bf16.mxu0 0
    %1318 = vmatpush1.bf16.xpose.msra.mxu0 0
    %1319 = vmatprep.subr.bf16.mxu0 0
    %1320 = vmatpush1.bf16.xpose.msra.mxu0 0
    %1321 = vmatprep.mubr.bf16.mxu0 0
    %1322 = vmatmul.mubr.bf16.gmra.mrb[0].mxu0 %v1284
    %v1323 = vpop.f32.mrb[0].mxu0
    %v1324 = vadd.f32 0.0, %v1323
    %v1325 = vpop.f32.mrb[0].mxu0
    %v1326 = vpop.f32.mrb[0].mxu0
    %v1327 = vpop.f32.mrb[0].mxu0
    %1328 = vdwg.mxu0
    %v1329 = vmul.f32 %v1324, 0.17677669
    %v1330 = vsel %vm536, %v1329, -inf
    %1331 = vmax.xlane.f32.xlu0 %v1330
    %v1332 = vpop.xlane.xlu0 %1331
    %v1333 = vsub.f32 %v1329, %v1332
    %v1334 = vmul.f32 %v1333, 1.442695
    %v1335 = vpow.pop %v1334
    %v1336 = vsel %vm536, %v1335, 0.0
    %1337 = vadd.xlane.f32.xlu0 %v1336
    %v1338 = vpop.xlane.xlu0 %1337
    %v1339 = vrcp.pop %v1338
    %v1340 = vmul.f32 %v1335, %v1339
    %v1341 = vpack.c.bf16 %v1340, %v1340
    %1342 = vrot.lane.b32.xlu0 %v1010, 32
    %v1343 = vpop.permute.xlu0 %1342
    %v1345 = vsel %vm536, %v1341, 0
    %v1348 = vsel %vm552, %v1343, 0
    %1350 = vmatprep.subr.bf16.mxu0 0
    %1351 = vmatpush1.bf16.msra.mxu0 %v1348
    %1352 = vmatprep.subr.bf16.mxu0 0
    %1353 = vmatpush1.bf16.msra.mxu0 0
    %1354 = vmatprep.subr.bf16.mxu0 0
    %1355 = vmatpush1.bf16.msra.mxu0 0
    %1356 = vmatprep.subr.bf16.mxu0 0
    %1357 = vmatpush1.bf16.msra.mxu0 0
    %1358 = vmatprep.subr.bf16.mxu0 0
    %1359 = vmatpush1.bf16.msra.mxu0 0
    %1360 = vmatprep.subr.bf16.mxu0 0
    %1361 = vmatpush1.bf16.msra.mxu0 0
    %1362 = vmatprep.subr.bf16.mxu0 0
    %1363 = vmatpush1.bf16.msra.mxu0 0
    %1364 = vmatprep.subr.bf16.mxu0 0
    %1365 = vmatpush1.bf16.msra.mxu0 0
    %1366 = vmatprep.subr.bf16.mxu0 0
    %1367 = vmatpush1.bf16.msra.mxu0 0
    %1368 = vmatprep.subr.bf16.mxu0 0
    %1369 = vmatpush1.bf16.msra.mxu0 0
    %1370 = vmatprep.subr.bf16.mxu0 0
    %1371 = vmatpush1.bf16.msra.mxu0 0
    %1372 = vmatprep.subr.bf16.mxu0 0
    %1373 = vmatpush1.bf16.msra.mxu0 0
    %1374 = vmatprep.subr.bf16.mxu0 0
    %1375 = vmatpush1.bf16.msra.mxu0 0
    %1376 = vmatprep.subr.bf16.mxu0 0
    %1377 = vmatpush1.bf16.msra.mxu0 0
    %1378 = vmatprep.subr.bf16.mxu0 0
    %1379 = vmatpush1.bf16.msra.mxu0 0
    %1380 = vmatprep.subr.bf16.mxu0 0
    %1381 = vmatpush1.bf16.msra.mxu0 0
    %1382 = vmatprep.mubr.bf16.mxu0 0
    %1383 = vmatmul.mubr.bf16.gmra.mrb[0].mxu0 %v1345
    %v1384 = vpop.f32.mrb[0].mxu0
    %v1385 = vadd.f32 0.0, %v1384
    %v1386 = vpop.f32.mrb[0].mxu0
    %v1387 = vpop.f32.mrb[0].mxu0
    %v1388 = vpop.f32.mrb[0].mxu0
    %1389 = vdwg.mxu0
    %1391 = vrot.lane.b32.xlu0 %v1163, 32
    %v1392 = vpop.permute.xlu0 %1391
    %1395 = vrot.lane.b32.xlu0 %v1274, 64
    %v1396 = vpop.permute.xlu0 %1395
    %1399 = vrot.lane.b32.xlu0 %v1385, 96
    %v1400 = vpop.permute.xlu0 %1399
    %v1402 = vsel %vm488, %v1052, %v1392
    %v1403 = vsel %vm945, %v1402, %v1396
    %v1404 = vsel %vm947, %v1403, %v1400
    %v1405 = vpack.c.bf16 %v1404, %v948
    %v1406 = vld [vmem:[#allocation7] sm:$0xf]
    %v1407 = vld [vmem:[#allocation7 + $0x4] sm:$0xf]
    %v1408 = vld [vmem:[#allocation7 + $0x8] sm:$0xf]
    %v1409 = vld [vmem:[#allocation7 + $0xc] sm:$0xf]
    %v1410 = vld [vmem:[#allocation7 + $0x10] sm:$0xf]
    %v1411 = vld [vmem:[#allocation7 + $0x14] sm:$0xf]
    %v1412 = vld [vmem:[#allocation7 + $0x18] sm:$0xf]
    %v1413 = vld [vmem:[#allocation7 + $0x1c] sm:$0xf]
    %v1414 = vld [vmem:[#allocation7 + $0x20] sm:$0xf]
    %v1415 = vld [vmem:[#allocation7 + $0x24] sm:$0xf]
    %v1416 = vld [vmem:[#allocation7 + $0x28] sm:$0xf]
    %v1417 = vld [vmem:[#allocation7 + $0x2c] sm:$0xf]
    %v1418 = vld [vmem:[#allocation7 + $0x30] sm:$0xf]
    %v1419 = vld [vmem:[#allocation7 + $0x34] sm:$0xf]
    %v1420 = vld [vmem:[#allocation7 + $0x38] sm:$0xf]
    %v1421 = vld [vmem:[#allocation7 + $0x3c] sm:$0xf]
    %v1422 = vld [vmem:[#allocation8] sm:$0x1]
    %v1424 = vlaneseq
    %v1425 = vshrl.u32 %v1424, 7
    %v1426 = vsub.s32 0, %v1425
    %v1427 = vrot.slane %v1422, %v1426
    %v1445 = vunpack.c.l.b16 %v1406
    %v1446 = vunpack.c.l.b16 %v1407
    %v1447 = vunpack.c.l.b16 %v1408
    %v1448 = vunpack.c.l.b16 %v1409
    %v1449 = vunpack.c.l.b16 %v1410
    %v1450 = vunpack.c.l.b16 %v1411
    %v1451 = vunpack.c.l.b16 %v1412
    %v1452 = vunpack.c.l.b16 %v1413
    %v1453 = vunpack.c.l.b16 %v1414
    %v1454 = vunpack.c.l.b16 %v1415
    %v1455 = vunpack.c.l.b16 %v1416
    %v1456 = vunpack.c.l.b16 %v1417
    %v1457 = vunpack.c.l.b16 %v1418
    %v1458 = vunpack.c.l.b16 %v1419
    %v1459 = vunpack.c.l.b16 %v1420
    %v1460 = vunpack.c.l.b16 %v1421
    %v1461 = vpack.c.b16 %v1446, %v1445
    %v1462 = vpack.c.b16 %v1448, %v1447
    %v1463 = vpack.c.b16 %v1450, %v1449
    %v1464 = vpack.c.b16 %v1452, %v1451
    %v1465 = vpack.c.b16 %v1454, %v1453
    %v1466 = vpack.c.b16 %v1456, %v1455
    %v1467 = vpack.c.b16 %v1458, %v1457
    %v1468 = vpack.c.b16 %v1460, %v1459
    %1477 = vmatprep.subr.bf16.mxu0 0
    %1478 = vmatpush1.bf16.msra.mxu0 %v1461
    %1479 = vmatprep.subr.bf16.mxu0 0
    %1480 = vmatpush1.bf16.msra.mxu0 %v1462
    %1481 = vmatprep.subr.bf16.mxu0 0
    %1482 = vmatpush1.bf16.msra.mxu0 %v1463
    %1483 = vmatprep.subr.bf16.mxu0 0
    %1484 = vmatpush1.bf16.msra.mxu0 %v1464
    %1485 = vmatprep.subr.bf16.mxu0 0
    %1486 = vmatpush1.bf16.msra.mxu0 %v1465
    %1487 = vmatprep.subr.bf16.mxu0 0
    %1488 = vmatpush1.bf16.msra.mxu0 %v1466
    %1489 = vmatprep.subr.bf16.mxu0 0
    %1490 = vmatpush1.bf16.msra.mxu0 %v1467
    %1491 = vmatprep.subr.bf16.mxu0 0
    %1492 = vmatpush1.bf16.msra.mxu0 %v1468
    %1493 = vmatprep.subr.bf16.mxu0 0
    %1494 = vmatpush1.bf16.msra.mxu0 0
    %1495 = vmatprep.subr.bf16.mxu0 0
    %1496 = vmatpush1.bf16.msra.mxu0 0
    %1497 = vmatprep.subr.bf16.mxu0 0
    %1498 = vmatpush1.bf16.msra.mxu0 0
    %1499 = vmatprep.subr.bf16.mxu0 0
    %1500 = vmatpush1.bf16.msra.mxu0 0
    %1501 = vmatprep.subr.bf16.mxu0 0
    %1502 = vmatpush1.bf16.msra.mxu0 0
    %1503 = vmatprep.subr.bf16.mxu0 0
    %1504 = vmatpush1.bf16.msra.mxu0 0
    %1505 = vmatprep.subr.bf16.mxu0 0
    %1506 = vmatpush1.bf16.msra.mxu0 0
    %1507 = vmatprep.subr.bf16.mxu0 0
    %1508 = vmatpush1.bf16.msra.mxu0 0
    %1509 = vmatprep.mubr.bf16.mxu0 0
    %1510 = vmatmul.mubr.bf16.gmra.mrb[0].mxu0 %v1405
    %v1511 = vpop.f32.mrb[0].mxu0
    %v1512 = vadd.f32 %v1427, %v1511
    %v1513 = vpop.f32.mrb[0].mxu0
    %v1514 = vpop.f32.mrb[0].mxu0
    %v1515 = vadd.f32 %v1427, %v1514
    %v1516 = vpop.f32.mrb[0].mxu0
    %1517 = vdwg.mxu0
    %v1518 = vadd.f32 %v221, %v1512
    %v1519 = vadd.f32 %v222, %v1515
    %v1520 = vld [vmem:[#allocation10] sm:$0x1]
    %v1521 = vld [vmem:[#allocation11] sm:$0x1]
    %1522 = vadd.xlane.f32.xlu0 %v1518
    %v1523 = vpop.xlane.xlu0 %1522
    %1524 = vadd.xlane.f32.xlu0 %v1519
    %v1525 = vpop.xlane.xlu0 %1524
    %v1526 = vrcp.pop 128.0
    %v1527 = vmul.f32 %v1523, %v1526
    %v1528 = vmul.f32 %v1525, %v1526
    %v1529 = vsub.f32 %v1518, %v1527
    %v1530 = vsub.f32 %v1519, %v1528
    %v1531 = vmul.f32 %v1529, %v1529
    %v1532 = vmul.f32 %v1530, %v1530
    %1533 = vadd.xlane.f32.xlu0 %v1531
    %v1534 = vpop.xlane.xlu0 %1533
    %1535 = vadd.xlane.f32.xlu0 %v1532
    %v1536 = vpop.xlane.xlu0 %1535
    %v1537 = vmul.f32 %v1534, %v1526
    %v1538 = vmul.f32 %v1536, %v1526
    %v1539 = vadd.f32 %v1537, 1e-05
    %v1540 = vadd.f32 %v1538, 1e-05
    %v1541 = vrsqrt.pop %v1539
    %v1542 = vrsqrt.pop %v1540
    %v1543 = vmul.f32 %v1529, %v1541
    %v1544 = vmul.f32 %v1530, %v1542
    %v1546 = vlaneseq
    %v1547 = vshrl.u32 %v1546, 7
    %v1548 = vsub.s32 0, %v1547
    %v1549 = vrot.slane %v1520, %v1548
    %v1551 = vmul.f32 %v1543, %v1549
    %v1552 = vmul.f32 %v1544, %v1549
    %v1554 = vlaneseq
    %v1555 = vshrl.u32 %v1554, 7
    %v1556 = vsub.s32 0, %v1555
    %v1557 = vrot.slane %v1521, %v1556
    %v1559 = vadd.f32 %v1551, %v1557
    %v1560 = vadd.f32 %v1552, %v1557
    %v1561 = vpack.c.bf16 %v1560, %v1559
    %v1562 = vld [vmem:[%s8] sm:$0xff]
    %v1563 = vld [vmem:[%s8 + $0x8] sm:$0xff]
    %v1564 = vld [vmem:[%s8 + $0x10] sm:$0xff]
    %v1565 = vld [vmem:[%s8 + $0x18] sm:$0xff]
    %v1566 = vld [vmem:[%s8 + $0x20] sm:$0xff]
    %v1567 = vld [vmem:[%s8 + $0x28] sm:$0xff]
    %v1568 = vld [vmem:[%s8 + $0x30] sm:$0xff]
    %v1569 = vld [vmem:[%s8 + $0x38] sm:$0xff]
    %v1570 = vld [vmem:[%s8 + $0x40] sm:$0xff]
    %v1571 = vld [vmem:[%s8 + $0x48] sm:$0xff]
    %v1572 = vld [vmem:[%s8 + $0x50] sm:$0xff]
    %v1573 = vld [vmem:[%s8 + $0x58] sm:$0xff]
    %v1574 = vld [vmem:[%s8 + $0x60] sm:$0xff]
    %v1575 = vld [vmem:[%s8 + $0x68] sm:$0xff]
    %v1576 = vld [vmem:[%s8 + $0x70] sm:$0xff]
    %v1577 = vld [vmem:[%s8 + $0x78] sm:$0xff]
    %v1578 = vld [vmem:[%s9] sm:$0x3]
    %v1580 = vlaneseq
    %v1581 = vshrl.u32 %v1580, 7
    %v1582 = vsub.s32 0, %v1581
    %v1583 = vrot.slane %v1578, %v1582
    %v1584 = vlaneseq
    %v1585 = vshrl.u32 %v1584, 7
    %v1586 = vsub.s32 1, %v1585
    %v1587 = vrot.slane %v1578, %v1586
    %v1606 = vunpack.c.l.b16 %v1562
    %v1607 = vunpack.c.h.b16 %v1562
    %v1608 = vunpack.c.l.b16 %v1563
    %v1609 = vunpack.c.h.b16 %v1563
    %v1610 = vunpack.c.l.b16 %v1564
    %v1611 = vunpack.c.h.b16 %v1564
    %v1612 = vunpack.c.l.b16 %v1565
    %v1613 = vunpack.c.h.b16 %v1565
    %v1614 = vunpack.c.l.b16 %v1566
    %v1615 = vunpack.c.h.b16 %v1566
    %v1616 = vunpack.c.l.b16 %v1567
    %v1617 = vunpack.c.h.b16 %v1567
    %v1618 = vunpack.c.l.b16 %v1568
    %v1619 = vunpack.c.h.b16 %v1568
    %v1620 = vunpack.c.l.b16 %v1569
    %v1621 = vunpack.c.h.b16 %v1569
    %v1622 = vunpack.c.l.b16 %v1570
    %v1623 = vunpack.c.h.b16 %v1570
    %v1624 = vunpack.c.l.b16 %v1571
    %v1625 = vunpack.c.h.b16 %v1571
    %v1626 = vunpack.c.l.b16 %v1572
    %v1627 = vunpack.c.h.b16 %v1572
    %v1628 = vunpack.c.l.b16 %v1573
    %v1629 = vunpack.c.h.b16 %v1573
    %v1630 = vunpack.c.l.b16 %v1574
    %v1631 = vunpack.c.h.b16 %v1574
    %v1632 = vunpack.c.l.b16 %v1575
    %v1633 = vunpack.c.h.b16 %v1575
    %v1634 = vunpack.c.l.b16 %v1576
    %v1635 = vunpack.c.h.b16 %v1576
    %v1636 = vunpack.c.l.b16 %v1577
    %v1637 = vunpack.c.h.b16 %v1577
    %v1638 = vpack.c.b16 %v1608, %v1606
    %v1639 = vpack.c.b16 %v1609, %v1607
    %v1640 = vpack.c.b16 %v1612, %v1610
    %v1641 = vpack.c.b16 %v1613, %v1611
    %v1642 = vpack.c.b16 %v1616, %v1614
    %v1643 = vpack.c.b16 %v1617, %v1615
    %v1644 = vpack.c.b16 %v1620, %v1618
    %v1645 = vpack.c.b16 %v1621, %v1619
    %v1646 = vpack.c.b16 %v1624, %v1622
    %v1647 = vpack.c.b16 %v1625, %v1623
    %v1648 = vpack.c.b16 %v1628, %v1626
    %v1649 = vpack.c.b16 %v1629, %v1627
    %v1650 = vpack.c.b16 %v1632, %v1630
    %v1651 = vpack.c.b16 %v1633, %v1631
    %v1652 = vpack.c.b16 %v1636, %v1634
    %v1653 = vpack.c.b16 %v1637, %v1635
    %1670 = vmatprep.subr.bf16.mxu0 %v1639
    %1671 = vmatpush1.bf16.msra.mxu0 %v1638
    %1672 = vmatprep.subr.bf16.mxu0 %v1641
    %1673 = vmatpush1.bf16.msra.mxu0 %v1640
    %1674 = vmatprep.subr.bf16.mxu0 %v1643
    %1675 = vmatpush1.bf16.msra.mxu0 %v1642
    %1676 = vmatprep.subr.bf16.mxu0 %v1645
    %1677 = vmatpush1.bf16.msra.mxu0 %v1644
    %1678 = vmatprep.subr.bf16.mxu0 %v1647
    %1679 = vmatpush1.bf16.msra.mxu0 %v1646
    %1680 = vmatprep.subr.bf16.mxu0 %v1649
    %1681 = vmatpush1.bf16.msra.mxu0 %v1648
    %1682 = vmatprep.subr.bf16.mxu0 %v1651
    %1683 = vmatpush1.bf16.msra.mxu0 %v1650
    %1684 = vmatprep.subr.bf16.mxu0 %v1653
    %1685 = vmatpush1.bf16.msra.mxu0 %v1652
    %1686 = vmatprep.subr.bf16.mxu0 0
    %1687 = vmatpush1.bf16.msra.mxu0 0
    %1688 = vmatprep.subr.bf16.mxu0 0
    %1689 = vmatpush1.bf16.msra.mxu0 0
    %1690 = vmatprep.subr.bf16.mxu0 0
    %1691 = vmatpush1.bf16.msra.mxu0 0
    %1692 = vmatprep.subr.bf16.mxu0 0
    %1693 = vmatpush1.bf16.msra.mxu0 0
    %1694 = vmatprep.subr.bf16.mxu0 0
    %1695 = vmatpush1.bf16.msra.mxu0 0
    %1696 = vmatprep.subr.bf16.mxu0 0
    %1697 = vmatpush1.bf16.msra.mxu0 0
    %1698 = vmatprep.subr.bf16.mxu0 0
    %1699 = vmatpush1.bf16.msra.mxu0 0
    %1700 = vmatprep.subr.bf16.mxu0 0
    %1701 = vmatpush1.bf16.msra.mxu0 0
    %1702 = vmatprep.mubr.bf16.mxu0 0
    %1703 = vmatmul.mubr.bf16.gmra.mrb[0].mxu0 %v1561
    %v1704 = vpop.f32.mrb[0].mxu0
    %v1705 = vadd.f32 %v1583, %v1704
    %v1706 = vpop.f32.mrb[0].mxu0
    %v1707 = vadd.f32 %v1587, %v1706
    %v1708 = vpop.f32.mrb[0].mxu0
    %v1709 = vadd.f32 %v1583, %v1708
    %v1710 = vpop.f32.mrb[0].mxu0
    %v1711 = vadd.f32 %v1587, %v1710
    %1712 = vdwg.mxu0
    %v1713 = vmax.f32 %v1705, 0.0
    %v1714 = vmax.f32 %v1707, 0.0
    %v1715 = vmax.f32 %v1709, 0.0
    %v1716 = vmax.f32 %v1711, 0.0
    %v1717 = vpack.c.bf16 %v1715, %v1713
    %v1718 = vpack.c.bf16 %v1716, %v1714
    %v1719 = vld [vmem:[#allocation13] sm:$0xf]
    %v1720 = vld [vmem:[#allocation13 + $0x4] sm:$0xf]
    %v1721 = vld [vmem:[#allocation13 + $0x8] sm:$0xf]
    %v1722 = vld [vmem:[#allocation13 + $0xc] sm:$0xf]
    %v1723 = vld [vmem:[#allocation13 + $0x10] sm:$0xf]
    %v1724 = vld [vmem:[#allocation13 + $0x14] sm:$0xf]
    %v1725 = vld [vmem:[#allocation13 + $0x18] sm:$0xf]
    %v1726 = vld [vmem:[#allocation13 + $0x1c] sm:$0xf]
    %v1727 = vld [vmem:[#allocation13 + $0x20] sm:$0xf]
    %v1728 = vld [vmem:[#allocation13 + $0x24] sm:$0xf]
    %v1729 = vld [vmem:[#allocation13 + $0x28] sm:$0xf]
    %v1730 = vld [vmem:[#allocation13 + $0x2c] sm:$0xf]
    %v1731 = vld [vmem:[#allocation13 + $0x30] sm:$0xf]
    %v1732 = vld [vmem:[#allocation13 + $0x34] sm:$0xf]
    %v1733 = vld [vmem:[#allocation13 + $0x38] sm:$0xf]
    %v1734 = vld [vmem:[#allocation13 + $0x3c] sm:$0xf]
    %v1735 = vld [vmem:[#allocation13 + $0x40] sm:$0xf]
    %v1736 = vld [vmem:[#allocation13 + $0x44] sm:$0xf]
    %v1737 = vld [vmem:[#allocation13 + $0x48] sm:$0xf]
    %v1738 = vld [vmem:[#allocation13 + $0x4c] sm:$0xf]
    %v1739 = vld [vmem:[#allocation13 + $0x50] sm:$0xf]
    %v1740 = vld [vmem:[#allocation13 + $0x54] sm:$0xf]
    %v1741 = vld [vmem:[#allocation13 + $0x58] sm:$0xf]
    %v1742 = vld [vmem:[#allocation13 + $0x5c] sm:$0xf]
    %v1743 = vld [vmem:[#allocation13 + $0x60] sm:$0xf]
    %v1744 = vld [vmem:[#allocation13 + $0x64] sm:$0xf]
    %v1745 = vld [vmem:[#allocation13 + $0x68] sm:$0xf]
    %v1746 = vld [vmem:[#allocation13 + $0x6c] sm:$0xf]
    %v1747 = vld [vmem:[#allocation13 + $0x70] sm:$0xf]
    %v1748 = vld [vmem:[#allocation13 + $0x74] sm:$0xf]
    %v1749 = vld [vmem:[#allocation13 + $0x78] sm:$0xf]
    %v1750 = vld [vmem:[#allocation13 + $0x7c] sm:$0xf]
    %v1751 = vld [vmem:[#allocation14] sm:$0x1]
    %v1753 = vlaneseq
    %v1754 = vshrl.u32 %v1753, 7
    %v1755 = vsub.s32 0, %v1754
    %v1756 = vrot.slane %v1751, %v1755
    %v1790 = vunpack.c.l.b16 %v1719
    %v1791 = vunpack.c.l.b16 %v1720
    %v1792 = vunpack.c.l.b16 %v1721
    %v1793 = vunpack.c.l.b16 %v1722
    %v1794 = vunpack.c.l.b16 %v1723
    %v1795 = vunpack.c.l.b16 %v1724
    %v1796 = vunpack.c.l.b16 %v1725
    %v1797 = vunpack.c.l.b16 %v1726
    %v1798 = vunpack.c.l.b16 %v1727
    %v1799 = vunpack.c.l.b16 %v1728
    %v1800 = vunpack.c.l.b16 %v1729
    %v1801 = vunpack.c.l.b16 %v1730
    %v1802 = vunpack.c.l.b16 %v1731
    %v1803 = vunpack.c.l.b16 %v1732
    %v1804 = vunpack.c.l.b16 %v1733
    %v1805 = vunpack.c.l.b16 %v1734
    %v1806 = vunpack.c.l.b16 %v1735
    %v1807 = vunpack.c.l.b16 %v1736
    %v1808 = vunpack.c.l.b16 %v1737
    %v1809 = vunpack.c.l.b16 %v1738
    %v1810 = vunpack.c.l.b16 %v1739
    %v1811 = vunpack.c.l.b16 %v1740
    %v1812 = vunpack.c.l.b16 %v1741
    %v1813 = vunpack.c.l.b16 %v1742
    %v1814 = vunpack.c.l.b16 %v1743
    %v1815 = vunpack.c.l.b16 %v1744
    %v1816 = vunpack.c.l.b16 %v1745
    %v1817 = vunpack.c.l.b16 %v1746
    %v1818 = vunpack.c.l.b16 %v1747
    %v1819 = vunpack.c.l.b16 %v1748
    %v1820 = vunpack.c.l.b16 %v1749
    %v1821 = vunpack.c.l.b16 %v1750
    %v1822 = vpack.c.b16 %v1791, %v1790
    %v1823 = vpack.c.b16 %v1793, %v1792
    %v1824 = vpack.c.b16 %v1795, %v1794
    %v1825 = vpack.c.b16 %v1797, %v1796
    %v1826 = vpack.c.b16 %v1799, %v1798
    %v1827 = vpack.c.b16 %v1801, %v1800
    %v1828 = vpack.c.b16 %v1803, %v1802
    %v1829 = vpack.c.b16 %v1805, %v1804
    %v1830 = vpack.c.b16 %v1807, %v1806
    %v1831 = vpack.c.b16 %v1809, %v1808
    %v1832 = vpack.c.b16 %v1811, %v1810
    %v1833 = vpack.c.b16 %v1813, %v1812
    %v1834 = vpack.c.b16 %v1815, %v1814
    %v1835 = vpack.c.b16 %v1817, %v1816
    %v1836 = vpack.c.b16 %v1819, %v1818
    %v1837 = vpack.c.b16 %v1821, %v1820
    %1854 = vmatprep.subr.bf16.mxu0 0
    %1855 = vmatpush1.bf16.msra.mxu0 %v1822
    %1856 = vmatprep.subr.bf16.mxu0 0
    %1857 = vmatpush1.bf16.msra.mxu0 %v1823
    %1858 = vmatprep.subr.bf16.mxu0 0
    %1859 = vmatpush1.bf16.msra.mxu0 %v1824
    %1860 = vmatprep.subr.bf16.mxu0 0
    %1861 = vmatpush1.bf16.msra.mxu0 %v1825
    %1862 = vmatprep.subr.bf16.mxu0 0
    %1863 = vmatpush1.bf16.msra.mxu0 %v1826
    %1864 = vmatprep.subr.bf16.mxu0 0
    %1865 = vmatpush1.bf16.msra.mxu0 %v1827
    %1866 = vmatprep.subr.bf16.mxu0 0
    %1867 = vmatpush1.bf16.msra.mxu0 %v1828
    %1868 = vmatprep.subr.bf16.mxu0 0
    %1869 = vmatpush1.bf16.msra.mxu0 %v1829
    %1870 = vmatprep.subr.bf16.mxu0 0
    %1871 = vmatpush1.bf16.msra.mxu0 %v1830
    %1872 = vmatprep.subr.bf16.mxu0 0
    %1873 = vmatpush1.bf16.msra.mxu0 %v1831
    %1874 = vmatprep.subr.bf16.mxu0 0
    %1875 = vmatpush1.bf16.msra.mxu0 %v1832
    %1876 = vmatprep.subr.bf16.mxu0 0
    %1877 = vmatpush1.bf16.msra.mxu0 %v1833
    %1878 = vmatprep.subr.bf16.mxu0 0
    %1879 = vmatpush1.bf16.msra.mxu0 %v1834
    %1880 = vmatprep.subr.bf16.mxu0 0
    %1881 = vmatpush1.bf16.msra.mxu0 %v1835
    %1882 = vmatprep.subr.bf16.mxu0 0
    %1883 = vmatpush1.bf16.msra.mxu0 %v1836
    %1884 = vmatprep.subr.bf16.mxu0 0
    %1885 = vmatpush1.bf16.msra.mxu0 %v1837
    %1886 = vmatprep.mubr.bf16.mxu0 %v1718
    %1887 = vmatmul.mubr.bf16.gmra.mrb[0].mxu0 %v1717
    %v1888 = vpop.f32.mrb[0].mxu0
    %v1889 = vadd.f32 %v1756, %v1888
    %v1890 = vpop.f32.mrb[0].mxu0
    %v1891 = vpop.f32.mrb[0].mxu0
    %v1892 = vadd.f32 %v1756, %v1891
    %v1893 = vpop.f32.mrb[0].mxu0
    %1894 = vdwg.mxu0
    %v1895 = vadd.f32 %v1559, %v1889
    %v1896 = vadd.f32 %v1560, %v1892
    %v1897 = vld [vmem:[#allocation16] sm:$0x1]
    %v1898 = vld [vmem:[#allocation17] sm:$0x1]
    %1899 = vadd.xlane.f32.xlu0 %v1895
    %v1900 = vpop.xlane.xlu0 %1899
    %1901 = vadd.xlane.f32.xlu0 %v1896
    %v1902 = vpop.xlane.xlu0 %1901
    %v1903 = vmul.f32 %v1900, %v1526
    %v1904 = vmul.f32 %v1902, %v1526
    %v1905 = vsub.f32 %v1895, %v1903
    %v1906 = vsub.f32 %v1896, %v1904
    %v1907 = vmul.f32 %v1905, %v1905
    %v1908 = vmul.f32 %v1906, %v1906
    %1909 = vadd.xlane.f32.xlu0 %v1907
    %v1910 = vpop.xlane.xlu0 %1909
    %1911 = vadd.xlane.f32.xlu0 %v1908
    %v1912 = vpop.xlane.xlu0 %1911
    %v1913 = vmul.f32 %v1910, %v1526
    %v1914 = vmul.f32 %v1912, %v1526
    %v1915 = vadd.f32 %v1913, 1e-05
    %v1916 = vadd.f32 %v1914, 1e-05
    %v1917 = vrsqrt.pop %v1915
    %v1918 = vrsqrt.pop %v1916
    %v1919 = vmul.f32 %v1905, %v1917
    %v1920 = vmul.f32 %v1906, %v1918
    %v1922 = vlaneseq
    %v1923 = vshrl.u32 %v1922, 7
    %v1924 = vsub.s32 0, %v1923
    %v1925 = vrot.slane %v1897, %v1924
    %v1927 = vmul.f32 %v1919, %v1925
    %v1928 = vmul.f32 %v1920, %v1925
    %v1930 = vlaneseq
    %v1931 = vshrl.u32 %v1930, 7
    %v1932 = vsub.s32 0, %v1931
    %v1933 = vrot.slane %v1898, %v1932
    %v1935 = vadd.f32 %v1927, %v1933
    %v1936 = vadd.f32 %v1928, %v1933
    %v1937 = vpack.c.bf16 %v1936, %v1935
    %s1938 = scalar_lea.vmem [#allocation2], 192
    %v1939 = vld [vmem:[%s1938] sm:$0xff]
    %v1940 = vld [vmem:[%s1938 + $0x8] sm:$0xf]
    %v1941 = vld [vmem:[%s1938 + $0xc] sm:$0xff]
    %v1942 = vld [vmem:[%s1938 + $0x14] sm:$0xf]
    %v1943 = vld [vmem:[%s1938 + $0x18] sm:$0xff]
    %v1944 = vld [vmem:[%s1938 + $0x20] sm:$0xf]
    %v1945 = vld [vmem:[%s1938 + $0x24] sm:$0xff]
    %v1946 = vld [vmem:[%s1938 + $0x2c] sm:$0xf]
    %v1947 = vld [vmem:[%s1938 + $0x30] sm:$0xff]
    %v1948 = vld [vmem:[%s1938 + $0x38] sm:$0xf]
    %v1949 = vld [vmem:[%s1938 + $0x3c] sm:$0xff]
    %v1950 = vld [vmem:[%s1938 + $0x44] sm:$0xf]
    %v1951 = vld [vmem:[%s1938 + $0x48] sm:$0xff]
    %v1952 = vld [vmem:[%s1938 + $0x50] sm:$0xf]
    %v1953 = vld [vmem:[%s1938 + $0x54] sm:$0xff]
    %v1954 = vld [vmem:[%s1938 + $0x5c] sm:$0xf]
    %v1955 = vld [vmem:[%s1938 + $0x60] sm:$0xff]
    %v1956 = vld [vmem:[%s1938 + $0x68] sm:$0xf]
    %v1957 = vld [vmem:[%s1938 + $0x6c] sm:$0xff]
    %v1958 = vld [vmem:[%s1938 + $0x74] sm:$0xf]
    %v1959 = vld [vmem:[%s1938 + $0x78] sm:$0xff]
    %v1960 = vld [vmem:[%s1938 + $0x80] sm:$0xf]
    %v1961 = vld [vmem:[%s1938 + $0x84] sm:$0xff]
    %v1962 = vld [vmem:[%s1938 + $0x8c] sm:$0xf]
    %v1963 = vld [vmem:[%s1938 + $0x90] sm:$0xff]
    %v1964 = vld [vmem:[%s1938 + $0x98] sm:$0xf]
    %v1965 = vld [vmem:[%s1938 + $0x9c] sm:$0xff]
    %v1966 = vld [vmem:[%s1938 + $0xa4] sm:$0xf]
    %v1967 = vld [vmem:[%s1938 + $0xa8] sm:$0xff]
    %v1968 = vld [vmem:[%s1938 + $0xb0] sm:$0xf]
    %v1969 = vld [vmem:[%s1938 + $0xb4] sm:$0xff]
    %v1970 = vld [vmem:[%s1938 + $0xbc] sm:$0xf]
    %s1971 = scalar_lea.vmem [#allocation5], 3
    %v1972 = vld [vmem:[%s1971] sm:$0x7]
    %v1974 = vlaneseq
    %v1975 = vshrl.u32 %v1974, 7
    %v1976 = vsub.s32 0, %v1975
    %v1977 = vrot.slane %v1972, %v1976
    %v1978 = vlaneseq
    %v1979 = vshrl.u32 %v1978, 7
    %v1980 = vsub.s32 1, %v1979
    %v1981 = vrot.slane %v1972, %v1980
    %v1982 = vlaneseq
    %v1983 = vshrl.u32 %v1982, 7
    %v1984 = vsub.s32 2, %v1983
    %v1985 = vrot.slane %v1972, %v1984
    %v2021 = vunpack.c.l.b16 %v1939
    %v2022 = vunpack.c.h.b16 %v1939
    %v2023 = vunpack.c.l.b16 %v1940
    %v2024 = vunpack.c.l.b16 %v1941
    %v2025 = vunpack.c.h.b16 %v1941
    %v2026 = vunpack.c.l.b16 %v1942
    %v2027 = vunpack.c.l.b16 %v1943
    %v2028 = vunpack.c.h.b16 %v1943
    %v2029 = vunpack.c.l.b16 %v1944
    %v2030 = vunpack.c.l.b16 %v1945
    %v2031 = vunpack.c.h.b16 %v1945
    %v2032 = vunpack.c.l.b16 %v1946
    %v2033 = vunpack.c.l.b16 %v1947
    %v2034 = vunpack.c.h.b16 %v1947
    %v2035 = vunpack.c.l.b16 %v1948
    %v2036 = vunpack.c.l.b16 %v1949
    %v2037 = vunpack.c.h.b16 %v1949
    %v2038 = vunpack.c.l.b16 %v1950
    %v2039 = vunpack.c.l.b16 %v1951
    %v2040 = vunpack.c.h.b16 %v1951
    %v2041 = vunpack.c.l.b16 %v1952
    %v2042 = vunpack.c.l.b16 %v1953
    %v2043 = vunpack.c.h.b16 %v1953
    %v2044 = vunpack.c.l.b16 %v1954
    %v2045 = vunpack.c.l.b16 %v1955
    %v2046 = vunpack.c.h.b16 %v1955
    %v2047 = vunpack.c.l.b16 %v1956
    %v2048 = vunpack.c.l.b16 %v1957
    %v2049 = vunpack.c.h.b16 %v1957
    %v2050 = vunpack.c.l.b16 %v1958
    %v2051 = vunpack.c.l.b16 %v1959
    %v2052 = vunpack.c.h.b16 %v1959
    %v2053 = vunpack.c.l.b16 %v1960
    %v2054 = vunpack.c.l.b16 %v1961
    %v2055 = vunpack.c.h.b16 %v1961
    %v2056 = vunpack.c.l.b16 %v1962
    %v2057 = vunpack.c.l.b16 %v1963
    %v2058 = vunpack.c.h.b16 %v1963
    %v2059 = vunpack.c.l.b16 %v1964
    %v2060 = vunpack.c.l.b16 %v1965
    %v2061 = vunpack.c.h.b16 %v1965
    %v2062 = vunpack.c.l.b16 %v1966
    %v2063 = vunpack.c.l.b16 %v1967
    %v2064 = vunpack.c.h.b16 %v1967
    %v2065 = vunpack.c.l.b16 %v1968
    %v2066 = vunpack.c.l.b16 %v1969
    %v2067 = vunpack.c.h.b16 %v1969
    %v2068 = vunpack.c.l.b16 %v1970
    %v2069 = vpack.c.b16 %v2024, %v2021
    %v2070 = vpack.c.b16 %v2025, %v2022
    %v2071 = vpack.c.b16 %v2026, %v2023
    %v2072 = vpack.c.b16 %v2030, %v2027
    %v2073 = vpack.c.b16 %v2031, %v2028
    %v2074 = vpack.c.b16 %v2032, %v2029
    %v2075 = vpack.c.b16 %v2036, %v2033
    %v2076 = vpack.c.b16 %v2037, %v2034
    %v2077 = vpack.c.b16 %v2038, %v2035
    %v2078 = vpack.c.b16 %v2042, %v2039
    %v2079 = vpack.c.b16 %v2043, %v2040
    %v2080 = vpack.c.b16 %v2044, %v2041
    %v2081 = vpack.c.b16 %v2048, %v2045
    %v2082 = vpack.c.b16 %v2049, %v2046
    %v2083 = vpack.c.b16 %v2050, %v2047
    %v2084 = vpack.c.b16 %v2054, %v2051
    %v2085 = vpack.c.b16 %v2055, %v2052
    %v2086 = vpack.c.b16 %v2056, %v2053
    %v2087 = vpack.c.b16 %v2060, %v2057
    %v2088 = vpack.c.b16 %v2061, %v2058
    %v2089 = vpack.c.b16 %v2062, %v2059
    %v2090 = vpack.c.b16 %v2066, %v2063
    %v2091 = vpack.c.b16 %v2067, %v2064
    %v2092 = vpack.c.b16 %v2068, %v2065
    %2117 = vmatprep.subr.bf16.mxu0 %v2070
    %2118 = vmatpush1.bf16.msra.mxu0 %v2069
    %2119 = vmatprep.subr.bf16.mxu0 %v2073
    %2120 = vmatpush1.bf16.msra.mxu0 %v2072
    %2121 = vmatprep.subr.bf16.mxu0 %v2076
    %2122 = vmatpush1.bf16.msra.mxu0 %v2075
    %2123 = vmatprep.subr.bf16.mxu0 %v2079
    %2124 = vmatpush1.bf16.msra.mxu0 %v2078
    %2125 = vmatprep.subr.bf16.mxu0 %v2082
    %2126 = vmatpush1.bf16.msra.mxu0 %v2081
    %2127 = vmatprep.subr.bf16.mxu0 %v2085
    %2128 = vmatpush1.bf16.msra.mxu0 %v2084
    %2129 = vmatprep.subr.bf16.mxu0 %v2088
    %2130 = vmatpush1.bf16.msra.mxu0 %v2087
    %2131 = vmatprep.subr.bf16.mxu0 %v2091
    %2132 = vmatpush1.bf16.msra.mxu0 %v2090
    %2133 = vmatprep.subr.bf16.mxu0 0
    %2134 = vmatpush1.bf16.msra.mxu0 0
    %2135 = vmatprep.subr.bf16.mxu0 0
    %2136 = vmatpush1.bf16.msra.mxu0 0
    %2137 = vmatprep.subr.bf16.mxu0 0
    %2138 = vmatpush1.bf16.msra.mxu0 0
    %2139 = vmatprep.subr.bf16.mxu0 0
    %2140 = vmatpush1.bf16.msra.mxu0 0
    %2141 = vmatprep.subr.bf16.mxu0 0
    %2142 = vmatpush1.bf16.msra.mxu0 0
    %2143 = vmatprep.subr.bf16.mxu0 0
    %2144 = vmatpush1.bf16.msra.mxu0 0
    %2145 = vmatprep.subr.bf16.mxu0 0
    %2146 = vmatpush1.bf16.msra.mxu0 0
    %2147 = vmatprep.subr.bf16.mxu0 0
    %2148 = vmatpush1.bf16.msra.mxu0 0
    %2149 = vmatprep.mubr.bf16.mxu0 0
    %2150 = vmatmul.mubr.bf16.gmra.mrb[0].mxu0 %v1937
    %v2151 = vpop.f32.mrb[0].mxu0
    %v2152 = vadd.f32 %v1977, %v2151
    %v2153 = vpop.f32.mrb[0].mxu0
    %v2154 = vadd.f32 %v1981, %v2153
    %v2155 = vpop.f32.mrb[0].mxu0
    %v2156 = vadd.f32 %v1977, %v2155
    %v2157 = vpop.f32.mrb[0].mxu0
    %v2158 = vadd.f32 %v1981, %v2157
    %2159 = vdwg.mxu0
    %2160 = vmatprep.subr.bf16.mxu0 0
    %2161 = vmatpush1.bf16.msra.mxu0 %v2071
    %2162 = vmatprep.subr.bf16.mxu0 0
    %2163 = vmatpush1.bf16.msra.mxu0 %v2074
    %2164 = vmatprep.subr.bf16.mxu0 0
    %2165 = vmatpush1.bf16.msra.mxu0 %v2077
    %2166 = vmatprep.subr.bf16.mxu0 0
    %2167 = vmatpush1.bf16.msra.mxu0 %v2080
    %2168 = vmatprep.subr.bf16.mxu0 0
    %2169 = vmatpush1.bf16.msra.mxu0 %v2083
    %2170 = vmatprep.subr.bf16.mxu0 0
    %2171 = vmatpush1.bf16.msra.mxu0 %v2086
    %2172 = vmatprep.subr.bf16.mxu0 0
    %2173 = vmatpush1.bf16.msra.mxu0 %v2089
    %2174 = vmatprep.subr.bf16.mxu0 0
    %2175 = vmatpush1.bf16.msra.mxu0 %v2092
    %2176 = vmatprep.subr.bf16.mxu0 0
    %2177 = vmatpush1.bf16.msra.mxu0 0
    %2178 = vmatprep.subr.bf16.mxu0 0
    %2179 = vmatpush1.bf16.msra.mxu0 0
    %2180 = vmatprep.subr.bf16.mxu0 0
    %2181 = vmatpush1.bf16.msra.mxu0 0
    %2182 = vmatprep.subr.bf16.mxu0 0
    %2183 = vmatpush1.bf16.msra.mxu0 0
    %2184 = vmatprep.subr.bf16.mxu0 0
    %2185 = vmatpush1.bf16.msra.mxu0 0
    %2186 = vmatprep.subr.bf16.mxu0 0
    %2187 = vmatpush1.bf16.msra.mxu0 0
    %2188 = vmatprep.subr.bf16.mxu0 0
    %2189 = vmatpush1.bf16.msra.mxu0 0
    %2190 = vmatprep.subr.bf16.mxu0 0
    %2191 = vmatpush1.bf16.msra.mxu0 0
    %2192 = vmatprep.mubr.bf16.mxu0 0
    %2193 = vmatmul.mubr.bf16.gmra.mrb[0].mxu0 %v1937
    %v2194 = vpop.f32.mrb[0].mxu0
    %v2195 = vadd.f32 %v1985, %v2194
    %v2196 = vpop.f32.mrb[0].mxu0
    %v2197 = vpop.f32.mrb[0].mxu0
    %v2198 = vadd.f32 %v1985, %v2197
    %v2199 = vpop.f32.mrb[0].mxu0
    %2200 = vdwg.mxu0
    %v2201 = vpack.c.bf16 %v2156, %v2152
    %v2202 = vpack.c.bf16 %v2158, %v2154
    %v2203 = vpack.c.bf16 %v2198, %v2195
    %v2205 = vsel %vm488, %v2201, 0
    %v2208 = vsel %vm488, %v2202, 0
    %2210 = vmatprep.subr.bf16.mxu0 0
    %2211 = vmatpush1.bf16.xpose.msra.mxu0 %v2208
    %2212 = vmatprep.subr.bf16.mxu0 0
    %2213 = vmatpush1.bf16.xpose.msra.mxu0 0
    %2214 = vmatprep.subr.bf16.mxu0 0
    %2215 = vmatpush1.bf16.xpose.msra.mxu0 0
    %2216 = vmatprep.subr.bf16.mxu0 0
    %2217 = vmatpush1.bf16.xpose.msra.mxu0 0
    %2218 = vmatprep.subr.bf16.mxu0 0
    %2219 = vmatpush1.bf16.xpose.msra.mxu0 0
    %2220 = vmatprep.subr.bf16.mxu0 0
    %2221 = vmatpush1.bf16.xpose.msra.mxu0 0
    %2222 = vmatprep.subr.bf16.mxu0 0
    %2223 = vmatpush1.bf16.xpose.msra.mxu0 0
    %2224 = vmatprep.subr.bf16.mxu0 0
    %2225 = vmatpush1.bf16.xpose.msra.mxu0 0
    %2226 = vmatprep.subr.bf16.mxu0 0
    %2227 = vmatpush1.bf16.xpose.msra.mxu0 0
    %2228 = vmatprep.subr.bf16.mxu0 0
    %2229 = vmatpush1.bf16.xpose.msra.mxu0 0
    %2230 = vmatprep.subr.bf16.mxu0 0
    %2231 = vmatpush1.bf16.xpose.msra.mxu0 0
    %2232 = vmatprep.subr.bf16.mxu0 0
    %2233 = vmatpush1.bf16.xpose.msra.mxu0 0
    %2234 = vmatprep.subr.bf16.mxu0 0
    %2235 = vmatpush1.bf16.xpose.msra.mxu0 0
    %2236 = vmatprep.subr.bf16.mxu0 0
    %2237 = vmatpush1.bf16.xpose.msra.mxu0 0
    %2238 = vmatprep.subr.bf16.mxu0 0
    %2239 = vmatpush1.bf16.xpose.msra.mxu0 0
    %2240 = vmatprep.subr.bf16.mxu0 0
    %2241 = vmatpush1.bf16.xpose.msra.mxu0 0
    %2242 = vmatprep.mubr.bf16.mxu0 0
    %2243 = vmatmul.mubr.bf16.gmra.mrb[0].mxu0 %v2205
    %v2244 = vpop.f32.mrb[0].mxu0
    %v2245 = vadd.f32 0.0, %v2244
    %v2246 = vpop.f32.mrb[0].mxu0
    %v2247 = vpop.f32.mrb[0].mxu0
    %v2248 = vpop.f32.mrb[0].mxu0
    %2249 = vdwg.mxu0
    %v2250 = vmul.f32 %v2245, 0.17677669
    %v2251 = vsel %vm536, %v2250, -inf
    %2252 = vmax.xlane.f32.xlu0 %v2251
    %v2253 = vpop.xlane.xlu0 %2252
    %v2254 = vsub.f32 %v2250, %v2253
    %v2255 = vmul.f32 %v2254, 1.442695
    %v2256 = vpow.pop %v2255
    %v2257 = vsel %vm536, %v2256, 0.0
    %2258 = vadd.xlane.f32.xlu0 %v2257
    %v2259 = vpop.xlane.xlu0 %2258
    %v2260 = vrcp.pop %v2259
    %v2261 = vmul.f32 %v2256, %v2260
    %v2262 = vpack.c.bf16 %v2261, %v2261
    %v2264 = vsel %vm536, %v2262, 0
    %v2267 = vsel %vm552, %v2203, 0
    %2269 = vmatprep.subr.bf16.mxu0 0
    %2270 = vmatpush1.bf16.msra.mxu0 %v2267
    %2271 = vmatprep.subr.bf16.mxu0 0
    %2272 = vmatpush1.bf16.msra.mxu0 0
    %2273 = vmatprep.subr.bf16.mxu0 0
    %2274 = vmatpush1.bf16.msra.mxu0 0
    %2275 = vmatprep.subr.bf16.mxu0 0
    %2276 = vmatpush1.bf16.msra.mxu0 0
    %2277 = vmatprep.subr.bf16.mxu0 0
    %2278 = vmatpush1.bf16.msra.mxu0 0
    %2279 = vmatprep.subr.bf16.mxu0 0
    %2280 = vmatpush1.bf16.msra.mxu0 0
    %2281 = vmatprep.subr.bf16.mxu0 0
    %2282 = vmatpush1.bf16.msra.mxu0 0
    %2283 = vmatprep.subr.bf16.mxu0 0
    %2284 = vmatpush1.bf16.msra.mxu0 0
    %2285 = vmatprep.subr.bf16.mxu0 0
    %2286 = vmatpush1.bf16.msra.mxu0 0
    %2287 = vmatprep.subr.bf16.mxu0 0
    %2288 = vmatpush1.bf16.msra.mxu0 0
    %2289 = vmatprep.subr.bf16.mxu0 0
    %2290 = vmatpush1.bf16.msra.mxu0 0
    %2291 = vmatprep.subr.bf16.mxu0 0
    %2292 = vmatpush1.bf16.msra.mxu0 0
    %2293 = vmatprep.subr.bf16.mxu0 0
    %2294 = vmatpush1.bf16.msra.mxu0 0
    %2295 = vmatprep.subr.bf16.mxu0 0
    %2296 = vmatpush1.bf16.msra.mxu0 0
    %2297 = vmatprep.subr.bf16.mxu0 0
    %2298 = vmatpush1.bf16.msra.mxu0 0
    %2299 = vmatprep.subr.bf16.mxu0 0
    %2300 = vmatpush1.bf16.msra.mxu0 0
    %2301 = vmatprep.mubr.bf16.mxu0 0
    %2302 = vmatmul.mubr.bf16.gmra.mrb[0].mxu0 %v2264
    %v2303 = vpop.f32.mrb[0].mxu0
    %v2304 = vadd.f32 0.0, %v2303
    %v2305 = vpop.f32.mrb[0].mxu0
    %v2306 = vpop.f32.mrb[0].mxu0
    %v2307 = vpop.f32.mrb[0].mxu0
    %2308 = vdwg.mxu0
    %2310 = vrot.lane.b32.xlu0 %v2201, 96
    %v2311 = vpop.permute.xlu0 %2310
    %2313 = vrot.lane.b32.xlu0 %v2202, 96
    %v2314 = vpop.permute.xlu0 %2313
    %v2316 = vsel %vm488, %v2311, 0
    %v2319 = vsel %vm488, %v2314, 0
    %2321 = vmatprep.subr.bf16.mxu0 0
    %2322 = vmatpush1.bf16.xpose.msra.mxu0 %v2319
    %2323 = vmatprep.subr.bf16.mxu0 0
    %2324 = vmatpush1.bf16.xpose.msra.mxu0 0
    %2325 = vmatprep.subr.bf16.mxu0 0
    %2326 = vmatpush1.bf16.xpose.msra.mxu0 0
    %2327 = vmatprep.subr.bf16.mxu0 0
    %2328 = vmatpush1.bf16.xpose.msra.mxu0 0
    %2329 = vmatprep.subr.bf16.mxu0 0
    %2330 = vmatpush1.bf16.xpose.msra.mxu0 0
    %2331 = vmatprep.subr.bf16.mxu0 0
    %2332 = vmatpush1.bf16.xpose.msra.mxu0 0
    %2333 = vmatprep.subr.bf16.mxu0 0
    %2334 = vmatpush1.bf16.xpose.msra.mxu0 0
    %2335 = vmatprep.subr.bf16.mxu0 0
    %2336 = vmatpush1.bf16.xpose.msra.mxu0 0
    %2337 = vmatprep.subr.bf16.mxu0 0
    %2338 = vmatpush1.bf16.xpose.msra.mxu0 0
    %2339 = vmatprep.subr.bf16.mxu0 0
    %2340 = vmatpush1.bf16.xpose.msra.mxu0 0
    %2341 = vmatprep.subr.bf16.mxu0 0
    %2342 = vmatpush1.bf16.xpose.msra.mxu0 0
    %2343 = vmatprep.subr.bf16.mxu0 0
    %2344 = vmatpush1.bf16.xpose.msra.mxu0 0
    %2345 = vmatprep.subr.bf16.mxu0 0
    %2346 = vmatpush1.bf16.xpose.msra.mxu0 0
    %2347 = vmatprep.subr.bf16.mxu0 0
    %2348 = vmatpush1.bf16.xpose.msra.mxu0 0
    %2349 = vmatprep.subr.bf16.mxu0 0
    %2350 = vmatpush1.bf16.xpose.msra.mxu0 0
    %2351 = vmatprep.subr.bf16.mxu0 0
    %2352 = vmatpush1.bf16.xpose.msra.mxu0 0
    %2353 = vmatprep.mubr.bf16.mxu0 0
    %2354 = vmatmul.mubr.bf16.gmra.mrb[0].mxu0 %v2316
    %v2355 = vpop.f32.mrb[0].mxu0
    %v2356 = vadd.f32 0.0, %v2355
    %v2357 = vpop.f32.mrb[0].mxu0
    %v2358 = vpop.f32.mrb[0].mxu0
    %v2359 = vpop.f32.mrb[0].mxu0
    %2360 = vdwg.mxu0
    %v2361 = vmul.f32 %v2356, 0.17677669
    %v2362 = vsel %vm536, %v2361, -inf
    %2363 = vmax.xlane.f32.xlu0 %v2362
    %v2364 = vpop.xlane.xlu0 %2363
    %v2365 = vsub.f32 %v2361, %v2364
    %v2366 = vmul.f32 %v2365, 1.442695
    %v2367 = vpow.pop %v2366
    %v2368 = vsel %vm536, %v2367, 0.0
    %2369 = vadd.xlane.f32.xlu0 %v2368
    %v2370 = vpop.xlane.xlu0 %2369
    %v2371 = vrcp.pop %v2370
    %v2372 = vmul.f32 %v2367, %v2371
    %v2373 = vpack.c.bf16 %v2372, %v2372
    %2375 = vrot.lane.b32.xlu0 %v2203, 96
    %v2376 = vpop.permute.xlu0 %2375
    %v2378 = vsel %vm536, %v2373, 0
    %v2381 = vsel %vm552, %v2376, 0
    %2383 = vmatprep.subr.bf16.mxu0 0
    %2384 = vmatpush1.bf16.msra.mxu0 %v2381
    %2385 = vmatprep.subr.bf16.mxu0 0
    %2386 = vmatpush1.bf16.msra.mxu0 0
    %2387 = vmatprep.subr.bf16.mxu0 0
    %2388 = vmatpush1.bf16.msra.mxu0 0
    %2389 = vmatprep.subr.bf16.mxu0 0
    %2390 = vmatpush1.bf16.msra.mxu0 0
    %2391 = vmatprep.subr.bf16.mxu0 0
    %2392 = vmatpush1.bf16.msra.mxu0 0
    %2393 = vmatprep.subr.bf16.mxu0 0
    %2394 = vmatpush1.bf16.msra.mxu0 0
    %2395 = vmatprep.subr.bf16.mxu0 0
    %2396 = vmatpush1.bf16.msra.mxu0 0
    %2397 = vmatprep.subr.bf16.mxu0 0
    %2398 = vmatpush1.bf16.msra.mxu0 0
    %2399 = vmatprep.subr.bf16.mxu0 0
    %2400 = vmatpush1.bf16.msra.mxu0 0
    %2401 = vmatprep.subr.bf16.mxu0 0
    %2402 = vmatpush1.bf16.msra.mxu0 0
    %2403 = vmatprep.subr.bf16.mxu0 0
    %2404 = vmatpush1.bf16.msra.mxu0 0
    %2405 = vmatprep.subr.bf16.mxu0 0
    %2406 = vmatpush1.bf16.msra.mxu0 0
    %2407 = vmatprep.subr.bf16.mxu0 0
    %2408 = vmatpush1.bf16.msra.mxu0 0
    %2409 = vmatprep.subr.bf16.mxu0 0
    %2410 = vmatpush1.bf16.msra.mxu0 0
    %2411 = vmatprep.subr.bf16.mxu0 0
    %2412 = vmatpush1.bf16.msra.mxu0 0
    %2413 = vmatprep.subr.bf16.mxu0 0
    %2414 = vmatpush1.bf16.msra.mxu0 0
    %2415 = vmatprep.mubr.bf16.mxu0 0
    %2416 = vmatmul.mubr.bf16.gmra.mrb[0].mxu0 %v2378
    %v2417 = vpop.f32.mrb[0].mxu0
    %v2418 = vadd.f32 0.0, %v2417
    %v2419 = vpop.f32.mrb[0].mxu0
    %v2420 = vpop.f32.mrb[0].mxu0
    %v2421 = vpop.f32.mrb[0].mxu0
    %2422 = vdwg.mxu0
    %2423 = vrot.lane.b32.xlu0 %v2201, 64
    %v2424 = vpop.permute.xlu0 %2423
    %2425 = vrot.lane.b32.xlu0 %v2202, 64
    %v2426 = vpop.permute.xlu0 %2425
    %v2428 = vsel %vm488, %v2424, 0
    %v2431 = vsel %vm488, %v2426, 0
    %2433 = vmatprep.subr.bf16.mxu0 0
    %2434 = vmatpush1.bf16.xpose.msra.mxu0 %v2431
    %2435 = vmatprep.subr.bf16.mxu0 0
    %2436 = vmatpush1.bf16.xpose.msra.mxu0 0
    %2437 = vmatprep.subr.bf16.mxu0 0
    %2438 = vmatpush1.bf16.xpose.msra.mxu0 0
    %2439 = vmatprep.subr.bf16.mxu0 0
    %2440 = vmatpush1.bf16.xpose.msra.mxu0 0
    %2441 = vmatprep.subr.bf16.mxu0 0
    %2442 = vmatpush1.bf16.xpose.msra.mxu0 0
    %2443 = vmatprep.subr.bf16.mxu0 0
    %2444 = vmatpush1.bf16.xpose.msra.mxu0 0
    %2445 = vmatprep.subr.bf16.mxu0 0
    %2446 = vmatpush1.bf16.xpose.msra.mxu0 0
    %2447 = vmatprep.subr.bf16.mxu0 0
    %2448 = vmatpush1.bf16.xpose.msra.mxu0 0
    %2449 = vmatprep.subr.bf16.mxu0 0
    %2450 = vmatpush1.bf16.xpose.msra.mxu0 0
    %2451 = vmatprep.subr.bf16.mxu0 0
    %2452 = vmatpush1.bf16.xpose.msra.mxu0 0
    %2453 = vmatprep.subr.bf16.mxu0 0
    %2454 = vmatpush1.bf16.xpose.msra.mxu0 0
    %2455 = vmatprep.subr.bf16.mxu0 0
    %2456 = vmatpush1.bf16.xpose.msra.mxu0 0
    %2457 = vmatprep.subr.bf16.mxu0 0
    %2458 = vmatpush1.bf16.xpose.msra.mxu0 0
    %2459 = vmatprep.subr.bf16.mxu0 0
    %2460 = vmatpush1.bf16.xpose.msra.mxu0 0
    %2461 = vmatprep.subr.bf16.mxu0 0
    %2462 = vmatpush1.bf16.xpose.msra.mxu0 0
    %2463 = vmatprep.subr.bf16.mxu0 0
    %2464 = vmatpush1.bf16.xpose.msra.mxu0 0
    %2465 = vmatprep.mubr.bf16.mxu0 0
    %2466 = vmatmul.mubr.bf16.gmra.mrb[0].mxu0 %v2428
    %v2467 = vpop.f32.mrb[0].mxu0
    %v2468 = vadd.f32 0.0, %v2467
    %v2469 = vpop.f32.mrb[0].mxu0
    %v2470 = vpop.f32.mrb[0].mxu0
    %v2471 = vpop.f32.mrb[0].mxu0
    %2472 = vdwg.mxu0
    %v2473 = vmul.f32 %v2468, 0.17677669
    %v2474 = vsel %vm536, %v2473, -inf
    %2475 = vmax.xlane.f32.xlu0 %v2474
    %v2476 = vpop.xlane.xlu0 %2475
    %v2477 = vsub.f32 %v2473, %v2476
    %v2478 = vmul.f32 %v2477, 1.442695
    %v2479 = vpow.pop %v2478
    %v2480 = vsel %vm536, %v2479, 0.0
    %2481 = vadd.xlane.f32.xlu0 %v2480
    %v2482 = vpop.xlane.xlu0 %2481
    %v2483 = vrcp.pop %v2482
    %v2484 = vmul.f32 %v2479, %v2483
    %v2485 = vpack.c.bf16 %v2484, %v2484
    %2486 = vrot.lane.b32.xlu0 %v2203, 64
    %v2487 = vpop.permute.xlu0 %2486
    %v2489 = vsel %vm536, %v2485, 0
    %v2492 = vsel %vm552, %v2487, 0
    %2494 = vmatprep.subr.bf16.mxu0 0
    %2495 = vmatpush1.bf16.msra.mxu0 %v2492
    %2496 = vmatprep.subr.bf16.mxu0 0
    %2497 = vmatpush1.bf16.msra.mxu0 0
    %2498 = vmatprep.subr.bf16.mxu0 0
    %2499 = vmatpush1.bf16.msra.mxu0 0
    %2500 = vmatprep.subr.bf16.mxu0 0
    %2501 = vmatpush1.bf16.msra.mxu0 0
    %2502 = vmatprep.subr.bf16.mxu0 0
    %2503 = vmatpush1.bf16.msra.mxu0 0
    %2504 = vmatprep.subr.bf16.mxu0 0
    %2505 = vmatpush1.bf16.msra.mxu0 0
    %2506 = vmatprep.subr.bf16.mxu0 0
    %2507 = vmatpush1.bf16.msra.mxu0 0
    %2508 = vmatprep.subr.bf16.mxu0 0
    %2509 = vmatpush1.bf16.msra.mxu0 0
    %2510 = vmatprep.subr.bf16.mxu0 0
    %2511 = vmatpush1.bf16.msra.mxu0 0
    %2512 = vmatprep.subr.bf16.mxu0 0
    %2513 = vmatpush1.bf16.msra.mxu0 0
    %2514 = vmatprep.subr.bf16.mxu0 0
    %2515 = vmatpush1.bf16.msra.mxu0 0
    %2516 = vmatprep.subr.bf16.mxu0 0
    %2517 = vmatpush1.bf16.msra.mxu0 0
    %2518 = vmatprep.subr.bf16.mxu0 0
    %2519 = vmatpush1.bf16.msra.mxu0 0
    %2520 = vmatprep.subr.bf16.mxu0 0
    %2521 = vmatpush1.bf16.msra.mxu0 0
    %2522 = vmatprep.subr.bf16.mxu0 0
    %2523 = vmatpush1.bf16.msra.mxu0 0
    %2524 = vmatprep.subr.bf16.mxu0 0
    %2525 = vmatpush1.bf16.msra.mxu0 0
    %2526 = vmatprep.mubr.bf16.mxu0 0
    %2527 = vmatmul.mubr.bf16.gmra.mrb[0].mxu0 %v2489
    %v2528 = vpop.f32.mrb[0].mxu0
    %v2529 = vadd.f32 0.0, %v2528
    %v2530 = vpop.f32.mrb[0].mxu0
    %v2531 = vpop.f32.mrb[0].mxu0
    %v2532 = vpop.f32.mrb[0].mxu0
    %2533 = vdwg.mxu0
    %2534 = vrot.lane.b32.xlu0 %v2201, 32
    %v2535 = vpop.permute.xlu0 %2534
    %2536 = vrot.lane.b32.xlu0 %v2202, 32
    %v2537 = vpop.permute.xlu0 %2536
    %v2539 = vsel %vm488, %v2535, 0
    %v2542 = vsel %vm488, %v2537, 0
    %2544 = vmatprep.subr.bf16.mxu0 0
    %2545 = vmatpush1.bf16.xpose.msra.mxu0 %v2542
    %2546 = vmatprep.subr.bf16.mxu0 0
    %2547 = vmatpush1.bf16.xpose.msra.mxu0 0
    %2548 = vmatprep.subr.bf16.mxu0 0
    %2549 = vmatpush1.bf16.xpose.msra.mxu0 0
    %2550 = vmatprep.subr.bf16.mxu0 0
    %2551 = vmatpush1.bf16.xpose.msra.mxu0 0
    %2552 = vmatprep.subr.bf16.mxu0 0
    %2553 = vmatpush1.bf16.xpose.msra.mxu0 0
    %2554 = vmatprep.subr.bf16.mxu0 0
    %2555 = vmatpush1.bf16.xpose.msra.mxu0 0
    %2556 = vmatprep.subr.bf16.mxu0 0
    %2557 = vmatpush1.bf16.xpose.msra.mxu0 0
    %2558 = vmatprep.subr.bf16.mxu0 0
    %2559 = vmatpush1.bf16.xpose.msra.mxu0 0
    %2560 = vmatprep.subr.bf16.mxu0 0
    %2561 = vmatpush1.bf16.xpose.msra.mxu0 0
    %2562 = vmatprep.subr.bf16.mxu0 0
    %2563 = vmatpush1.bf16.xpose.msra.mxu0 0
    %2564 = vmatprep.subr.bf16.mxu0 0
    %2565 = vmatpush1.bf16.xpose.msra.mxu0 0
    %2566 = vmatprep.subr.bf16.mxu0 0
    %2567 = vmatpush1.bf16.xpose.msra.mxu0 0
    %2568 = vmatprep.subr.bf16.mxu0 0
    %2569 = vmatpush1.bf16.xpose.msra.mxu0 0
    %2570 = vmatprep.subr.bf16.mxu0 0
    %2571 = vmatpush1.bf16.xpose.msra.mxu0 0
    %2572 = vmatprep.subr.bf16.mxu0 0
    %2573 = vmatpush1.bf16.xpose.msra.mxu0 0
    %2574 = vmatprep.subr.bf16.mxu0 0
    %2575 = vmatpush1.bf16.xpose.msra.mxu0 0
    %2576 = vmatprep.mubr.bf16.mxu0 0
    %2577 = vmatmul.mubr.bf16.gmra.mrb[0].mxu0 %v2539
    %v2578 = vpop.f32.mrb[0].mxu0
    %v2579 = vadd.f32 0.0, %v2578
    %v2580 = vpop.f32.mrb[0].mxu0
    %v2581 = vpop.f32.mrb[0].mxu0
    %v2582 = vpop.f32.mrb[0].mxu0
    %2583 = vdwg.mxu0
    %v2584 = vmul.f32 %v2579, 0.17677669
    %v2585 = vsel %vm536, %v2584, -inf
    %2586 = vmax.xlane.f32.xlu0 %v2585
    %v2587 = vpop.xlane.xlu0 %2586
    %v2588 = vsub.f32 %v2584, %v2587
    %v2589 = vmul.f32 %v2588, 1.442695
    %v2590 = vpow.pop %v2589
    %v2591 = vsel %vm536, %v2590, 0.0
    %2592 = vadd.xlane.f32.xlu0 %v2591
    %v2593 = vpop.xlane.xlu0 %2592
    %v2594 = vrcp.pop %v2593
    %v2595 = vmul.f32 %v2590, %v2594
    %v2596 = vpack.c.bf16 %v2595, %v2595
    %2597 = vrot.lane.b32.xlu0 %v2203, 32
    %v2598 = vpop.permute.xlu0 %2597
    %v2600 = vsel %vm536, %v2596, 0
    %v2603 = vsel %vm552, %v2598, 0
    %2605 = vmatprep.subr.bf16.mxu0 0
    %2606 = vmatpush1.bf16.msra.mxu0 %v2603
    %2607 = vmatprep.subr.bf16.mxu0 0
    %2608 = vmatpush1.bf16.msra.mxu0 0
    %2609 = vmatprep.subr.bf16.mxu0 0
    %2610 = vmatpush1.bf16.msra.mxu0 0
    %2611 = vmatprep.subr.bf16.mxu0 0
    %2612 = vmatpush1.bf16.msra.mxu0 0
    %2613 = vmatprep.subr.bf16.mxu0 0
    %2614 = vmatpush1.bf16.msra.mxu0 0
    %2615 = vmatprep.subr.bf16.mxu0 0
    %2616 = vmatpush1.bf16.msra.mxu0 0
    %2617 = vmatprep.subr.bf16.mxu0 0
    %2618 = vmatpush1.bf16.msra.mxu0 0
    %2619 = vmatprep.subr.bf16.mxu0 0
    %2620 = vmatpush1.bf16.msra.mxu0 0
    %2621 = vmatprep.subr.bf16.mxu0 0
    %2622 = vmatpush1.bf16.msra.mxu0 0
    %2623 = vmatprep.subr.bf16.mxu0 0
    %2624 = vmatpush1.bf16.msra.mxu0 0
    %2625 = vmatprep.subr.bf16.mxu0 0
    %2626 = vmatpush1.bf16.msra.mxu0 0
    %2627 = vmatprep.subr.bf16.mxu0 0
    %2628 = vmatpush1.bf16.msra.mxu0 0
    %2629 = vmatprep.subr.bf16.mxu0 0
    %2630 = vmatpush1.bf16.msra.mxu0 0
    %2631 = vmatprep.subr.bf16.mxu0 0
    %2632 = vmatpush1.bf16.msra.mxu0 0
    %2633 = vmatprep.subr.bf16.mxu0 0
    %2634 = vmatpush1.bf16.msra.mxu0 0
    %2635 = vmatprep.subr.bf16.mxu0 0
    %2636 = vmatpush1.bf16.msra.mxu0 0
    %2637 = vmatprep.mubr.bf16.mxu0 0
    %2638 = vmatmul.mubr.bf16.gmra.mrb[0].mxu0 %v2600
    %v2639 = vpop.f32.mrb[0].mxu0
    %v2640 = vadd.f32 0.0, %v2639
    %v2641 = vpop.f32.mrb[0].mxu0
    %v2642 = vpop.f32.mrb[0].mxu0
    %v2643 = vpop.f32.mrb[0].mxu0
    %2644 = vdwg.mxu0
    %2646 = vrot.lane.b32.xlu0 %v2418, 32
    %v2647 = vpop.permute.xlu0 %2646
    %2650 = vrot.lane.b32.xlu0 %v2529, 64
    %v2651 = vpop.permute.xlu0 %2650
    %2654 = vrot.lane.b32.xlu0 %v2640, 96
    %v2655 = vpop.permute.xlu0 %2654
    %v2657 = vsel %vm488, %v2304, %v2647
    %v2658 = vsel %vm945, %v2657, %v2651
    %v2659 = vsel %vm947, %v2658, %v2655
    %v2660 = vrot.slane %v2201, 4
    %v2661 = vrot.slane %v2202, 4
    %v2663 = vsel %vm488, %v2660, 0
    %v2666 = vsel %vm488, %v2661, 0
    %2668 = vmatprep.subr.bf16.mxu0 0
    %2669 = vmatpush1.bf16.xpose.msra.mxu0 %v2666
    %2670 = vmatprep.subr.bf16.mxu0 0
    %2671 = vmatpush1.bf16.xpose.msra.mxu0 0
    %2672 = vmatprep.subr.bf16.mxu0 0
    %2673 = vmatpush1.bf16.xpose.msra.mxu0 0
    %2674 = vmatprep.subr.bf16.mxu0 0
    %2675 = vmatpush1.bf16.xpose.msra.mxu0 0
    %2676 = vmatprep.subr.bf16.mxu0 0
    %2677 = vmatpush1.bf16.xpose.msra.mxu0 0
    %2678 = vmatprep.subr.bf16.mxu0 0
    %2679 = vmatpush1.bf16.xpose.msra.mxu0 0
    %2680 = vmatprep.subr.bf16.mxu0 0
    %2681 = vmatpush1.bf16.xpose.msra.mxu0 0
    %2682 = vmatprep.subr.bf16.mxu0 0
    %2683 = vmatpush1.bf16.xpose.msra.mxu0 0
    %2684 = vmatprep.subr.bf16.mxu0 0
    %2685 = vmatpush1.bf16.xpose.msra.mxu0 0
    %2686 = vmatprep.subr.bf16.mxu0 0
    %2687 = vmatpush1.bf16.xpose.msra.mxu0 0
    %2688 = vmatprep.subr.bf16.mxu0 0
    %2689 = vmatpush1.bf16.xpose.msra.mxu0 0
    %2690 = vmatprep.subr.bf16.mxu0 0
    %2691 = vmatpush1.bf16.xpose.msra.mxu0 0
    %2692 = vmatprep.subr.bf16.mxu0 0
    %2693 = vmatpush1.bf16.xpose.msra.mxu0 0
    %2694 = vmatprep.subr.bf16.mxu0 0
    %2695 = vmatpush1.bf16.xpose.msra.mxu0 0
    %2696 = vmatprep.subr.bf16.mxu0 0
    %2697 = vmatpush1.bf16.xpose.msra.mxu0 0
    %2698 = vmatprep.subr.bf16.mxu0 0
    %2699 = vmatpush1.bf16.xpose.msra.mxu0 0
    %2700 = vmatprep.mubr.bf16.mxu0 0
    %2701 = vmatmul.mubr.bf16.gmra.mrb[0].mxu0 %v2663
    %v2702 = vpop.f32.mrb[0].mxu0
    %v2703 = vadd.f32 0.0, %v2702
    %v2704 = vpop.f32.mrb[0].mxu0
    %v2705 = vpop.f32.mrb[0].mxu0
    %v2706 = vpop.f32.mrb[0].mxu0
    %2707 = vdwg.mxu0
    %v2708 = vmul.f32 %v2703, 0.17677669
    %v2709 = vsel %vm536, %v2708, -inf
    %2710 = vmax.xlane.f32.xlu0 %v2709
    %v2711 = vpop.xlane.xlu0 %2710
    %v2712 = vsub.f32 %v2708, %v2711
    %v2713 = vmul.f32 %v2712, 1.442695
    %v2714 = vpow.pop %v2713
    %v2715 = vsel %vm536, %v2714, 0.0
    %2716 = vadd.xlane.f32.xlu0 %v2715
    %v2717 = vpop.xlane.xlu0 %2716
    %v2718 = vrcp.pop %v2717
    %v2719 = vmul.f32 %v2714, %v2718
    %v2720 = vpack.c.bf16 %v2719, %v2719
    %v2721 = vrot.slane %v2203, 4
    %v2723 = vsel %vm536, %v2720, 0
    %v2726 = vsel %vm552, %v2721, 0
    %2728 = vmatprep.subr.bf16.mxu0 0
    %2729 = vmatpush1.bf16.msra.mxu0 %v2726
    %2730 = vmatprep.subr.bf16.mxu0 0
    %2731 = vmatpush1.bf16.msra.mxu0 0
    %2732 = vmatprep.subr.bf16.mxu0 0
    %2733 = vmatpush1.bf16.msra.mxu0 0
    %2734 = vmatprep.subr.bf16.mxu0 0
    %2735 = vmatpush1.bf16.msra.mxu0 0
    %2736 = vmatprep.subr.bf16.mxu0 0
    %2737 = vmatpush1.bf16.msra.mxu0 0
    %2738 = vmatprep.subr.bf16.mxu0 0
    %2739 = vmatpush1.bf16.msra.mxu0 0
    %2740 = vmatprep.subr.bf16.mxu0 0
    %2741 = vmatpush1.bf16.msra.mxu0 0
    %2742 = vmatprep.subr.bf16.mxu0 0
    %2743 = vmatpush1.bf16.msra.mxu0 0
    %2744 = vmatprep.subr.bf16.mxu0 0
    %2745 = vmatpush1.bf16.msra.mxu0 0
    %2746 = vmatprep.subr.bf16.mxu0 0
    %2747 = vmatpush1.bf16.msra.mxu0 0
    %2748 = vmatprep.subr.bf16.mxu0 0
    %2749 = vmatpush1.bf16.msra.mxu0 0
    %2750 = vmatprep.subr.bf16.mxu0 0
    %2751 = vmatpush1.bf16.msra.mxu0 0
    %2752 = vmatprep.subr.bf16.mxu0 0
    %2753 = vmatpush1.bf16.msra.mxu0 0
    %2754 = vmatprep.subr.bf16.mxu0 0
    %2755 = vmatpush1.bf16.msra.mxu0 0
    %2756 = vmatprep.subr.bf16.mxu0 0
    %2757 = vmatpush1.bf16.msra.mxu0 0
    %2758 = vmatprep.subr.bf16.mxu0 0
    %2759 = vmatpush1.bf16.msra.mxu0 0
    %2760 = vmatprep.mubr.bf16.mxu0 0
    %2761 = vmatmul.mubr.bf16.gmra.mrb[0].mxu0 %v2723
    %v2762 = vpop.f32.mrb[0].mxu0
    %v2763 = vadd.f32 0.0, %v2762
    %v2764 = vpop.f32.mrb[0].mxu0
    %v2765 = vpop.f32.mrb[0].mxu0
    %v2766 = vpop.f32.mrb[0].mxu0
    %2767 = vdwg.mxu0
    %2768 = vrot.lane.b32.xlu0 %v2660, 96
    %v2769 = vpop.permute.xlu0 %2768
    %2770 = vrot.lane.b32.xlu0 %v2661, 96
    %v2771 = vpop.permute.xlu0 %2770
    %v2773 = vsel %vm488, %v2769, 0
    %v2776 = vsel %vm488, %v2771, 0
    %2778 = vmatprep.subr.bf16.mxu0 0
    %2779 = vmatpush1.bf16.xpose.msra.mxu0 %v2776
    %2780 = vmatprep.subr.bf16.mxu0 0
    %2781 = vmatpush1.bf16.xpose.msra.mxu0 0
    %2782 = vmatprep.subr.bf16.mxu0 0
    %2783 = vmatpush1.bf16.xpose.msra.mxu0 0
    %2784 = vmatprep.subr.bf16.mxu0 0
    %2785 = vmatpush1.bf16.xpose.msra.mxu0 0
    %2786 = vmatprep.subr.bf16.mxu0 0
    %2787 = vmatpush1.bf16.xpose.msra.mxu0 0
    %2788 = vmatprep.subr.bf16.mxu0 0
    %2789 = vmatpush1.bf16.xpose.msra.mxu0 0
    %2790 = vmatprep.subr.bf16.mxu0 0
    %2791 = vmatpush1.bf16.xpose.msra.mxu0 0
    %2792 = vmatprep.subr.bf16.mxu0 0
    %2793 = vmatpush1.bf16.xpose.msra.mxu0 0
    %2794 = vmatprep.subr.bf16.mxu0 0
    %2795 = vmatpush1.bf16.xpose.msra.mxu0 0
    %2796 = vmatprep.subr.bf16.mxu0 0
    %2797 = vmatpush1.bf16.xpose.msra.mxu0 0
    %2798 = vmatprep.subr.bf16.mxu0 0
    %2799 = vmatpush1.bf16.xpose.msra.mxu0 0
    %2800 = vmatprep.subr.bf16.mxu0 0
    %2801 = vmatpush1.bf16.xpose.msra.mxu0 0
    %2802 = vmatprep.subr.bf16.mxu0 0
    %2803 = vmatpush1.bf16.xpose.msra.mxu0 0
    %2804 = vmatprep.subr.bf16.mxu0 0
    %2805 = vmatpush1.bf16.xpose.msra.mxu0 0
    %2806 = vmatprep.subr.bf16.mxu0 0
    %2807 = vmatpush1.bf16.xpose.msra.mxu0 0
    %2808 = vmatprep.subr.bf16.mxu0 0
    %2809 = vmatpush1.bf16.xpose.msra.mxu0 0
    %2810 = vmatprep.mubr.bf16.mxu0 0
    %2811 = vmatmul.mubr.bf16.gmra.mrb[0].mxu0 %v2773
    %v2812 = vpop.f32.mrb[0].mxu0
    %v2813 = vadd.f32 0.0, %v2812
    %v2814 = vpop.f32.mrb[0].mxu0
    %v2815 = vpop.f32.mrb[0].mxu0
    %v2816 = vpop.f32.mrb[0].mxu0
    %2817 = vdwg.mxu0
    %v2818 = vmul.f32 %v2813, 0.17677669
    %v2819 = vsel %vm536, %v2818, -inf
    %2820 = vmax.xlane.f32.xlu0 %v2819
    %v2821 = vpop.xlane.xlu0 %2820
    %v2822 = vsub.f32 %v2818, %v2821
    %v2823 = vmul.f32 %v2822, 1.442695
    %v2824 = vpow.pop %v2823
    %v2825 = vsel %vm536, %v2824, 0.0
    %2826 = vadd.xlane.f32.xlu0 %v2825
    %v2827 = vpop.xlane.xlu0 %2826
    %v2828 = vrcp.pop %v2827
    %v2829 = vmul.f32 %v2824, %v2828
    %v2830 = vpack.c.bf16 %v2829, %v2829
    %2831 = vrot.lane.b32.xlu0 %v2721, 96
    %v2832 = vpop.permute.xlu0 %2831
    %v2834 = vsel %vm536, %v2830, 0
    %v2837 = vsel %vm552, %v2832, 0
    %2839 = vmatprep.subr.bf16.mxu0 0
    %2840 = vmatpush1.bf16.msra.mxu0 %v2837
    %2841 = vmatprep.subr.bf16.mxu0 0
    %2842 = vmatpush1.bf16.msra.mxu0 0
    %2843 = vmatprep.subr.bf16.mxu0 0
    %2844 = vmatpush1.bf16.msra.mxu0 0
    %2845 = vmatprep.subr.bf16.mxu0 0
    %2846 = vmatpush1.bf16.msra.mxu0 0
    %2847 = vmatprep.subr.bf16.mxu0 0
    %2848 = vmatpush1.bf16.msra.mxu0 0
    %2849 = vmatprep.subr.bf16.mxu0 0
    %2850 = vmatpush1.bf16.msra.mxu0 0
    %2851 = vmatprep.subr.bf16.mxu0 0
    %2852 = vmatpush1.bf16.msra.mxu0 0
    %2853 = vmatprep.subr.bf16.mxu0 0
    %2854 = vmatpush1.bf16.msra.mxu0 0
    %2855 = vmatprep.subr.bf16.mxu0 0
    %2856 = vmatpush1.bf16.msra.mxu0 0
    %2857 = vmatprep.subr.bf16.mxu0 0
    %2858 = vmatpush1.bf16.msra.mxu0 0
    %2859 = vmatprep.subr.bf16.mxu0 0
    %2860 = vmatpush1.bf16.msra.mxu0 0
    %2861 = vmatprep.subr.bf16.mxu0 0
    %2862 = vmatpush1.bf16.msra.mxu0 0
    %2863 = vmatprep.subr.bf16.mxu0 0
    %2864 = vmatpush1.bf16.msra.mxu0 0
    %2865 = vmatprep.subr.bf16.mxu0 0
    %2866 = vmatpush1.bf16.msra.mxu0 0
    %2867 = vmatprep.subr.bf16.mxu0 0
    %2868 = vmatpush1.bf16.msra.mxu0 0
    %2869 = vmatprep.subr.bf16.mxu0 0
    %2870 = vmatpush1.bf16.msra.mxu0 0
    %2871 = vmatprep.mubr.bf16.mxu0 0
    %2872 = vmatmul.mubr.bf16.gmra.mrb[0].mxu0 %v2834
    %v2873 = vpop.f32.mrb[0].mxu0
    %v2874 = vadd.f32 0.0, %v2873
    %v2875 = vpop.f32.mrb[0].mxu0
    %v2876 = vpop.f32.mrb[0].mxu0
    %v2877 = vpop.f32.mrb[0].mxu0
    %2878 = vdwg.mxu0
    %2879 = vrot.lane.b32.xlu0 %v2660, 64
    %v2880 = vpop.permute.xlu0 %2879
    %2881 = vrot.lane.b32.xlu0 %v2661, 64
    %v2882 = vpop.permute.xlu0 %2881
    %v2884 = vsel %vm488, %v2880, 0
    %v2887 = vsel %vm488, %v2882, 0
    %2889 = vmatprep.subr.bf16.mxu0 0
    %2890 = vmatpush1.bf16.xpose.msra.mxu0 %v2887
    %2891 = vmatprep.subr.bf16.mxu0 0
    %2892 = vmatpush1.bf16.xpose.msra.mxu0 0
    %2893 = vmatprep.subr.bf16.mxu0 0
    %2894 = vmatpush1.bf16.xpose.msra.mxu0 0
    %2895 = vmatprep.subr.bf16.mxu0 0
    %2896 = vmatpush1.bf16.xpose.msra.mxu0 0
    %2897 = vmatprep.subr.bf16.mxu0 0
    %2898 = vmatpush1.bf16.xpose.msra.mxu0 0
    %2899 = vmatprep.subr.bf16.mxu0 0
    %2900 = vmatpush1.bf16.xpose.msra.mxu0 0
    %2901 = vmatprep.subr.bf16.mxu0 0
    %2902 = vmatpush1.bf16.xpose.msra.mxu0 0
    %2903 = vmatprep.subr.bf16.mxu0 0
    %2904 = vmatpush1.bf16.xpose.msra.mxu0 0
    %2905 = vmatprep.subr.bf16.mxu0 0
    %2906 = vmatpush1.bf16.xpose.msra.mxu0 0
    %2907 = vmatprep.subr.bf16.mxu0 0
    %2908 = vmatpush1.bf16.xpose.msra.mxu0 0
    %2909 = vmatprep.subr.bf16.mxu0 0
    %2910 = vmatpush1.bf16.xpose.msra.mxu0 0
    %2911 = vmatprep.subr.bf16.mxu0 0
    %2912 = vmatpush1.bf16.xpose.msra.mxu0 0
    %2913 = vmatprep.subr.bf16.mxu0 0
    %2914 = vmatpush1.bf16.xpose.msra.mxu0 0
    %2915 = vmatprep.subr.bf16.mxu0 0
    %2916 = vmatpush1.bf16.xpose.msra.mxu0 0
    %2917 = vmatprep.subr.bf16.mxu0 0
    %2918 = vmatpush1.bf16.xpose.msra.mxu0 0
    %2919 = vmatprep.subr.bf16.mxu0 0
    %2920 = vmatpush1.bf16.xpose.msra.mxu0 0
    %2921 = vmatprep.mubr.bf16.mxu0 0
    %2922 = vmatmul.mubr.bf16.gmra.mrb[0].mxu0 %v2884
    %v2923 = vpop.f32.mrb[0].mxu0
    %v2924 = vadd.f32 0.0, %v2923
    %v2925 = vpop.f32.mrb[0].mxu0
    %v2926 = vpop.f32.mrb[0].mxu0
    %v2927 = vpop.f32.mrb[0].mxu0
    %2928 = vdwg.mxu0
    %v2929 = vmul.f32 %v2924, 0.17677669
    %v2930 = vsel %vm536, %v2929, -inf
    %2931 = vmax.xlane.f32.xlu0 %v2930
    %v2932 = vpop.xlane.xlu0 %2931
    %v2933 = vsub.f32 %v2929, %v2932
    %v2934 = vmul.f32 %v2933, 1.442695
    %v2935 = vpow.pop %v2934
    %v2936 = vsel %vm536, %v2935, 0.0
    %2937 = vadd.xlane.f32.xlu0 %v2936
    %v2938 = vpop.xlane.xlu0 %2937
    %v2939 = vrcp.pop %v2938
    %v2940 = vmul.f32 %v2935, %v2939
    %v2941 = vpack.c.bf16 %v2940, %v2940
    %2942 = vrot.lane.b32.xlu0 %v2721, 64
    %v2943 = vpop.permute.xlu0 %2942
    %v2945 = vsel %vm536, %v2941, 0
    %v2948 = vsel %vm552, %v2943, 0
    %2950 = vmatprep.subr.bf16.mxu0 0
    %2951 = vmatpush1.bf16.msra.mxu0 %v2948
    %2952 = vmatprep.subr.bf16.mxu0 0
    %2953 = vmatpush1.bf16.msra.mxu0 0
    %2954 = vmatprep.subr.bf16.mxu0 0
    %2955 = vmatpush1.bf16.msra.mxu0 0
    %2956 = vmatprep.subr.bf16.mxu0 0
    %2957 = vmatpush1.bf16.msra.mxu0 0
    %2958 = vmatprep.subr.bf16.mxu0 0
    %2959 = vmatpush1.bf16.msra.mxu0 0
    %2960 = vmatprep.subr.bf16.mxu0 0
    %2961 = vmatpush1.bf16.msra.mxu0 0
    %2962 = vmatprep.subr.bf16.mxu0 0
    %2963 = vmatpush1.bf16.msra.mxu0 0
    %2964 = vmatprep.subr.bf16.mxu0 0
    %2965 = vmatpush1.bf16.msra.mxu0 0
    %2966 = vmatprep.subr.bf16.mxu0 0
    %2967 = vmatpush1.bf16.msra.mxu0 0
    %2968 = vmatprep.subr.bf16.mxu0 0
    %2969 = vmatpush1.bf16.msra.mxu0 0
    %2970 = vmatprep.subr.bf16.mxu0 0
    %2971 = vmatpush1.bf16.msra.mxu0 0
    %2972 = vmatprep.subr.bf16.mxu0 0
    %2973 = vmatpush1.bf16.msra.mxu0 0
    %2974 = vmatprep.subr.bf16.mxu0 0
    %2975 = vmatpush1.bf16.msra.mxu0 0
    %2976 = vmatprep.subr.bf16.mxu0 0
    %2977 = vmatpush1.bf16.msra.mxu0 0
    %2978 = vmatprep.subr.bf16.mxu0 0
    %2979 = vmatpush1.bf16.msra.mxu0 0
    %2980 = vmatprep.subr.bf16.mxu0 0
    %2981 = vmatpush1.bf16.msra.mxu0 0
    %2982 = vmatprep.mubr.bf16.mxu0 0
    %2983 = vmatmul.mubr.bf16.gmra.mrb[0].mxu0 %v2945
    %v2984 = vpop.f32.mrb[0].mxu0
    %v2985 = vadd.f32 0.0, %v2984
    %v2986 = vpop.f32.mrb[0].mxu0
    %v2987 = vpop.f32.mrb[0].mxu0
    %v2988 = vpop.f32.mrb[0].mxu0
    %2989 = vdwg.mxu0
    %2990 = vrot.lane.b32.xlu0 %v2660, 32
    %v2991 = vpop.permute.xlu0 %2990
    %2992 = vrot.lane.b32.xlu0 %v2661, 32
    %v2993 = vpop.permute.xlu0 %2992
    %v2995 = vsel %vm488, %v2991, 0
    %v2998 = vsel %vm488, %v2993, 0
    %3000 = vmatprep.subr.bf16.mxu0 0
    %3001 = vmatpush1.bf16.xpose.msra.mxu0 %v2998
    %3002 = vmatprep.subr.bf16.mxu0 0
    %3003 = vmatpush1.bf16.xpose.msra.mxu0 0
    %3004 = vmatprep.subr.bf16.mxu0 0
    %3005 = vmatpush1.bf16.xpose.msra.mxu0 0
    %3006 = vmatprep.subr.bf16.mxu0 0
    %3007 = vmatpush1.bf16.xpose.msra.mxu0 0
    %3008 = vmatprep.subr.bf16.mxu0 0
    %3009 = vmatpush1.bf16.xpose.msra.mxu0 0
    %3010 = vmatprep.subr.bf16.mxu0 0
    %3011 = vmatpush1.bf16.xpose.msra.mxu0 0
    %3012 = vmatprep.subr.bf16.mxu0 0
    %3013 = vmatpush1.bf16.xpose.msra.mxu0 0
    %3014 = vmatprep.subr.bf16.mxu0 0
    %3015 = vmatpush1.bf16.xpose.msra.mxu0 0
    %3016 = vmatprep.subr.bf16.mxu0 0
    %3017 = vmatpush1.bf16.xpose.msra.mxu0 0
    %3018 = vmatprep.subr.bf16.mxu0 0
    %3019 = vmatpush1.bf16.xpose.msra.mxu0 0
    %3020 = vmatprep.subr.bf16.mxu0 0
    %3021 = vmatpush1.bf16.xpose.msra.mxu0 0
    %3022 = vmatprep.subr.bf16.mxu0 0
    %3023 = vmatpush1.bf16.xpose.msra.mxu0 0
    %3024 = vmatprep.subr.bf16.mxu0 0
    %3025 = vmatpush1.bf16.xpose.msra.mxu0 0
    %3026 = vmatprep.subr.bf16.mxu0 0
    %3027 = vmatpush1.bf16.xpose.msra.mxu0 0
    %3028 = vmatprep.subr.bf16.mxu0 0
    %3029 = vmatpush1.bf16.xpose.msra.mxu0 0
    %3030 = vmatprep.subr.bf16.mxu0 0
    %3031 = vmatpush1.bf16.xpose.msra.mxu0 0
    %3032 = vmatprep.mubr.bf16.mxu0 0
    %3033 = vmatmul.mubr.bf16.gmra.mrb[0].mxu0 %v2995
    %v3034 = vpop.f32.mrb[0].mxu0
    %v3035 = vadd.f32 0.0, %v3034
    %v3036 = vpop.f32.mrb[0].mxu0
    %v3037 = vpop.f32.mrb[0].mxu0
    %v3038 = vpop.f32.mrb[0].mxu0
    %3039 = vdwg.mxu0
    %v3040 = vmul.f32 %v3035, 0.17677669
    %v3041 = vsel %vm536, %v3040, -inf
    %3042 = vmax.xlane.f32.xlu0 %v3041
    %v3043 = vpop.xlane.xlu0 %3042
    %v3044 = vsub.f32 %v3040, %v3043
    %v3045 = vmul.f32 %v3044, 1.442695
    %v3046 = vpow.pop %v3045
    %v3047 = vsel %vm536, %v3046, 0.0
    %3048 = vadd.xlane.f32.xlu0 %v3047
    %v3049 = vpop.xlane.xlu0 %3048
    %v3050 = vrcp.pop %v3049
    %v3051 = vmul.f32 %v3046, %v3050
    %v3052 = vpack.c.bf16 %v3051, %v3051
    %3053 = vrot.lane.b32.xlu0 %v2721, 32
    %v3054 = vpop.permute.xlu0 %3053
    %v3056 = vsel %vm536, %v3052, 0
    %v3059 = vsel %vm552, %v3054, 0
    %3061 = vmatprep.subr.bf16.mxu0 0
    %3062 = vmatpush1.bf16.msra.mxu0 %v3059
    %3063 = vmatprep.subr.bf16.mxu0 0
    %3064 = vmatpush1.bf16.msra.mxu0 0
    %3065 = vmatprep.subr.bf16.mxu0 0
    %3066 = vmatpush1.bf16.msra.mxu0 0
    %3067 = vmatprep.subr.bf16.mxu0 0
    %3068 = vmatpush1.bf16.msra.mxu0 0
    %3069 = vmatprep.subr.bf16.mxu0 0
    %3070 = vmatpush1.bf16.msra.mxu0 0
    %3071 = vmatprep.subr.bf16.mxu0 0
    %3072 = vmatpush1.bf16.msra.mxu0 0
    %3073 = vmatprep.subr.bf16.mxu0 0
    %3074 = vmatpush1.bf16.msra.mxu0 0
    %3075 = vmatprep.subr.bf16.mxu0 0
    %3076 = vmatpush1.bf16.msra.mxu0 0
    %3077 = vmatprep.subr.bf16.mxu0 0
    %3078 = vmatpush1.bf16.msra.mxu0 0
    %3079 = vmatprep.subr.bf16.mxu0 0
    %3080 = vmatpush1.bf16.msra.mxu0 0
    %3081 = vmatprep.subr.bf16.mxu0 0
    %3082 = vmatpush1.bf16.msra.mxu0 0
    %3083 = vmatprep.subr.bf16.mxu0 0
    %3084 = vmatpush1.bf16.msra.mxu0 0
    %3085 = vmatprep.subr.bf16.mxu0 0
    %3086 = vmatpush1.bf16.msra.mxu0 0
    %3087 = vmatprep.subr.bf16.mxu0 0
    %3088 = vmatpush1.bf16.msra.mxu0 0
    %3089 = vmatprep.subr.bf16.mxu0 0
    %3090 = vmatpush1.bf16.msra.mxu0 0
    %3091 = vmatprep.subr.bf16.mxu0 0
    %3092 = vmatpush1.bf16.msra.mxu0 0
    %3093 = vmatprep.mubr.bf16.mxu0 0
    %3094 = vmatmul.mubr.bf16.gmra.mrb[0].mxu0 %v3056
    %v3095 = vpop.f32.mrb[0].mxu0
    %v3096 = vadd.f32 0.0, %v3095
    %v3097 = vpop.f32.mrb[0].mxu0
    %v3098 = vpop.f32.mrb[0].mxu0
    %v3099 = vpop.f32.mrb[0].mxu0
    %3100 = vdwg.mxu0
    %3102 = vrot.lane.b32.xlu0 %v2874, 32
    %v3103 = vpop.permute.xlu0 %3102
    %3106 = vrot.lane.b32.xlu0 %v2985, 64
    %v3107 = vpop.permute.xlu0 %3106
    %3110 = vrot.lane.b32.xlu0 %v3096, 96
    %v3111 = vpop.permute.xlu0 %3110
    %v3113 = vsel %vm488, %v2763, %v3103
    %v3114 = vsel %vm945, %v3113, %v3107
    %v3115 = vsel %vm947, %v3114, %v3111
    %v3116 = vpack.c.bf16 %v3115, %v2659
    %s3117 = scalar_lea.vmem [#allocation7], 64
    %v3118 = vld [vmem:[%s3117] sm:$0xf]
    %v3119 = vld [vmem:[%s3117 + $0x4] sm:$0xf]
    %v3120 = vld [vmem:[%s3117 + $0x8] sm:$0xf]
    %v3121 = vld [vmem:[%s3117 + $0xc] sm:$0xf]
    %v3122 = vld [vmem:[%s3117 + $0x10] sm:$0xf]
    %v3123 = vld [vmem:[%s3117 + $0x14] sm:$0xf]
    %v3124 = vld [vmem:[%s3117 + $0x18] sm:$0xf]
    %v3125 = vld [vmem:[%s3117 + $0x1c] sm:$0xf]
    %v3126 = vld [vmem:[%s3117 + $0x20] sm:$0xf]
    %v3127 = vld [vmem:[%s3117 + $0x24] sm:$0xf]
    %v3128 = vld [vmem:[%s3117 + $0x28] sm:$0xf]
    %v3129 = vld [vmem:[%s3117 + $0x2c] sm:$0xf]
    %v3130 = vld [vmem:[%s3117 + $0x30] sm:$0xf]
    %v3131 = vld [vmem:[%s3117 + $0x34] sm:$0xf]
    %v3132 = vld [vmem:[%s3117 + $0x38] sm:$0xf]
    %v3133 = vld [vmem:[%s3117 + $0x3c] sm:$0xf]
    %s3134 = scalar_lea.vmem [#allocation8], 1
    %v3135 = vld [vmem:[%s3134] sm:$0x1]
    %v3137 = vlaneseq
    %v3138 = vshrl.u32 %v3137, 7
    %v3139 = vsub.s32 0, %v3138
    %v3140 = vrot.slane %v3135, %v3139
    %v3158 = vunpack.c.l.b16 %v3118
    %v3159 = vunpack.c.l.b16 %v3119
    %v3160 = vunpack.c.l.b16 %v3120
    %v3161 = vunpack.c.l.b16 %v3121
    %v3162 = vunpack.c.l.b16 %v3122
    %v3163 = vunpack.c.l.b16 %v3123
    %v3164 = vunpack.c.l.b16 %v3124
    %v3165 = vunpack.c.l.b16 %v3125
    %v3166 = vunpack.c.l.b16 %v3126
    %v3167 = vunpack.c.l.b16 %v3127
    %v3168 = vunpack.c.l.b16 %v3128
    %v3169 = vunpack.c.l.b16 %v3129
    %v3170 = vunpack.c.l.b16 %v3130
    %v3171 = vunpack.c.l.b16 %v3131
    %v3172 = vunpack.c.l.b16 %v3132
    %v3173 = vunpack.c.l.b16 %v3133
    %v3174 = vpack.c.b16 %v3159, %v3158
    %v3175 = vpack.c.b16 %v3161, %v3160
    %v3176 = vpack.c.b16 %v3163, %v3162
    %v3177 = vpack.c.b16 %v3165, %v3164
    %v3178 = vpack.c.b16 %v3167, %v3166
    %v3179 = vpack.c.b16 %v3169, %v3168
    %v3180 = vpack.c.b16 %v3171, %v3170
    %v3181 = vpack.c.b16 %v3173, %v3172
    %3190 = vmatprep.subr.bf16.mxu0 0
    %3191 = vmatpush1.bf16.msra.mxu0 %v3174
    %3192 = vmatprep.subr.bf16.mxu0 0
    %3193 = vmatpush1.bf16.msra.mxu0 %v3175
    %3194 = vmatprep.subr.bf16.mxu0 0
    %3195 = vmatpush1.bf16.msra.mxu0 %v3176
    %3196 = vmatprep.subr.bf16.mxu0 0
    %3197 = vmatpush1.bf16.msra.mxu0 %v3177
    %3198 = vmatprep.subr.bf16.mxu0 0
    %3199 = vmatpush1.bf16.msra.mxu0 %v3178
    %3200 = vmatprep.subr.bf16.mxu0 0
    %3201 = vmatpush1.bf16.msra.mxu0 %v3179
    %3202 = vmatprep.subr.bf16.mxu0 0
    %3203 = vmatpush1.bf16.msra.mxu0 %v3180
    %3204 = vmatprep.subr.bf16.mxu0 0
    %3205 = vmatpush1.bf16.msra.mxu0 %v3181
    %3206 = vmatprep.subr.bf16.mxu0 0
    %3207 = vmatpush1.bf16.msra.mxu0 0
    %3208 = vmatprep.subr.bf16.mxu0 0
    %3209 = vmatpush1.bf16.msra.mxu0 0
    %3210 = vmatprep.subr.bf16.mxu0 0
    %3211 = vmatpush1.bf16.msra.mxu0 0
    %3212 = vmatprep.subr.bf16.mxu0 0
    %3213 = vmatpush1.bf16.msra.mxu0 0
    %3214 = vmatprep.subr.bf16.mxu0 0
    %3215 = vmatpush1.bf16.msra.mxu0 0
    %3216 = vmatprep.subr.bf16.mxu0 0
    %3217 = vmatpush1.bf16.msra.mxu0 0
    %3218 = vmatprep.subr.bf16.mxu0 0
    %3219 = vmatpush1.bf16.msra.mxu0 0
    %3220 = vmatprep.subr.bf16.mxu0 0
    %3221 = vmatpush1.bf16.msra.mxu0 0
    %3222 = vmatprep.mubr.bf16.mxu0 0
    %3223 = vmatmul.mubr.bf16.gmra.mrb[0].mxu0 %v3116
    %v3224 = vpop.f32.mrb[0].mxu0
    %v3225 = vadd.f32 %v3140, %v3224
    %v3226 = vpop.f32.mrb[0].mxu0
    %v3227 = vpop.f32.mrb[0].mxu0
    %v3228 = vadd.f32 %v3140, %v3227
    %v3229 = vpop.f32.mrb[0].mxu0
    %3230 = vdwg.mxu0
    %v3231 = vadd.f32 %v1935, %v3225
    %v3232 = vadd.f32 %v1936, %v3228
    %s3233 = scalar_lea.vmem [#allocation10], 1
    %v3234 = vld [vmem:[%s3233] sm:$0x1]
    %s3235 = scalar_lea.vmem [#allocation11], 1
    %v3236 = vld [vmem:[%s3235] sm:$0x1]
    %3237 = vadd.xlane.f32.xlu0 %v3231
    %v3238 = vpop.xlane.xlu0 %3237
    %3239 = vadd.xlane.f32.xlu0 %v3232
    %v3240 = vpop.xlane.xlu0 %3239
    %v3241 = vmul.f32 %v3238, %v1526
    %v3242 = vmul.f32 %v3240, %v1526
    %v3243 = vsub.f32 %v3231, %v3241
    %v3244 = vsub.f32 %v3232, %v3242
    %v3245 = vmul.f32 %v3243, %v3243
    %v3246 = vmul.f32 %v3244, %v3244
    %3247 = vadd.xlane.f32.xlu0 %v3245
    %v3248 = vpop.xlane.xlu0 %3247
    %3249 = vadd.xlane.f32.xlu0 %v3246
    %v3250 = vpop.xlane.xlu0 %3249
    %v3251 = vmul.f32 %v3248, %v1526
    %v3252 = vmul.f32 %v3250, %v1526
    %v3253 = vadd.f32 %v3251, 1e-05
    %v3254 = vadd.f32 %v3252, 1e-05
    %v3255 = vrsqrt.pop %v3253
    %v3256 = vrsqrt.pop %v3254
    %v3257 = vmul.f32 %v3243, %v3255
    %v3258 = vmul.f32 %v3244, %v3256
    %v3260 = vlaneseq
    %v3261 = vshrl.u32 %v3260, 7
    %v3262 = vsub.s32 0, %v3261
    %v3263 = vrot.slane %v3234, %v3262
    %v3265 = vmul.f32 %v3257, %v3263
    %v3266 = vmul.f32 %v3258, %v3263
    %v3268 = vlaneseq
    %v3269 = vshrl.u32 %v3268, 7
    %v3270 = vsub.s32 0, %v3269
    %v3271 = vrot.slane %v3236, %v3270
    %v3273 = vadd.f32 %v3265, %v3271
    %v3274 = vadd.f32 %v3266, %v3271
    %v3275 = vpack.c.bf16 %v3274, %v3273
    %s3276 = scalar_lea.vmem %s8, 128
    %v3277 = vld [vmem:[%s3276] sm:$0xff]
    %v3278 = vld [vmem:[%s3276 + $0x8] sm:$0xff]
    %v3279 = vld [vmem:[%s3276 + $0x10] sm:$0xff]
    %v3280 = vld [vmem:[%s3276 + $0x18] sm:$0xff]
    %v3281 = vld [vmem:[%s3276 + $0x20] sm:$0xff]
    %v3282 = vld [vmem:[%s3276 + $0x28] sm:$0xff]
    %v3283 = vld [vmem:[%s3276 + $0x30] sm:$0xff]
    %v3284 = vld [vmem:[%s3276 + $0x38] sm:$0xff]
    %v3285 = vld [vmem:[%s3276 + $0x40] sm:$0xff]
    %v3286 = vld [vmem:[%s3276 + $0x48] sm:$0xff]
    %v3287 = vld [vmem:[%s3276 + $0x50] sm:$0xff]
    %v3288 = vld [vmem:[%s3276 + $0x58] sm:$0xff]
    %v3289 = vld [vmem:[%s3276 + $0x60] sm:$0xff]
    %v3290 = vld [vmem:[%s3276 + $0x68] sm:$0xff]
    %v3291 = vld [vmem:[%s3276 + $0x70] sm:$0xff]
    %v3292 = vld [vmem:[%s3276 + $0x78] sm:$0xff]
    %s3293 = scalar_lea.vmem %s9, 2
    %v3294 = vld [vmem:[%s3293] sm:$0x3]
    %v3296 = vlaneseq
    %v3297 = vshrl.u32 %v3296, 7
    %v3298 = vsub.s32 0, %v3297
    %v3299 = vrot.slane %v3294, %v3298
    %v3300 = vlaneseq
    %v3301 = vshrl.u32 %v3300, 7
    %v3302 = vsub.s32 1, %v3301
    %v3303 = vrot.slane %v3294, %v3302
    %v3322 = vunpack.c.l.b16 %v3277
    %v3323 = vunpack.c.h.b16 %v3277
    %v3324 = vunpack.c.l.b16 %v3278
    %v3325 = vunpack.c.h.b16 %v3278
    %v3326 = vunpack.c.l.b16 %v3279
    %v3327 = vunpack.c.h.b16 %v3279
    %v3328 = vunpack.c.l.b16 %v3280
    %v3329 = vunpack.c.h.b16 %v3280
    %v3330 = vunpack.c.l.b16 %v3281
    %v3331 = vunpack.c.h.b16 %v3281
    %v3332 = vunpack.c.l.b16 %v3282
    %v3333 = vunpack.c.h.b16 %v3282
    %v3334 = vunpack.c.l.b16 %v3283
    %v3335 = vunpack.c.h.b16 %v3283
    %v3336 = vunpack.c.l.b16 %v3284
    %v3337 = vunpack.c.h.b16 %v3284
    %v3338 = vunpack.c.l.b16 %v3285
    %v3339 = vunpack.c.h.b16 %v3285
    %v3340 = vunpack.c.l.b16 %v3286
    %v3341 = vunpack.c.h.b16 %v3286
    %v3342 = vunpack.c.l.b16 %v3287
    %v3343 = vunpack.c.h.b16 %v3287
    %v3344 = vunpack.c.l.b16 %v3288
    %v3345 = vunpack.c.h.b16 %v3288
    %v3346 = vunpack.c.l.b16 %v3289
    %v3347 = vunpack.c.h.b16 %v3289
    %v3348 = vunpack.c.l.b16 %v3290
    %v3349 = vunpack.c.h.b16 %v3290
    %v3350 = vunpack.c.l.b16 %v3291
    %v3351 = vunpack.c.h.b16 %v3291
    %v3352 = vunpack.c.l.b16 %v3292
    %v3353 = vunpack.c.h.b16 %v3292
    %v3354 = vpack.c.b16 %v3324, %v3322
    %v3355 = vpack.c.b16 %v3325, %v3323
    %v3356 = vpack.c.b16 %v3328, %v3326
    %v3357 = vpack.c.b16 %v3329, %v3327
    %v3358 = vpack.c.b16 %v3332, %v3330
    %v3359 = vpack.c.b16 %v3333, %v3331
    %v3360 = vpack.c.b16 %v3336, %v3334
    %v3361 = vpack.c.b16 %v3337, %v3335
    %v3362 = vpack.c.b16 %v3340, %v3338
    %v3363 = vpack.c.b16 %v3341, %v3339
    %v3364 = vpack.c.b16 %v3344, %v3342
    %v3365 = vpack.c.b16 %v3345, %v3343
    %v3366 = vpack.c.b16 %v3348, %v3346
    %v3367 = vpack.c.b16 %v3349, %v3347
    %v3368 = vpack.c.b16 %v3352, %v3350
    %v3369 = vpack.c.b16 %v3353, %v3351
    %3386 = vmatprep.subr.bf16.mxu0 %v3355
    %3387 = vmatpush1.bf16.msra.mxu0 %v3354
    %3388 = vmatprep.subr.bf16.mxu0 %v3357
    %3389 = vmatpush1.bf16.msra.mxu0 %v3356
    %3390 = vmatprep.subr.bf16.mxu0 %v3359
    %3391 = vmatpush1.bf16.msra.mxu0 %v3358
    %3392 = vmatprep.subr.bf16.mxu0 %v3361
    %3393 = vmatpush1.bf16.msra.mxu0 %v3360
    %3394 = vmatprep.subr.bf16.mxu0 %v3363
    %3395 = vmatpush1.bf16.msra.mxu0 %v3362
    %3396 = vmatprep.subr.bf16.mxu0 %v3365
    %3397 = vmatpush1.bf16.msra.mxu0 %v3364
    %3398 = vmatprep.subr.bf16.mxu0 %v3367
    %3399 = vmatpush1.bf16.msra.mxu0 %v3366
    %3400 = vmatprep.subr.bf16.mxu0 %v3369
    %3401 = vmatpush1.bf16.msra.mxu0 %v3368
    %3402 = vmatprep.subr.bf16.mxu0 0
    %3403 = vmatpush1.bf16.msra.mxu0 0
    %3404 = vmatprep.subr.bf16.mxu0 0
    %3405 = vmatpush1.bf16.msra.mxu0 0
    %3406 = vmatprep.subr.bf16.mxu0 0
    %3407 = vmatpush1.bf16.msra.mxu0 0
    %3408 = vmatprep.subr.bf16.mxu0 0
    %3409 = vmatpush1.bf16.msra.mxu0 0
    %3410 = vmatprep.subr.bf16.mxu0 0
    %3411 = vmatpush1.bf16.msra.mxu0 0
    %3412 = vmatprep.subr.bf16.mxu0 0
    %3413 = vmatpush1.bf16.msra.mxu0 0
    %3414 = vmatprep.subr.bf16.mxu0 0
    %3415 = vmatpush1.bf16.msra.mxu0 0
    %3416 = vmatprep.subr.bf16.mxu0 0
    %3417 = vmatpush1.bf16.msra.mxu0 0
    %3418 = vmatprep.mubr.bf16.mxu0 0
    %3419 = vmatmul.mubr.bf16.gmra.mrb[0].mxu0 %v3275
    %v3420 = vpop.f32.mrb[0].mxu0
    %v3421 = vadd.f32 %v3299, %v3420
    %v3422 = vpop.f32.mrb[0].mxu0
    %v3423 = vadd.f32 %v3303, %v3422
    %v3424 = vpop.f32.mrb[0].mxu0
    %v3425 = vadd.f32 %v3299, %v3424
    %v3426 = vpop.f32.mrb[0].mxu0
    %v3427 = vadd.f32 %v3303, %v3426
    %3428 = vdwg.mxu0
    %v3429 = vmax.f32 %v3421, 0.0
    %v3430 = vmax.f32 %v3423, 0.0
    %v3431 = vmax.f32 %v3425, 0.0
    %v3432 = vmax.f32 %v3427, 0.0
    %v3433 = vpack.c.bf16 %v3431, %v3429
    %v3434 = vpack.c.bf16 %v3432, %v3430
    %s3435 = scalar_lea.vmem [#allocation13], 128
    %v3436 = vld [vmem:[%s3435] sm:$0xf]
    %v3437 = vld [vmem:[%s3435 + $0x4] sm:$0xf]
    %v3438 = vld [vmem:[%s3435 + $0x8] sm:$0xf]
    %v3439 = vld [vmem:[%s3435 + $0xc] sm:$0xf]
    %v3440 = vld [vmem:[%s3435 + $0x10] sm:$0xf]
    %v3441 = vld [vmem:[%s3435 + $0x14] sm:$0xf]
    %v3442 = vld [vmem:[%s3435 + $0x18] sm:$0xf]
    %v3443 = vld [vmem:[%s3435 + $0x1c] sm:$0xf]
    %v3444 = vld [vmem:[%s3435 + $0x20] sm:$0xf]
    %v3445 = vld [vmem:[%s3435 + $0x24] sm:$0xf]
    %v3446 = vld [vmem:[%s3435 + $0x28] sm:$0xf]
    %v3447 = vld [vmem:[%s3435 + $0x2c] sm:$0xf]
    %v3448 = vld [vmem:[%s3435 + $0x30] sm:$0xf]
    %v3449 = vld [vmem:[%s3435 + $0x34] sm:$0xf]
    %v3450 = vld [vmem:[%s3435 + $0x38] sm:$0xf]
    %v3451 = vld [vmem:[%s3435 + $0x3c] sm:$0xf]
    %v3452 = vld [vmem:[%s3435 + $0x40] sm:$0xf]
    %v3453 = vld [vmem:[%s3435 + $0x44] sm:$0xf]
    %v3454 = vld [vmem:[%s3435 + $0x48] sm:$0xf]
    %v3455 = vld [vmem:[%s3435 + $0x4c] sm:$0xf]
    %v3456 = vld [vmem:[%s3435 + $0x50] sm:$0xf]
    %v3457 = vld [vmem:[%s3435 + $0x54] sm:$0xf]
    %v3458 = vld [vmem:[%s3435 + $0x58] sm:$0xf]
    %v3459 = vld [vmem:[%s3435 + $0x5c] sm:$0xf]
    %v3460 = vld [vmem:[%s3435 + $0x60] sm:$0xf]
    %v3461 = vld [vmem:[%s3435 + $0x64] sm:$0xf]
    %v3462 = vld [vmem:[%s3435 + $0x68] sm:$0xf]
    %v3463 = vld [vmem:[%s3435 + $0x6c] sm:$0xf]
    %v3464 = vld [vmem:[%s3435 + $0x70] sm:$0xf]
    %v3465 = vld [vmem:[%s3435 + $0x74] sm:$0xf]
    %v3466 = vld [vmem:[%s3435 + $0x78] sm:$0xf]
    %v3467 = vld [vmem:[%s3435 + $0x7c] sm:$0xf]
    %s3468 = scalar_lea.vmem [#allocation14], 1
    %v3469 = vld [vmem:[%s3468] sm:$0x1]
    %v3471 = vlaneseq
    %v3472 = vshrl.u32 %v3471, 7
    %v3473 = vsub.s32 0, %v3472
    %v3474 = vrot.slane %v3469, %v3473
    %v3508 = vunpack.c.l.b16 %v3436
    %v3509 = vunpack.c.l.b16 %v3437
    %v3510 = vunpack.c.l.b16 %v3438
    %v3511 = vunpack.c.l.b16 %v3439
    %v3512 = vunpack.c.l.b16 %v3440
    %v3513 = vunpack.c.l.b16 %v3441
    %v3514 = vunpack.c.l.b16 %v3442
    %v3515 = vunpack.c.l.b16 %v3443
    %v3516 = vunpack.c.l.b16 %v3444
    %v3517 = vunpack.c.l.b16 %v3445
    %v3518 = vunpack.c.l.b16 %v3446
    %v3519 = vunpack.c.l.b16 %v3447
    %v3520 = vunpack.c.l.b16 %v3448
    %v3521 = vunpack.c.l.b16 %v3449
    %v3522 = vunpack.c.l.b16 %v3450
    %v3523 = vunpack.c.l.b16 %v3451
    %v3524 = vunpack.c.l.b16 %v3452
    %v3525 = vunpack.c.l.b16 %v3453
    %v3526 = vunpack.c.l.b16 %v3454
    %v3527 = vunpack.c.l.b16 %v3455
    %v3528 = vunpack.c.l.b16 %v3456
    %v3529 = vunpack.c.l.b16 %v3457
    %v3530 = vunpack.c.l.b16 %v3458
    %v3531 = vunpack.c.l.b16 %v3459
    %v3532 = vunpack.c.l.b16 %v3460
    %v3533 = vunpack.c.l.b16 %v3461
    %v3534 = vunpack.c.l.b16 %v3462
    %v3535 = vunpack.c.l.b16 %v3463
    %v3536 = vunpack.c.l.b16 %v3464
    %v3537 = vunpack.c.l.b16 %v3465
    %v3538 = vunpack.c.l.b16 %v3466
    %v3539 = vunpack.c.l.b16 %v3467
    %v3540 = vpack.c.b16 %v3509, %v3508
    %v3541 = vpack.c.b16 %v3511, %v3510
    %v3542 = vpack.c.b16 %v3513, %v3512
    %v3543 = vpack.c.b16 %v3515, %v3514
    %v3544 = vpack.c.b16 %v3517, %v3516
    %v3545 = vpack.c.b16 %v3519, %v3518
    %v3546 = vpack.c.b16 %v3521, %v3520
    %v3547 = vpack.c.b16 %v3523, %v3522
    %v3548 = vpack.c.b16 %v3525, %v3524
    %v3549 = vpack.c.b16 %v3527, %v3526
    %v3550 = vpack.c.b16 %v3529, %v3528
    %v3551 = vpack.c.b16 %v3531, %v3530
    %v3552 = vpack.c.b16 %v3533, %v3532
    %v3553 = vpack.c.b16 %v3535, %v3534
    %v3554 = vpack.c.b16 %v3537, %v3536
    %v3555 = vpack.c.b16 %v3539, %v3538
    %3572 = vmatprep.subr.bf16.mxu0 0
    %3573 = vmatpush1.bf16.msra.mxu0 %v3540
    %3574 = vmatprep.subr.bf16.mxu0 0
    %3575 = vmatpush1.bf16.msra.mxu0 %v3541
    %3576 = vmatprep.subr.bf16.mxu0 0
    %3577 = vmatpush1.bf16.msra.mxu0 %v3542
    %3578 = vmatprep.subr.bf16.mxu0 0
    %3579 = vmatpush1.bf16.msra.mxu0 %v3543
    %3580 = vmatprep.subr.bf16.mxu0 0
    %3581 = vmatpush1.bf16.msra.mxu0 %v3544
    %3582 = vmatprep.subr.bf16.mxu0 0
    %3583 = vmatpush1.bf16.msra.mxu0 %v3545
    %3584 = vmatprep.subr.bf16.mxu0 0
    %3585 = vmatpush1.bf16.msra.mxu0 %v3546
    %3586 = vmatprep.subr.bf16.mxu0 0
    %3587 = vmatpush1.bf16.msra.mxu0 %v3547
    %3588 = vmatprep.subr.bf16.mxu0 0
    %3589 = vmatpush1.bf16.msra.mxu0 %v3548
    %3590 = vmatprep.subr.bf16.mxu0 0
    %3591 = vmatpush1.bf16.msra.mxu0 %v3549
    %3592 = vmatprep.subr.bf16.mxu0 0
    %3593 = vmatpush1.bf16.msra.mxu0 %v3550
    %3594 = vmatprep.subr.bf16.mxu0 0
    %3595 = vmatpush1.bf16.msra.mxu0 %v3551
    %3596 = vmatprep.subr.bf16.mxu0 0
    %3597 = vmatpush1.bf16.msra.mxu0 %v3552
    %3598 = vmatprep.subr.bf16.mxu0 0
    %3599 = vmatpush1.bf16.msra.mxu0 %v3553
    %3600 = vmatprep.subr.bf16.mxu0 0
    %3601 = vmatpush1.bf16.msra.mxu0 %v3554
    %3602 = vmatprep.subr.bf16.mxu0 0
    %3603 = vmatpush1.bf16.msra.mxu0 %v3555
    %3604 = vmatprep.mubr.bf16.mxu0 %v3434
    %3605 = vmatmul.mubr.bf16.gmra.mrb[0].mxu0 %v3433
    %v3606 = vpop.f32.mrb[0].mxu0
    %v3607 = vadd.f32 %v3474, %v3606
    %v3608 = vpop.f32.mrb[0].mxu0
    %v3609 = vpop.f32.mrb[0].mxu0
    %v3610 = vadd.f32 %v3474, %v3609
    %v3611 = vpop.f32.mrb[0].mxu0
    %3612 = vdwg.mxu0
    %v3613 = vadd.f32 %v3273, %v3607
    %v3614 = vadd.f32 %v3274, %v3610
    %s3615 = scalar_lea.vmem [#allocation16], 1
    %v3616 = vld [vmem:[%s3615] sm:$0x1]
    %s3617 = scalar_lea.vmem [#allocation17], 1
    %v3618 = vld [vmem:[%s3617] sm:$0x1]
    %3619 = vadd.xlane.f32.xlu0 %v3613
    %v3620 = vpop.xlane.xlu0 %3619
    %3621 = vadd.xlane.f32.xlu0 %v3614
    %v3622 = vpop.xlane.xlu0 %3621
    %v3623 = vmul.f32 %v3620, %v1526
    %v3624 = vmul.f32 %v3622, %v1526
    %v3625 = vsub.f32 %v3613, %v3623
    %v3626 = vsub.f32 %v3614, %v3624
    %v3627 = vmul.f32 %v3625, %v3625
    %v3628 = vmul.f32 %v3626, %v3626
    %3629 = vadd.xlane.f32.xlu0 %v3627
    %v3630 = vpop.xlane.xlu0 %3629
    %3631 = vadd.xlane.f32.xlu0 %v3628
    %v3632 = vpop.xlane.xlu0 %3631
    %v3633 = vmul.f32 %v3630, %v1526
    %v3634 = vmul.f32 %v3632, %v1526
    %v3635 = vadd.f32 %v3633, 1e-05
    %v3636 = vadd.f32 %v3634, 1e-05
    %v3637 = vrsqrt.pop %v3635
    %v3638 = vrsqrt.pop %v3636
    %v3639 = vmul.f32 %v3625, %v3637
    %v3640 = vmul.f32 %v3626, %v3638
    %v3642 = vlaneseq
    %v3643 = vshrl.u32 %v3642, 7
    %v3644 = vsub.s32 0, %v3643
    %v3645 = vrot.slane %v3616, %v3644
    %v3647 = vmul.f32 %v3639, %v3645
    %v3648 = vmul.f32 %v3640, %v3645
    %v3650 = vlaneseq
    %v3651 = vshrl.u32 %v3650, 7
    %v3652 = vsub.s32 0, %v3651
    %v3653 = vrot.slane %v3618, %v3652
    %v3655 = vadd.f32 %v3647, %v3653
    %v3656 = vadd.f32 %v3648, %v3653
    %v3657 = vpack.c.bf16 %v3656, %v3655
    %v3658 = vld [vmem:[#allocation19] sm:$0xff]
    %v3659 = vld [vmem:[#allocation19 + $0x8] sm:$0xff]
    %v3660 = vld [vmem:[#allocation19 + $0x10] sm:$0xff]
    %v3661 = vld [vmem:[#allocation19 + $0x18] sm:$0xff]
    %v3662 = vld [vmem:[#allocation19 + $0x20] sm:$0xff]
    %v3663 = vld [vmem:[#allocation19 + $0x28] sm:$0xff]
    %v3664 = vld [vmem:[#allocation19 + $0x30] sm:$0xff]
    %v3665 = vld [vmem:[#allocation19 + $0x38] sm:$0xff]
    %v3666 = vld [vmem:[#allocation19 + $0x40] sm:$0xff]
    %v3667 = vld [vmem:[#allocation19 + $0x48] sm:$0xff]
    %v3668 = vld [vmem:[#allocation19 + $0x50] sm:$0xff]
    %v3669 = vld [vmem:[#allocation19 + $0x58] sm:$0xff]
    %v3670 = vld [vmem:[#allocation19 + $0x60] sm:$0xff]
    %v3671 = vld [vmem:[#allocation19 + $0x68] sm:$0xff]
    %v3672 = vld [vmem:[#allocation19 + $0x70] sm:$0xff]
    %v3673 = vld [vmem:[#allocation19 + $0x78] sm:$0xff]
    %v3674 = vld [vmem:[#allocation20] sm:$0x3]
    %v3676 = vlaneseq
    %v3677 = vshrl.u32 %v3676, 7
    %v3678 = vsub.s32 0, %v3677
    %v3679 = vrot.slane %v3674, %v3678
    %v3680 = vlaneseq
    %v3681 = vshrl.u32 %v3680, 7
    %v3682 = vsub.s32 1, %v3681
    %v3683 = vrot.slane %v3674, %v3682
    %v3702 = vunpack.c.l.b16 %v3658
    %v3703 = vunpack.c.h.b16 %v3658
    %v3704 = vunpack.c.l.b16 %v3659
    %v3705 = vunpack.c.h.b16 %v3659
    %v3706 = vunpack.c.l.b16 %v3660
    %v3707 = vunpack.c.h.b16 %v3660
    %v3708 = vunpack.c.l.b16 %v3661
    %v3709 = vunpack.c.h.b16 %v3661
    %v3710 = vunpack.c.l.b16 %v3662
    %v3711 = vunpack.c.h.b16 %v3662
    %v3712 = vunpack.c.l.b16 %v3663
    %v3713 = vunpack.c.h.b16 %v3663
    %v3714 = vunpack.c.l.b16 %v3664
    %v3715 = vunpack.c.h.b16 %v3664
    %v3716 = vunpack.c.l.b16 %v3665
    %v3717 = vunpack.c.h.b16 %v3665
    %v3718 = vunpack.c.l.b16 %v3666
    %v3719 = vunpack.c.h.b16 %v3666
    %v3720 = vunpack.c.l.b16 %v3667
    %v3721 = vunpack.c.h.b16 %v3667
    %v3722 = vunpack.c.l.b16 %v3668
    %v3723 = vunpack.c.h.b16 %v3668
    %v3724 = vunpack.c.l.b16 %v3669
    %v3725 = vunpack.c.h.b16 %v3669
    %v3726 = vunpack.c.l.b16 %v3670
    %v3727 = vunpack.c.h.b16 %v3670
    %v3728 = vunpack.c.l.b16 %v3671
    %v3729 = vunpack.c.h.b16 %v3671
    %v3730 = vunpack.c.l.b16 %v3672
    %v3731 = vunpack.c.h.b16 %v3672
    %v3732 = vunpack.c.l.b16 %v3673
    %v3733 = vunpack.c.h.b16 %v3673
    %v3734 = vpack.c.b16 %v3704, %v3702
    %v3735 = vpack.c.b16 %v3705, %v3703
    %v3736 = vpack.c.b16 %v3708, %v3706
    %v3737 = vpack.c.b16 %v3709, %v3707
    %v3738 = vpack.c.b16 %v3712, %v3710
    %v3739 = vpack.c.b16 %v3713, %v3711
    %v3740 = vpack.c.b16 %v3716, %v3714
    %v3741 = vpack.c.b16 %v3717, %v3715
    %v3742 = vpack.c.b16 %v3720, %v3718
    %v3743 = vpack.c.b16 %v3721, %v3719
    %v3744 = vpack.c.b16 %v3724, %v3722
    %v3745 = vpack.c.b16 %v3725, %v3723
    %v3746 = vpack.c.b16 %v3728, %v3726
    %v3747 = vpack.c.b16 %v3729, %v3727
    %v3748 = vpack.c.b16 %v3732, %v3730
    %v3749 = vpack.c.b16 %v3733, %v3731
    %3766 = vmatprep.subr.bf16.mxu0 %v3735
    %3767 = vmatpush1.bf16.msra.mxu0 %v3734
    %3768 = vmatprep.subr.bf16.mxu0 %v3737
    %3769 = vmatpush1.bf16.msra.mxu0 %v3736
    %3770 = vmatprep.subr.bf16.mxu0 %v3739
    %3771 = vmatpush1.bf16.msra.mxu0 %v3738
    %3772 = vmatprep.subr.bf16.mxu0 %v3741
    %3773 = vmatpush1.bf16.msra.mxu0 %v3740
    %3774 = vmatprep.subr.bf16.mxu0 %v3743
    %3775 = vmatpush1.bf16.msra.mxu0 %v3742
    %3776 = vmatprep.subr.bf16.mxu0 %v3745
    %3777 = vmatpush1.bf16.msra.mxu0 %v3744
    %3778 = vmatprep.subr.bf16.mxu0 %v3747
    %3779 = vmatpush1.bf16.msra.mxu0 %v3746
    %3780 = vmatprep.subr.bf16.mxu0 %v3749
    %3781 = vmatpush1.bf16.msra.mxu0 %v3748
    %3782 = vmatprep.subr.bf16.mxu0 0
    %3783 = vmatpush1.bf16.msra.mxu0 0
    %3784 = vmatprep.subr.bf16.mxu0 0
    %3785 = vmatpush1.bf16.msra.mxu0 0
    %3786 = vmatprep.subr.bf16.mxu0 0
    %3787 = vmatpush1.bf16.msra.mxu0 0
    %3788 = vmatprep.subr.bf16.mxu0 0
    %3789 = vmatpush1.bf16.msra.mxu0 0
    %3790 = vmatprep.subr.bf16.mxu0 0
    %3791 = vmatpush1.bf16.msra.mxu0 0
    %3792 = vmatprep.subr.bf16.mxu0 0
    %3793 = vmatpush1.bf16.msra.mxu0 0
    %3794 = vmatprep.subr.bf16.mxu0 0
    %3795 = vmatpush1.bf16.msra.mxu0 0
    %3796 = vmatprep.subr.bf16.mxu0 0
    %3797 = vmatpush1.bf16.msra.mxu0 0
    %3798 = vmatprep.mubr.bf16.mxu0 0
    %3799 = vmatmul.mubr.bf16.gmra.mrb[0].mxu0 %v3657
    %v3800 = vpop.f32.mrb[0].mxu0
    %v3801 = vadd.f32 %v3679, %v3800
    %v3802 = vpop.f32.mrb[0].mxu0
    %v3803 = vadd.f32 %v3683, %v3802
    %v3804 = vpop.f32.mrb[0].mxu0
    %v3805 = vadd.f32 %v3679, %v3804
    %v3806 = vpop.f32.mrb[0].mxu0
    %v3807 = vadd.f32 %v3683, %v3806
    %3808 = vdwg.mxu0
    %3809 = vst [vmem:[#allocation22] sm:$0xff] %v3801
    %3810 = vst [vmem:[#allocation22 + $0x8] sm:$0xff] %v3803
    %3811 = vst [vmem:[#allocation22 + $0x10] sm:$0xff] %v3805
    %3812 = vst [vmem:[#allocation22 + $0x18] sm:$0xff] %v3807
    // Predicated region
    $region114: #{transformer_forward.1} parent=1 // pred_check
      _
    $region115: #{transformer_forward.1} parent=1 // pred_check_branch
      %3814 = sbr.rel (0) target = $region117
    $region116: #{transformer_forward.1} parent=1 // pred_region
      %s3816 = ssub.s32 512, 512
      %3817 = vsyncadd [#allocation4], %s3816
      %s3818 = sshll.u32 [#allocation22], 4
      %s3819 = int_to_ptr.vmem [resolvable:$true] %s3818
      %3824 = dma.vmem_to_hbm [thread:$0]  %s3819, 512, %s16, [#allocation4], 256, 256, 16
    $region117: #{transformer_forward.1} parent=1 // pred_fallthru
      _
    // Predicated region
    $region118: #{transformer_forward.1} parent=1 // pred_check
      _
    $region119: #{transformer_forward.1} parent=1 // pred_check_branch
      %3826 = sbr.rel (0) target = $region121
    $region120: #{transformer_forward.1} parent=1 // pred_region
      %3827 = dma.done [#allocation4], 512
    $region121: #{transformer_forward.1} parent=1 // pred_fallthru
      _
    %3828 = vsyncpa [#allocation3], 1
    %3829 = vsyncpa [#allocation6], 1
    %3830 = vsyncpa [#allocation9], 1
    %3831 = vsyncpa [#allocation12], 1
    %3832 = vsyncpa [#allocation15], 1
    %3833 = vsyncpa [#allocation18], 1
    %3834 = vsyncpa [#allocation21], 1
    %3835 = vsyncpa [#allocation4], 1

</llo_original>
